<compile_context>
chip_gen: v7x
topology: tpu7x:2x2x1
jax: 0.10.0
libtpu: 0.0.40
codegen_flags: <defaults>
</compile_context>

<pallas_src>
import math
import jax
import jax.numpy as jnp
from jax import lax
from jax.experimental import pallas as pl
from jax.experimental.pallas import tpu as pltpu

# Small, CLIP-consistent hyper-parameters
B = 2          # batch (number of prompts)
L = 8          # context length (sequence)
D = 32         # transformer width
H = 4          # attention heads
HD = D // H    # head dim
NL = 2         # transformer layers
D_OUT = 32     # text_projection output dim
EPS = 1e-5     # LayerNorm eps (PyTorch default)


def _layernorm(x, g, b):
    mu = jnp.mean(x, axis=-1, keepdims=True)
    var = jnp.mean((x - mu) ** 2, axis=-1, keepdims=True)
    return (x - mu) * lax.rsqrt(var + EPS) * g[None, :] + b[None, :]


def text_encoder_kernel(
    eot_ref,                          # SMEM (B,) int32 : argmax(tokenized_prompts) (scalar prefetch)
    prompts_ref,                      # (1, L, D)        this prompt's embeddings
    pos_ref,                          # (L, D)           positional embedding (passed once)
    ln1_g_ref, ln1_b_ref,             # (NL, D)
    wqkv_ref, bqkv_ref,               # (NL, D, 3D) bf16 (q-scale folded), (NL, 3D) f32
    wout_ref, bout_ref,               # (NL, D, D)  bf16, (NL, D) f32      attn out_proj
    ln2_g_ref, ln2_b_ref,             # (NL, D)
    wfc_ref, bfc_ref,                 # (NL, D, 4D) bf16, (NL, 4D) f32     mlp c_fc
    wproj_ref, bproj_ref,             # (NL, 4D, D) bf16, (NL, D) f32      mlp c_proj
    lnf_g_ref, lnf_b_ref,             # (1, D)                              ln_final
    tproj_ref,                        # (D, D_OUT) bf16                     text_projection
    out_ref,                          # (1, 1, D_OUT) f32
    x_scr,                            # VMEM scratch (L, D) f32 (dynamic EOT row gather)
):
    f32 = jnp.float32
    bf16 = jnp.bfloat16
    b = pl.program_id(0)

    # x = prompts + positional_embedding      ((L, D) for this batch element)
    x = (prompts_ref[0] + pos_ref[...]).astype(f32)

    # Per-batch (L, L) causal mask — additive on the f32 score accumulator.
    row = lax.broadcasted_iota(jnp.int32, (L, L), 0)
    col = lax.broadcasted_iota(jnp.int32, (L, L), 1)
    mask = jnp.where(col <= row, 0.0, -1e30).astype(f32)

    # TODO(synk): at real CLIP size (NL=12, D=512) stream layer weights over an (NL,)
    # "arbitrary" grid axis instead of this static unroll (see header NOTE).
    for l in range(NL):                                   # static unroll over layers (NL=2)
        # ---- attention branch: x = x + attn(ln_1(x)) ----
        h1 = _layernorm(x, ln1_g_ref[l], ln1_b_ref[l])                        # (L, D) f32

        # fused, lane-dense QKV projection: one (L, D) @ (D, 3D) MXU op
        qkv = jnp.dot(h1.astype(bf16), wqkv_ref[l],
                      preferred_element_type=f32) + bqkv_ref[l][None, :]      # (L, 3D)

        # per-head scores / softmax / PV on 2-D lane slices (tiny; weights stay fused).
        head_outs = []
        for h in range(H):                                # static unroll over heads (H=4)
            qh = qkv[:, 0 * D + h * HD:0 * D + (h + 1) * HD].astype(bf16)     # (L, HD)
            kh = qkv[:, 1 * D + h * HD:1 * D + (h + 1) * HD].astype(bf16)
            vh = qkv[:, 2 * D + h * HD:2 * D + (h + 1) * HD].astype(bf16)
            # q already carries the 1/sqrt(HD) scale (folded at weight-prep time)
            s = lax.dot_general(qh, kh, (((1,), (1,)), ((), ())),
                                preferred_element_type=f32)                   # (L, L) f32
            s = s + mask
            s = s - jnp.max(s, axis=-1, keepdims=True)
            p = jnp.exp(s)
            p = p * pl.reciprocal(jnp.sum(p, axis=-1, keepdims=True), approx=True)
            head_outs.append(jnp.dot(p.astype(bf16), vh,
                                     preferred_element_type=f32))             # (L, HD)
        o = jnp.concatenate(head_outs, axis=-1)                               # (L, D)

        # single merged out-projection (full D-deep contraction)
        attn = jnp.dot(o.astype(bf16), wout_ref[l],
                       preferred_element_type=f32) + bout_ref[l][None, :]     # (L, D)
        x = x + attn

        # ---- MLP branch: x = x + mlp(ln_2(x)), QuickGELU ----
        h2 = _layernorm(x, ln2_g_ref[l], ln2_b_ref[l])
        m = jnp.dot(h2.astype(bf16), wfc_ref[l],
                    preferred_element_type=f32) + bfc_ref[l][None, :]         # (L, 4D)
        m = m * jax.nn.sigmoid(1.702 * m)                                     # QuickGELU
        m = jnp.dot(m.astype(bf16), wproj_ref[l],
                    preferred_element_type=f32) + bproj_ref[l][None, :]       # (L, D)
        x = x + m

    # gather the EOT row FIRST (dynamic sublane slice), then ln_final on just (1, D)
    x_scr[...] = x
    r = eot_ref[b]                                        # int32 scalar from SMEM
    sel = x_scr[pl.ds(r, 1), :]                           # (1, D)
    sel = _layernorm(sel, lnf_g_ref[0], lnf_b_ref[0])
    out = jnp.dot(sel.astype(bf16), tproj_ref[...], preferred_element_type=f32)  # (1, D_OUT)
    out_ref[0] = out.astype(out_ref.dtype)


def prepare_params(params):
    """One-time weight preparation (call once, cache the result).

    Folds the 1/sqrt(HD) attention scale into the q slice of the fused qkv weights/bias
    and casts all matmul operands to bf16, so no per-call reshape/cast XLA ops remain.
    """
    bf16 = jnp.bfloat16
    scale = 1.0 / math.sqrt(HD)
    wqkv = params["wqkv"].at[:, :, :D].multiply(scale)    # fold scale into q weights
    bqkv = params["bqkv"].at[:, :D].multiply(scale)       # ... and into q bias
    return dict(
        pos=params["pos"],
        ln1_g=params["ln1_g"], ln1_b=params["ln1_b"],
        wqkv=wqkv.astype(bf16), bqkv=bqkv,
        wout=params["wout"].astype(bf16), bout=params["bout"],
        ln2_g=params["ln2_g"], ln2_b=params["ln2_b"],
        wfc=params["wfc"].astype(bf16), bfc=params["bfc"],
        wproj=params["wproj"].astype(bf16), bproj=params["bproj"],
        lnf_g=params["lnf_g"], lnf_b=params["lnf_b"],
        tproj=params["tproj"].astype(bf16),
    )


def text_encoder(prompts, tokenized_prompts, prep):
    # EOT position = argmax(token ids). NOTE: correct only because CLIP's EOT token has the
    # largest vocabulary id — a tokenizer change would silently break this.
    eot = jnp.argmax(tokenized_prompts, axis=-1).astype(jnp.int32)            # (B,)

    def rep(shape):                                       # weight blocks: same tile every step
        n = len(shape)
        return pl.BlockSpec(shape, lambda b, eot_ref, _n=n: (0,) * _n)

    grid_spec = pltpu.PrefetchScalarGridSpec(
        num_scalar_prefetch=1,
        grid=(B,),                                        # one prompt per grid step
        in_specs=[
            pl.BlockSpec((1, L, D), lambda b, eot_ref: (b, 0, 0)),   # prompts
            rep((L, D)),                                  # positional embedding
            rep((NL, D)), rep((NL, D)),                   # ln_1 gamma / beta
            rep((NL, D, 3 * D)), rep((NL, 3 * D)),        # fused qkv weight / bias (lane-dense)
            rep((NL, D, D)), rep((NL, D)),                # attn out_proj (W^T) / bias
            rep((NL, D)), rep((NL, D)),                   # ln_2 gamma / beta
            rep((NL, D, 4 * D)), rep((NL, 4 * D)),        # mlp c_fc (W^T) / bias
            rep((NL, 4 * D, D)), rep((NL, D)),            # mlp c_proj (W^T) / bias
            rep((1, D)), rep((1, D)),                     # ln_final gamma / beta
            rep((D, D_OUT)),                              # text_projection
        ],
        out_specs=pl.BlockSpec((1, 1, D_OUT), lambda b, eot_ref: (b, 0, 0)),
        scratch_shapes=[pltpu.VMEM((L, D), jnp.float32)],
    )

    out = pl.pallas_call(
        text_encoder_kernel,
        out_shape=jax.ShapeDtypeStruct((B, 1, D_OUT), jnp.float32),
        grid_spec=grid_spec,
        compiler_params=pltpu.CompilerParams(
            dimension_semantics=("parallel",)),           # batch axis -> both TCs on v7x
    )(eot, prompts, prep["pos"],
      prep["ln1_g"], prep["ln1_b"],
      prep["wqkv"], prep["bqkv"],
      prep["wout"], prep["bout"],
      prep["ln2_g"], prep["ln2_b"],
      prep["wfc"], prep["bfc"],
      prep["wproj"], prep["bproj"],
      prep["lnf_g"], prep["lnf_b"],
      prep["tproj"])
    return out.reshape(B, D_OUT)


def init_params(key):
    ks = jax.random.split(key, 10)
    s = 0.02
    return dict(
        pos=jax.random.normal(ks[0], (L, D), jnp.float32) * 0.01,
        ln1_g=1.0 + 0.1 * jax.random.normal(ks[1], (NL, D), jnp.float32),
        ln1_b=0.1 * jax.random.normal(ks[2], (NL, D), jnp.float32),
        wqkv=jax.random.normal(ks[3], (NL, D, 3 * D), jnp.float32) * s,
        bqkv=jnp.zeros((NL, 3 * D), jnp.float32),
        wout=jax.random.normal(ks[4], (NL, D, D), jnp.float32) * s,
        bout=jnp.zeros((NL, D), jnp.float32),
        ln2_g=1.0 + 0.1 * jax.random.normal(ks[5], (NL, D), jnp.float32),
        ln2_b=0.1 * jax.random.normal(ks[6], (NL, D), jnp.float32),
        wfc=jax.random.normal(ks[7], (NL, D, 4 * D), jnp.float32) * s,
        bfc=jnp.zeros((NL, 4 * D), jnp.float32),
        wproj=jax.random.normal(ks[8], (NL, 4 * D, D), jnp.float32) * s,
        bproj=jnp.zeros((NL, D), jnp.float32),
        lnf_g=jnp.ones((1, D), jnp.float32),
        lnf_b=jnp.zeros((1, D), jnp.float32),
        tproj=jax.random.normal(ks[9], (D, D_OUT), jnp.float32) * s,
    )


def reference_text_encoder(prompts, tokenized_prompts, params):
    """Pure-JAX f32 reference mirroring the PyTorch forward (batch-first)."""
    def ln(x, g, b):
        mu = x.mean(-1, keepdims=True)
        var = ((x - mu) ** 2).mean(-1, keepdims=True)
        return (x - mu) / jnp.sqrt(var + EPS) * g + b

    x = prompts + params["pos"][None]
    rr = jnp.arange(L)[:, None]
    cc = jnp.arange(L)[None, :]
    mask = jnp.where(cc > rr, -1e30, 0.0)
    for l in range(NL):
        h = ln(x, params["ln1_g"][l], params["ln1_b"][l])
        qkv = jnp.einsum("bld,de->ble", h, params["wqkv"][l]) + params["bqkv"][l]
        q, k, v = jnp.split(qkv, 3, axis=-1)
        q = q.reshape(B, L, H, HD).transpose(0, 2, 1, 3) / math.sqrt(HD)
        k = k.reshape(B, L, H, HD).transpose(0, 2, 1, 3)
        v = v.reshape(B, L, H, HD).transpose(0, 2, 1, 3)
        s = jnp.einsum("bhqd,bhkd->bhqk", q, k) + mask
        p = jax.nn.softmax(s, axis=-1)
        o = jnp.einsum("bhqk,bhkd->bhqd", p, v).transpose(0, 2, 1, 3).reshape(B, L, D)
        o = jnp.einsum("bld,de->ble", o, params["wout"][l]) + params["bout"][l]
        x = x + o
        h = ln(x, params["ln2_g"][l], params["ln2_b"][l])
        m = jnp.einsum("bld,de->ble", h, params["wfc"][l]) + params["bfc"][l]
        m = m * jax.nn.sigmoid(1.702 * m)
        m = jnp.einsum("bld,de->ble", m, params["wproj"][l]) + params["bproj"][l]
        x = x + m
    x = ln(x, params["lnf_g"][0], params["lnf_b"][0])
    eot = jnp.argmax(tokenized_prompts, axis=-1)
    sel = x[jnp.arange(B), eot]
    return sel @ params["tproj"]


if __name__ == "__main__":
    key = jax.random.PRNGKey(0)
    kp, kt, kw = jax.random.split(key, 3)
    params = init_params(kw)
    prep = prepare_params(params)      # weight prep done ONCE, outside the per-call path
    prompts = jax.random.normal(kp, (B, L, D), jnp.float32)                       # (2, 8, 32)
    tokenized_prompts = jax.random.randint(kt, (B, L), 1, 1000, dtype=jnp.int32)  # (2, 8)

    out = text_encoder(prompts, tokenized_prompts, prep)
    out = jax.block_until_ready(out)

    ref = reference_text_encoder(prompts, tokenized_prompts, params)
    assert out.shape == (B, D_OUT)
    assert bool(jnp.all(jnp.isfinite(out)))
    assert bool(jnp.allclose(out, ref, atol=2e-2, rtol=2e-2))
    print("KERNEL_OK")
</pallas_src>

<mosaic_0001>
module attributes {stable_mosaic.version = 11 : i64} {
  func.func @text_encoder_kernel(%arg0: i32, %arg1: memref<2xi32, #tpu.memory_space<smem>>, %arg2: memref<1x8x32xf32, #tpu.memory_space<vmem>>, %arg3: memref<8x32xf32, #tpu.memory_space<vmem>>, %arg4: memref<2x32xf32, #tpu.memory_space<vmem>>, %arg5: memref<2x32xf32, #tpu.memory_space<vmem>>, %arg6: memref<2x32x96xbf16, #tpu.memory_space<vmem>>, %arg7: memref<2x96xf32, #tpu.memory_space<vmem>>, %arg8: memref<2x32x32xbf16, #tpu.memory_space<vmem>>, %arg9: memref<2x32xf32, #tpu.memory_space<vmem>>, %arg10: memref<2x32xf32, #tpu.memory_space<vmem>>, %arg11: memref<2x32xf32, #tpu.memory_space<vmem>>, %arg12: memref<2x32x128xbf16, #tpu.memory_space<vmem>>, %arg13: memref<2x128xf32, #tpu.memory_space<vmem>>, %arg14: memref<2x128x32xbf16, #tpu.memory_space<vmem>>, %arg15: memref<2x32xf32, #tpu.memory_space<vmem>>, %arg16: memref<1x32xf32, #tpu.memory_space<vmem>>, %arg17: memref<1x32xf32, #tpu.memory_space<vmem>>, %arg18: memref<32x32xbf16, #tpu.memory_space<vmem>>, %arg19: memref<1x1x32xf32, #tpu.memory_space<vmem>>, %arg20: memref<8x32xf32, #tpu.memory_space<vmem>>) attributes {dimension_semantics = [#tpu.dimension_semantics<parallel>], iteration_bounds = array<i64: 2>, scalar_prefetch = 1 : i64, scratch_operands = 1 : i64, tpu.core_type = #tpu.core_type<tc>, window_params = [{transform_indices = @transform_0, window_bounds = array<i64: 1, 8, 32>}, {pipeline_mode = #tpu.pipeline_mode<synchronous>, transform_indices = @transform_1, window_bounds = array<i64: 8, 32>}, {pipeline_mode = #tpu.pipeline_mode<synchronous>, transform_indices = @transform_2, window_bounds = array<i64: 2, 32>}, {pipeline_mode = #tpu.pipeline_mode<synchronous>, transform_indices = @transform_3, window_bounds = array<i64: 2, 32>}, {pipeline_mode = #tpu.pipeline_mode<synchronous>, transform_indices = @transform_4, window_bounds = array<i64: 2, 32, 96>}, {pipeline_mode = #tpu.pipeline_mode<synchronous>, transform_indices = @transform_5, window_bounds = array<i64: 2, 96>}, {pipeline_mode = #tpu.pipeline_mode<synchronous>, transform_indices = @transform_6, window_bounds = array<i64: 2, 32, 32>}, {pipeline_mode = #tpu.pipeline_mode<synchronous>, transform_indices = @transform_7, window_bounds = array<i64: 2, 32>}, {pipeline_mode = #tpu.pipeline_mode<synchronous>, transform_indices = @transform_8, window_bounds = array<i64: 2, 32>}, {pipeline_mode = #tpu.pipeline_mode<synchronous>, transform_indices = @transform_9, window_bounds = array<i64: 2, 32>}, {pipeline_mode = #tpu.pipeline_mode<synchronous>, transform_indices = @transform_10, window_bounds = array<i64: 2, 32, 128>}, {pipeline_mode = #tpu.pipeline_mode<synchronous>, transform_indices = @transform_11, window_bounds = array<i64: 2, 128>}, {pipeline_mode = #tpu.pipeline_mode<synchronous>, transform_indices = @transform_12, window_bounds = array<i64: 2, 128, 32>}, {pipeline_mode = #tpu.pipeline_mode<synchronous>, transform_indices = @transform_13, window_bounds = array<i64: 2, 32>}, {pipeline_mode = #tpu.pipeline_mode<synchronous>, transform_indices = @transform_14, window_bounds = array<i64: 1, 32>}, {pipeline_mode = #tpu.pipeline_mode<synchronous>, transform_indices = @transform_15, window_bounds = array<i64: 1, 32>}, {pipeline_mode = #tpu.pipeline_mode<synchronous>, transform_indices = @transform_16, window_bounds = array<i64: 32, 32>}, {transform_indices = @transform_17, window_bounds = array<i64: 1, 1, 32>}]} {
    %c0 = arith.constant 0 : index
    %c0_0 = arith.constant 0 : index
    %c0_1 = arith.constant 0 : index
    %0 = vector.load %arg2[%c0, %c0_0, %c0_1] : memref<1x8x32xf32, #tpu.memory_space<vmem>>, vector<1x8x32xf32>
    %1 = vector.shape_cast %0 : vector<1x8x32xf32> to vector<8x32xf32>
    %c0_2 = arith.constant 0 : index
    %c0_3 = arith.constant 0 : index
    %2 = vector.load %arg3[%c0_2, %c0_3] : memref<8x32xf32, #tpu.memory_space<vmem>>, vector<8x32xf32>
    %3 = arith.addf %1, %2 : vector<8x32xf32>
    %4 = tpu.iota {dimensions = array<i32: 0>} : vector<8x8xi32>
    %5 = tpu.iota {dimensions = array<i32: 1>} : vector<8x8xi32>
    %6 = arith.cmpi sle, %5, %4 : vector<8x8xi32>
    %cst = arith.constant 0.000000e+00 : f32
    %cst_4 = arith.constant -1.000000e+30 : f32
    %7 = vector.broadcast %cst : f32 to vector<8x8xf32>
    %8 = vector.broadcast %cst_4 : f32 to vector<8x8xf32>
    %9 = arith.select %6, %7, %8 : vector<8x8xi1>, vector<8x8xf32>
    %c0_5 = arith.constant 0 : index
    %c0_6 = arith.constant 0 : index
    %10 = vector.load %arg4[%c0_5, %c0_6] : memref<2x32xf32, #tpu.memory_space<vmem>>, vector<1x32xf32>
    %11 = vector.shape_cast %10 : vector<1x32xf32> to vector<32xf32>
    %c0_7 = arith.constant 0 : index
    %c0_8 = arith.constant 0 : index
    %12 = vector.load %arg5[%c0_7, %c0_8] : memref<2x32xf32, #tpu.memory_space<vmem>>, vector<1x32xf32>
    %13 = vector.shape_cast %12 : vector<1x32xf32> to vector<32xf32>
    %cst_9 = arith.constant dense<0.000000e+00> : vector<8xf32>
    %14 = vector.multi_reduction <add>, %3, %cst_9 [1] : vector<8x32xf32> to vector<8xf32>
    %15 = vector.shape_cast %14 : vector<8xf32> to vector<8x1xf32>
    %cst_10 = arith.constant 3.200000e+01 : f32
    %16 = vector.broadcast %cst_10 : f32 to vector<8x1xf32>
    %17 = arith.divf %15, %16 : vector<8x1xf32>
    %18 = vector.broadcast %17 : vector<8x1xf32> to vector<8x32xf32>
    %19 = arith.subf %3, %18 : vector<8x32xf32>
    %20 = arith.mulf %19, %19 : vector<8x32xf32>
    %cst_11 = arith.constant dense<0.000000e+00> : vector<8xf32>
    %21 = vector.multi_reduction <add>, %20, %cst_11 [1] : vector<8x32xf32> to vector<8xf32>
    %22 = vector.shape_cast %21 : vector<8xf32> to vector<8x1xf32>
    %cst_12 = arith.constant 3.200000e+01 : f32
    %23 = vector.broadcast %cst_12 : f32 to vector<8x1xf32>
    %24 = arith.divf %22, %23 : vector<8x1xf32>
    %25 = vector.broadcast %17 : vector<8x1xf32> to vector<8x32xf32>
    %26 = arith.subf %3, %25 : vector<8x32xf32>
    %cst_13 = arith.constant 9.99999974E-6 : f32
    %27 = vector.broadcast %cst_13 : f32 to vector<8x1xf32>
    %28 = arith.addf %24, %27 : vector<8x1xf32>
    %29 = math.rsqrt %28 : vector<8x1xf32>
    %30 = vector.broadcast %29 : vector<8x1xf32> to vector<8x32xf32>
    %31 = arith.mulf %26, %30 : vector<8x32xf32>
    %32 = vector.shape_cast %11 : vector<32xf32> to vector<1x32xf32>
    %33 = vector.broadcast %32 : vector<1x32xf32> to vector<8x32xf32>
    %34 = arith.mulf %31, %33 : vector<8x32xf32>
    %35 = vector.shape_cast %13 : vector<32xf32> to vector<1x32xf32>
    %36 = vector.broadcast %35 : vector<1x32xf32> to vector<8x32xf32>
    %37 = arith.addf %34, %36 : vector<8x32xf32>
    %38 = arith.truncf %37 : vector<8x32xf32> to vector<8x32xbf16>
    %c0_14 = arith.constant 0 : index
    %c0_15 = arith.constant 0 : index
    %c0_16 = arith.constant 0 : index
    %39 = vector.load %arg6[%c0_14, %c0_15, %c0_16] : memref<2x32x96xbf16, #tpu.memory_space<vmem>>, vector<1x32x96xbf16>
    %40 = vector.shape_cast %39 : vector<1x32x96xbf16> to vector<32x96xbf16>
    %cst_17 = arith.constant dense<0.000000e+00> : vector<8x96xf32>
    %41 = tpu.matmul %38, %40, %cst_17 {dimension_numbers = #tpu.dot_dimension_numbers<[1], [0], [0], [1], [0, 0, 1, 1], [], []>} : vector<8x32xbf16>, vector<32x96xbf16>, vector<8x96xf32> -> vector<8x96xf32>
    %c0_18 = arith.constant 0 : index
    %c0_19 = arith.constant 0 : index
    %42 = vector.load %arg7[%c0_18, %c0_19] : memref<2x96xf32, #tpu.memory_space<vmem>>, vector<1x96xf32>
    %43 = vector.shape_cast %42 : vector<1x96xf32> to vector<96xf32>
    %44 = vector.shape_cast %43 : vector<96xf32> to vector<1x96xf32>
    %45 = vector.broadcast %44 : vector<1x96xf32> to vector<8x96xf32>
    %46 = arith.addf %41, %45 : vector<8x96xf32>
    %47 = vector.extract_strided_slice %46 {offsets = [0, 0], sizes = [8, 8], strides = [1, 1]} : vector<8x96xf32> to vector<8x8xf32>
    %48 = arith.truncf %47 : vector<8x8xf32> to vector<8x8xbf16>
    %49 = vector.extract_strided_slice %46 {offsets = [0, 32], sizes = [8, 8], strides = [1, 1]} : vector<8x96xf32> to vector<8x8xf32>
    %50 = arith.truncf %49 : vector<8x8xf32> to vector<8x8xbf16>
    %51 = vector.extract_strided_slice %46 {offsets = [0, 64], sizes = [8, 8], strides = [1, 1]} : vector<8x96xf32> to vector<8x8xf32>
    %52 = arith.truncf %51 : vector<8x8xf32> to vector<8x8xbf16>
    %cst_20 = arith.constant dense<0.000000e+00> : vector<8x8xf32>
    %53 = tpu.matmul %48, %50, %cst_20 {dimension_numbers = #tpu.dot_dimension_numbers<[1], [1], [0], [0], [0, 0, 1, 0], [], []>} : vector<8x8xbf16>, vector<8x8xbf16>, vector<8x8xf32> -> vector<8x8xf32>
    %54 = arith.addf %53, %9 : vector<8x8xf32>
    %cst_21 = arith.constant dense<0xFF800000> : vector<8xf32>
    %55 = vector.multi_reduction <maximumf>, %54, %cst_21 [1] : vector<8x8xf32> to vector<8xf32>
    %56 = vector.shape_cast %55 : vector<8xf32> to vector<8x1xf32>
    %57 = vector.broadcast %56 : vector<8x1xf32> to vector<8x8xf32>
    %58 = arith.subf %54, %57 : vector<8x8xf32>
    %59 = math.exp %58 : vector<8x8xf32>
    %cst_22 = arith.constant dense<0.000000e+00> : vector<8xf32>
    %60 = vector.multi_reduction <add>, %59, %cst_22 [1] : vector<8x8xf32> to vector<8xf32>
    %61 = vector.shape_cast %60 : vector<8xf32> to vector<8x1xf32>
    %62 = tpu.reciprocal %61 {approx = true} : vector<8x1xf32> -> vector<8x1xf32>
    %63 = vector.broadcast %62 : vector<8x1xf32> to vector<8x8xf32>
    %64 = arith.mulf %59, %63 : vector<8x8xf32>
    %65 = arith.truncf %64 : vector<8x8xf32> to vector<8x8xbf16>
    %cst_23 = arith.constant dense<0.000000e+00> : vector<8x8xf32>
    %66 = tpu.matmul %65, %52, %cst_23 {dimension_numbers = #tpu.dot_dimension_numbers<[1], [0], [0], [1], [0, 0, 1, 1], [], []>} : vector<8x8xbf16>, vector<8x8xbf16>, vector<8x8xf32> -> vector<8x8xf32>
    %67 = vector.extract_strided_slice %46 {offsets = [0, 8], sizes = [8, 8], strides = [1, 1]} : vector<8x96xf32> to vector<8x8xf32>
    %68 = arith.truncf %67 : vector<8x8xf32> to vector<8x8xbf16>
    %69 = vector.extract_strided_slice %46 {offsets = [0, 40], sizes = [8, 8], strides = [1, 1]} : vector<8x96xf32> to vector<8x8xf32>
    %70 = arith.truncf %69 : vector<8x8xf32> to vector<8x8xbf16>
    %71 = vector.extract_strided_slice %46 {offsets = [0, 72], sizes = [8, 8], strides = [1, 1]} : vector<8x96xf32> to vector<8x8xf32>
    %72 = arith.truncf %71 : vector<8x8xf32> to vector<8x8xbf16>
    %cst_24 = arith.constant dense<0.000000e+00> : vector<8x8xf32>
    %73 = tpu.matmul %68, %70, %cst_24 {dimension_numbers = #tpu.dot_dimension_numbers<[1], [1], [0], [0], [0, 0, 1, 0], [], []>} : vector<8x8xbf16>, vector<8x8xbf16>, vector<8x8xf32> -> vector<8x8xf32>
    %74 = arith.addf %73, %9 : vector<8x8xf32>
    %cst_25 = arith.constant dense<0xFF800000> : vector<8xf32>
    %75 = vector.multi_reduction <maximumf>, %74, %cst_25 [1] : vector<8x8xf32> to vector<8xf32>
    %76 = vector.shape_cast %75 : vector<8xf32> to vector<8x1xf32>
    %77 = vector.broadcast %76 : vector<8x1xf32> to vector<8x8xf32>
    %78 = arith.subf %74, %77 : vector<8x8xf32>
    %79 = math.exp %78 : vector<8x8xf32>
    %cst_26 = arith.constant dense<0.000000e+00> : vector<8xf32>
    %80 = vector.multi_reduction <add>, %79, %cst_26 [1] : vector<8x8xf32> to vector<8xf32>
    %81 = vector.shape_cast %80 : vector<8xf32> to vector<8x1xf32>
    %82 = tpu.reciprocal %81 {approx = true} : vector<8x1xf32> -> vector<8x1xf32>
    %83 = vector.broadcast %82 : vector<8x1xf32> to vector<8x8xf32>
    %84 = arith.mulf %79, %83 : vector<8x8xf32>
    %85 = arith.truncf %84 : vector<8x8xf32> to vector<8x8xbf16>
    %cst_27 = arith.constant dense<0.000000e+00> : vector<8x8xf32>
    %86 = tpu.matmul %85, %72, %cst_27 {dimension_numbers = #tpu.dot_dimension_numbers<[1], [0], [0], [1], [0, 0, 1, 1], [], []>} : vector<8x8xbf16>, vector<8x8xbf16>, vector<8x8xf32> -> vector<8x8xf32>
    %87 = vector.extract_strided_slice %46 {offsets = [0, 16], sizes = [8, 8], strides = [1, 1]} : vector<8x96xf32> to vector<8x8xf32>
    %88 = arith.truncf %87 : vector<8x8xf32> to vector<8x8xbf16>
    %89 = vector.extract_strided_slice %46 {offsets = [0, 48], sizes = [8, 8], strides = [1, 1]} : vector<8x96xf32> to vector<8x8xf32>
    %90 = arith.truncf %89 : vector<8x8xf32> to vector<8x8xbf16>
    %91 = vector.extract_strided_slice %46 {offsets = [0, 80], sizes = [8, 8], strides = [1, 1]} : vector<8x96xf32> to vector<8x8xf32>
    %92 = arith.truncf %91 : vector<8x8xf32> to vector<8x8xbf16>
    %cst_28 = arith.constant dense<0.000000e+00> : vector<8x8xf32>
    %93 = tpu.matmul %88, %90, %cst_28 {dimension_numbers = #tpu.dot_dimension_numbers<[1], [1], [0], [0], [0, 0, 1, 0], [], []>} : vector<8x8xbf16>, vector<8x8xbf16>, vector<8x8xf32> -> vector<8x8xf32>
    %94 = arith.addf %93, %9 : vector<8x8xf32>
    %cst_29 = arith.constant dense<0xFF800000> : vector<8xf32>
    %95 = vector.multi_reduction <maximumf>, %94, %cst_29 [1] : vector<8x8xf32> to vector<8xf32>
    %96 = vector.shape_cast %95 : vector<8xf32> to vector<8x1xf32>
    %97 = vector.broadcast %96 : vector<8x1xf32> to vector<8x8xf32>
    %98 = arith.subf %94, %97 : vector<8x8xf32>
    %99 = math.exp %98 : vector<8x8xf32>
    %cst_30 = arith.constant dense<0.000000e+00> : vector<8xf32>
    %100 = vector.multi_reduction <add>, %99, %cst_30 [1] : vector<8x8xf32> to vector<8xf32>
    %101 = vector.shape_cast %100 : vector<8xf32> to vector<8x1xf32>
    %102 = tpu.reciprocal %101 {approx = true} : vector<8x1xf32> -> vector<8x1xf32>
    %103 = vector.broadcast %102 : vector<8x1xf32> to vector<8x8xf32>
    %104 = arith.mulf %99, %103 : vector<8x8xf32>
    %105 = arith.truncf %104 : vector<8x8xf32> to vector<8x8xbf16>
    %cst_31 = arith.constant dense<0.000000e+00> : vector<8x8xf32>
    %106 = tpu.matmul %105, %92, %cst_31 {dimension_numbers = #tpu.dot_dimension_numbers<[1], [0], [0], [1], [0, 0, 1, 1], [], []>} : vector<8x8xbf16>, vector<8x8xbf16>, vector<8x8xf32> -> vector<8x8xf32>
    %107 = vector.extract_strided_slice %46 {offsets = [0, 24], sizes = [8, 8], strides = [1, 1]} : vector<8x96xf32> to vector<8x8xf32>
    %108 = arith.truncf %107 : vector<8x8xf32> to vector<8x8xbf16>
    %109 = vector.extract_strided_slice %46 {offsets = [0, 56], sizes = [8, 8], strides = [1, 1]} : vector<8x96xf32> to vector<8x8xf32>
    %110 = arith.truncf %109 : vector<8x8xf32> to vector<8x8xbf16>
    %111 = vector.extract_strided_slice %46 {offsets = [0, 88], sizes = [8, 8], strides = [1, 1]} : vector<8x96xf32> to vector<8x8xf32>
    %112 = arith.truncf %111 : vector<8x8xf32> to vector<8x8xbf16>
    %cst_32 = arith.constant dense<0.000000e+00> : vector<8x8xf32>
    %113 = tpu.matmul %108, %110, %cst_32 {dimension_numbers = #tpu.dot_dimension_numbers<[1], [1], [0], [0], [0, 0, 1, 0], [], []>} : vector<8x8xbf16>, vector<8x8xbf16>, vector<8x8xf32> -> vector<8x8xf32>
    %114 = arith.addf %113, %9 : vector<8x8xf32>
    %cst_33 = arith.constant dense<0xFF800000> : vector<8xf32>
    %115 = vector.multi_reduction <maximumf>, %114, %cst_33 [1] : vector<8x8xf32> to vector<8xf32>
    %116 = vector.shape_cast %115 : vector<8xf32> to vector<8x1xf32>
    %117 = vector.broadcast %116 : vector<8x1xf32> to vector<8x8xf32>
    %118 = arith.subf %114, %117 : vector<8x8xf32>
    %119 = math.exp %118 : vector<8x8xf32>
    %cst_34 = arith.constant dense<0.000000e+00> : vector<8xf32>
    %120 = vector.multi_reduction <add>, %119, %cst_34 [1] : vector<8x8xf32> to vector<8xf32>
    %121 = vector.shape_cast %120 : vector<8xf32> to vector<8x1xf32>
    %122 = tpu.reciprocal %121 {approx = true} : vector<8x1xf32> -> vector<8x1xf32>
    %123 = vector.broadcast %122 : vector<8x1xf32> to vector<8x8xf32>
    %124 = arith.mulf %119, %123 : vector<8x8xf32>
    %125 = arith.truncf %124 : vector<8x8xf32> to vector<8x8xbf16>
    %cst_35 = arith.constant dense<0.000000e+00> : vector<8x8xf32>
    %126 = tpu.matmul %125, %112, %cst_35 {dimension_numbers = #tpu.dot_dimension_numbers<[1], [0], [0], [1], [0, 0, 1, 1], [], []>} : vector<8x8xbf16>, vector<8x8xbf16>, vector<8x8xf32> -> vector<8x8xf32>
    %127 = tpu.concatenate %66, %86, %106, %126 in 1 : vector<8x8xf32>, vector<8x8xf32>, vector<8x8xf32>, vector<8x8xf32> -> vector<8x32xf32>
    %128 = arith.truncf %127 : vector<8x32xf32> to vector<8x32xbf16>
    %c0_36 = arith.constant 0 : index
    %c0_37 = arith.constant 0 : index
    %c0_38 = arith.constant 0 : index
    %129 = vector.load %arg8[%c0_36, %c0_37, %c0_38] : memref<2x32x32xbf16, #tpu.memory_space<vmem>>, vector<1x32x32xbf16>
    %130 = vector.shape_cast %129 : vector<1x32x32xbf16> to vector<32x32xbf16>
    %cst_39 = arith.constant dense<0.000000e+00> : vector<8x32xf32>
    %131 = tpu.matmul %128, %130, %cst_39 {dimension_numbers = #tpu.dot_dimension_numbers<[1], [0], [0], [1], [0, 0, 1, 1], [], []>} : vector<8x32xbf16>, vector<32x32xbf16>, vector<8x32xf32> -> vector<8x32xf32>
    %c0_40 = arith.constant 0 : index
    %c0_41 = arith.constant 0 : index
    %132 = vector.load %arg9[%c0_40, %c0_41] : memref<2x32xf32, #tpu.memory_space<vmem>>, vector<1x32xf32>
    %133 = vector.shape_cast %132 : vector<1x32xf32> to vector<32xf32>
    %134 = vector.shape_cast %133 : vector<32xf32> to vector<1x32xf32>
    %135 = vector.broadcast %134 : vector<1x32xf32> to vector<8x32xf32>
    %136 = arith.addf %131, %135 : vector<8x32xf32>
    %137 = arith.addf %3, %136 : vector<8x32xf32>
    %c0_42 = arith.constant 0 : index
    %c0_43 = arith.constant 0 : index
    %138 = vector.load %arg10[%c0_42, %c0_43] : memref<2x32xf32, #tpu.memory_space<vmem>>, vector<1x32xf32>
    %139 = vector.shape_cast %138 : vector<1x32xf32> to vector<32xf32>
    %c0_44 = arith.constant 0 : index
    %c0_45 = arith.constant 0 : index
    %140 = vector.load %arg11[%c0_44, %c0_45] : memref<2x32xf32, #tpu.memory_space<vmem>>, vector<1x32xf32>
    %141 = vector.shape_cast %140 : vector<1x32xf32> to vector<32xf32>
    %cst_46 = arith.constant dense<0.000000e+00> : vector<8xf32>
    %142 = vector.multi_reduction <add>, %137, %cst_46 [1] : vector<8x32xf32> to vector<8xf32>
    %143 = vector.shape_cast %142 : vector<8xf32> to vector<8x1xf32>
    %cst_47 = arith.constant 3.200000e+01 : f32
    %144 = vector.broadcast %cst_47 : f32 to vector<8x1xf32>
    %145 = arith.divf %143, %144 : vector<8x1xf32>
    %146 = vector.broadcast %145 : vector<8x1xf32> to vector<8x32xf32>
    %147 = arith.subf %137, %146 : vector<8x32xf32>
    %148 = arith.mulf %147, %147 : vector<8x32xf32>
    %cst_48 = arith.constant dense<0.000000e+00> : vector<8xf32>
    %149 = vector.multi_reduction <add>, %148, %cst_48 [1] : vector<8x32xf32> to vector<8xf32>
    %150 = vector.shape_cast %149 : vector<8xf32> to vector<8x1xf32>
    %cst_49 = arith.constant 3.200000e+01 : f32
    %151 = vector.broadcast %cst_49 : f32 to vector<8x1xf32>
    %152 = arith.divf %150, %151 : vector<8x1xf32>
    %153 = vector.broadcast %145 : vector<8x1xf32> to vector<8x32xf32>
    %154 = arith.subf %137, %153 : vector<8x32xf32>
    %cst_50 = arith.constant 9.99999974E-6 : f32
    %155 = vector.broadcast %cst_50 : f32 to vector<8x1xf32>
    %156 = arith.addf %152, %155 : vector<8x1xf32>
    %157 = math.rsqrt %156 : vector<8x1xf32>
    %158 = vector.broadcast %157 : vector<8x1xf32> to vector<8x32xf32>
    %159 = arith.mulf %154, %158 : vector<8x32xf32>
    %160 = vector.shape_cast %139 : vector<32xf32> to vector<1x32xf32>
    %161 = vector.broadcast %160 : vector<1x32xf32> to vector<8x32xf32>
    %162 = arith.mulf %159, %161 : vector<8x32xf32>
    %163 = vector.shape_cast %141 : vector<32xf32> to vector<1x32xf32>
    %164 = vector.broadcast %163 : vector<1x32xf32> to vector<8x32xf32>
    %165 = arith.addf %162, %164 : vector<8x32xf32>
    %166 = arith.truncf %165 : vector<8x32xf32> to vector<8x32xbf16>
    %c0_51 = arith.constant 0 : index
    %c0_52 = arith.constant 0 : index
    %c0_53 = arith.constant 0 : index
    %167 = vector.load %arg12[%c0_51, %c0_52, %c0_53] : memref<2x32x128xbf16, #tpu.memory_space<vmem>>, vector<1x32x128xbf16>
    %168 = vector.shape_cast %167 : vector<1x32x128xbf16> to vector<32x128xbf16>
    %cst_54 = arith.constant dense<0.000000e+00> : vector<8x128xf32>
    %169 = tpu.matmul %166, %168, %cst_54 {dimension_numbers = #tpu.dot_dimension_numbers<[1], [0], [0], [1], [0, 0, 1, 1], [], []>} : vector<8x32xbf16>, vector<32x128xbf16>, vector<8x128xf32> -> vector<8x128xf32>
    %c0_55 = arith.constant 0 : index
    %c0_56 = arith.constant 0 : index
    %170 = vector.load %arg13[%c0_55, %c0_56] : memref<2x128xf32, #tpu.memory_space<vmem>>, vector<1x128xf32>
    %171 = vector.shape_cast %170 : vector<1x128xf32> to vector<128xf32>
    %172 = vector.shape_cast %171 : vector<128xf32> to vector<1x128xf32>
    %173 = vector.broadcast %172 : vector<1x128xf32> to vector<8x128xf32>
    %174 = arith.addf %169, %173 : vector<8x128xf32>
    %cst_57 = arith.constant 1.702000e+00 : f32
    %175 = vector.broadcast %cst_57 : f32 to vector<8x128xf32>
    %176 = arith.mulf %175, %174 : vector<8x128xf32>
    %177 = arith.negf %176 : vector<8x128xf32>
    %178 = math.exp %177 : vector<8x128xf32>
    %cst_58 = arith.constant 1.000000e+00 : f32
    %179 = vector.broadcast %cst_58 : f32 to vector<8x128xf32>
    %180 = arith.addf %179, %178 : vector<8x128xf32>
    %181 = arith.divf %179, %180 : vector<8x128xf32>
    %182 = arith.mulf %174, %181 : vector<8x128xf32>
    %183 = arith.truncf %182 : vector<8x128xf32> to vector<8x128xbf16>
    %c0_59 = arith.constant 0 : index
    %c0_60 = arith.constant 0 : index
    %c0_61 = arith.constant 0 : index
    %184 = vector.load %arg14[%c0_59, %c0_60, %c0_61] : memref<2x128x32xbf16, #tpu.memory_space<vmem>>, vector<1x128x32xbf16>
    %185 = vector.shape_cast %184 : vector<1x128x32xbf16> to vector<128x32xbf16>
    %cst_62 = arith.constant dense<0.000000e+00> : vector<8x32xf32>
    %186 = tpu.matmul %183, %185, %cst_62 {dimension_numbers = #tpu.dot_dimension_numbers<[1], [0], [0], [1], [0, 0, 1, 1], [], []>} : vector<8x128xbf16>, vector<128x32xbf16>, vector<8x32xf32> -> vector<8x32xf32>
    %c0_63 = arith.constant 0 : index
    %c0_64 = arith.constant 0 : index
    %187 = vector.load %arg15[%c0_63, %c0_64] : memref<2x32xf32, #tpu.memory_space<vmem>>, vector<1x32xf32>
    %188 = vector.shape_cast %187 : vector<1x32xf32> to vector<32xf32>
    %189 = vector.shape_cast %188 : vector<32xf32> to vector<1x32xf32>
    %190 = vector.broadcast %189 : vector<1x32xf32> to vector<8x32xf32>
    %191 = arith.addf %186, %190 : vector<8x32xf32>
    %192 = arith.addf %137, %191 : vector<8x32xf32>
    %c1 = arith.constant 1 : index
    %c0_65 = arith.constant 0 : index
    %193 = vector.load %arg4[%c1, %c0_65] : memref<2x32xf32, #tpu.memory_space<vmem>>, vector<1x32xf32>
    %194 = vector.shape_cast %193 : vector<1x32xf32> to vector<32xf32>
    %c1_66 = arith.constant 1 : index
    %c0_67 = arith.constant 0 : index
    %195 = vector.load %arg5[%c1_66, %c0_67] : memref<2x32xf32, #tpu.memory_space<vmem>>, vector<1x32xf32>
    %196 = vector.shape_cast %195 : vector<1x32xf32> to vector<32xf32>
    %cst_68 = arith.constant dense<0.000000e+00> : vector<8xf32>
    %197 = vector.multi_reduction <add>, %192, %cst_68 [1] : vector<8x32xf32> to vector<8xf32>
    %198 = vector.shape_cast %197 : vector<8xf32> to vector<8x1xf32>
    %cst_69 = arith.constant 3.200000e+01 : f32
    %199 = vector.broadcast %cst_69 : f32 to vector<8x1xf32>
    %200 = arith.divf %198, %199 : vector<8x1xf32>
    %201 = vector.broadcast %200 : vector<8x1xf32> to vector<8x32xf32>
    %202 = arith.subf %192, %201 : vector<8x32xf32>
    %203 = arith.mulf %202, %202 : vector<8x32xf32>
    %cst_70 = arith.constant dense<0.000000e+00> : vector<8xf32>
    %204 = vector.multi_reduction <add>, %203, %cst_70 [1] : vector<8x32xf32> to vector<8xf32>
    %205 = vector.shape_cast %204 : vector<8xf32> to vector<8x1xf32>
    %cst_71 = arith.constant 3.200000e+01 : f32
    %206 = vector.broadcast %cst_71 : f32 to vector<8x1xf32>
    %207 = arith.divf %205, %206 : vector<8x1xf32>
    %208 = vector.broadcast %200 : vector<8x1xf32> to vector<8x32xf32>
    %209 = arith.subf %192, %208 : vector<8x32xf32>
    %cst_72 = arith.constant 9.99999974E-6 : f32
    %210 = vector.broadcast %cst_72 : f32 to vector<8x1xf32>
    %211 = arith.addf %207, %210 : vector<8x1xf32>
    %212 = math.rsqrt %211 : vector<8x1xf32>
    %213 = vector.broadcast %212 : vector<8x1xf32> to vector<8x32xf32>
    %214 = arith.mulf %209, %213 : vector<8x32xf32>
    %215 = vector.shape_cast %194 : vector<32xf32> to vector<1x32xf32>
    %216 = vector.broadcast %215 : vector<1x32xf32> to vector<8x32xf32>
    %217 = arith.mulf %214, %216 : vector<8x32xf32>
    %218 = vector.shape_cast %196 : vector<32xf32> to vector<1x32xf32>
    %219 = vector.broadcast %218 : vector<1x32xf32> to vector<8x32xf32>
    %220 = arith.addf %217, %219 : vector<8x32xf32>
    %221 = arith.truncf %220 : vector<8x32xf32> to vector<8x32xbf16>
    %c1_73 = arith.constant 1 : index
    %c0_74 = arith.constant 0 : index
    %c0_75 = arith.constant 0 : index
    %222 = vector.load %arg6[%c1_73, %c0_74, %c0_75] : memref<2x32x96xbf16, #tpu.memory_space<vmem>>, vector<1x32x96xbf16>
    %223 = vector.shape_cast %222 : vector<1x32x96xbf16> to vector<32x96xbf16>
    %cst_76 = arith.constant dense<0.000000e+00> : vector<8x96xf32>
    %224 = tpu.matmul %221, %223, %cst_76 {dimension_numbers = #tpu.dot_dimension_numbers<[1], [0], [0], [1], [0, 0, 1, 1], [], []>} : vector<8x32xbf16>, vector<32x96xbf16>, vector<8x96xf32> -> vector<8x96xf32>
    %c1_77 = arith.constant 1 : index
    %c0_78 = arith.constant 0 : index
    %225 = vector.load %arg7[%c1_77, %c0_78] : memref<2x96xf32, #tpu.memory_space<vmem>>, vector<1x96xf32>
    %226 = vector.shape_cast %225 : vector<1x96xf32> to vector<96xf32>
    %227 = vector.shape_cast %226 : vector<96xf32> to vector<1x96xf32>
    %228 = vector.broadcast %227 : vector<1x96xf32> to vector<8x96xf32>
    %229 = arith.addf %224, %228 : vector<8x96xf32>
    %230 = vector.extract_strided_slice %229 {offsets = [0, 0], sizes = [8, 8], strides = [1, 1]} : vector<8x96xf32> to vector<8x8xf32>
    %231 = arith.truncf %230 : vector<8x8xf32> to vector<8x8xbf16>
    %232 = vector.extract_strided_slice %229 {offsets = [0, 32], sizes = [8, 8], strides = [1, 1]} : vector<8x96xf32> to vector<8x8xf32>
    %233 = arith.truncf %232 : vector<8x8xf32> to vector<8x8xbf16>
    %234 = vector.extract_strided_slice %229 {offsets = [0, 64], sizes = [8, 8], strides = [1, 1]} : vector<8x96xf32> to vector<8x8xf32>
    %235 = arith.truncf %234 : vector<8x8xf32> to vector<8x8xbf16>
    %cst_79 = arith.constant dense<0.000000e+00> : vector<8x8xf32>
    %236 = tpu.matmul %231, %233, %cst_79 {dimension_numbers = #tpu.dot_dimension_numbers<[1], [1], [0], [0], [0, 0, 1, 0], [], []>} : vector<8x8xbf16>, vector<8x8xbf16>, vector<8x8xf32> -> vector<8x8xf32>
    %237 = arith.addf %236, %9 : vector<8x8xf32>
    %cst_80 = arith.constant dense<0xFF800000> : vector<8xf32>
    %238 = vector.multi_reduction <maximumf>, %237, %cst_80 [1] : vector<8x8xf32> to vector<8xf32>
    %239 = vector.shape_cast %238 : vector<8xf32> to vector<8x1xf32>
    %240 = vector.broadcast %239 : vector<8x1xf32> to vector<8x8xf32>
    %241 = arith.subf %237, %240 : vector<8x8xf32>
    %242 = math.exp %241 : vector<8x8xf32>
    %cst_81 = arith.constant dense<0.000000e+00> : vector<8xf32>
    %243 = vector.multi_reduction <add>, %242, %cst_81 [1] : vector<8x8xf32> to vector<8xf32>
    %244 = vector.shape_cast %243 : vector<8xf32> to vector<8x1xf32>
    %245 = tpu.reciprocal %244 {approx = true} : vector<8x1xf32> -> vector<8x1xf32>
    %246 = vector.broadcast %245 : vector<8x1xf32> to vector<8x8xf32>
    %247 = arith.mulf %242, %246 : vector<8x8xf32>
    %248 = arith.truncf %247 : vector<8x8xf32> to vector<8x8xbf16>
    %cst_82 = arith.constant dense<0.000000e+00> : vector<8x8xf32>
    %249 = tpu.matmul %248, %235, %cst_82 {dimension_numbers = #tpu.dot_dimension_numbers<[1], [0], [0], [1], [0, 0, 1, 1], [], []>} : vector<8x8xbf16>, vector<8x8xbf16>, vector<8x8xf32> -> vector<8x8xf32>
    %250 = vector.extract_strided_slice %229 {offsets = [0, 8], sizes = [8, 8], strides = [1, 1]} : vector<8x96xf32> to vector<8x8xf32>
    %251 = arith.truncf %250 : vector<8x8xf32> to vector<8x8xbf16>
    %252 = vector.extract_strided_slice %229 {offsets = [0, 40], sizes = [8, 8], strides = [1, 1]} : vector<8x96xf32> to vector<8x8xf32>
    %253 = arith.truncf %252 : vector<8x8xf32> to vector<8x8xbf16>
    %254 = vector.extract_strided_slice %229 {offsets = [0, 72], sizes = [8, 8], strides = [1, 1]} : vector<8x96xf32> to vector<8x8xf32>
    %255 = arith.truncf %254 : vector<8x8xf32> to vector<8x8xbf16>
    %cst_83 = arith.constant dense<0.000000e+00> : vector<8x8xf32>
    %256 = tpu.matmul %251, %253, %cst_83 {dimension_numbers = #tpu.dot_dimension_numbers<[1], [1], [0], [0], [0, 0, 1, 0], [], []>} : vector<8x8xbf16>, vector<8x8xbf16>, vector<8x8xf32> -> vector<8x8xf32>
    %257 = arith.addf %256, %9 : vector<8x8xf32>
    %cst_84 = arith.constant dense<0xFF800000> : vector<8xf32>
    %258 = vector.multi_reduction <maximumf>, %257, %cst_84 [1] : vector<8x8xf32> to vector<8xf32>
    %259 = vector.shape_cast %258 : vector<8xf32> to vector<8x1xf32>
    %260 = vector.broadcast %259 : vector<8x1xf32> to vector<8x8xf32>
    %261 = arith.subf %257, %260 : vector<8x8xf32>
    %262 = math.exp %261 : vector<8x8xf32>
    %cst_85 = arith.constant dense<0.000000e+00> : vector<8xf32>
    %263 = vector.multi_reduction <add>, %262, %cst_85 [1] : vector<8x8xf32> to vector<8xf32>
    %264 = vector.shape_cast %263 : vector<8xf32> to vector<8x1xf32>
    %265 = tpu.reciprocal %264 {approx = true} : vector<8x1xf32> -> vector<8x1xf32>
    %266 = vector.broadcast %265 : vector<8x1xf32> to vector<8x8xf32>
    %267 = arith.mulf %262, %266 : vector<8x8xf32>
    %268 = arith.truncf %267 : vector<8x8xf32> to vector<8x8xbf16>
    %cst_86 = arith.constant dense<0.000000e+00> : vector<8x8xf32>
    %269 = tpu.matmul %268, %255, %cst_86 {dimension_numbers = #tpu.dot_dimension_numbers<[1], [0], [0], [1], [0, 0, 1, 1], [], []>} : vector<8x8xbf16>, vector<8x8xbf16>, vector<8x8xf32> -> vector<8x8xf32>
    %270 = vector.extract_strided_slice %229 {offsets = [0, 16], sizes = [8, 8], strides = [1, 1]} : vector<8x96xf32> to vector<8x8xf32>
    %271 = arith.truncf %270 : vector<8x8xf32> to vector<8x8xbf16>
    %272 = vector.extract_strided_slice %229 {offsets = [0, 48], sizes = [8, 8], strides = [1, 1]} : vector<8x96xf32> to vector<8x8xf32>
    %273 = arith.truncf %272 : vector<8x8xf32> to vector<8x8xbf16>
    %274 = vector.extract_strided_slice %229 {offsets = [0, 80], sizes = [8, 8], strides = [1, 1]} : vector<8x96xf32> to vector<8x8xf32>
    %275 = arith.truncf %274 : vector<8x8xf32> to vector<8x8xbf16>
    %cst_87 = arith.constant dense<0.000000e+00> : vector<8x8xf32>
    %276 = tpu.matmul %271, %273, %cst_87 {dimension_numbers = #tpu.dot_dimension_numbers<[1], [1], [0], [0], [0, 0, 1, 0], [], []>} : vector<8x8xbf16>, vector<8x8xbf16>, vector<8x8xf32> -> vector<8x8xf32>
    %277 = arith.addf %276, %9 : vector<8x8xf32>
    %cst_88 = arith.constant dense<0xFF800000> : vector<8xf32>
    %278 = vector.multi_reduction <maximumf>, %277, %cst_88 [1] : vector<8x8xf32> to vector<8xf32>
    %279 = vector.shape_cast %278 : vector<8xf32> to vector<8x1xf32>
    %280 = vector.broadcast %279 : vector<8x1xf32> to vector<8x8xf32>
    %281 = arith.subf %277, %280 : vector<8x8xf32>
    %282 = math.exp %281 : vector<8x8xf32>
    %cst_89 = arith.constant dense<0.000000e+00> : vector<8xf32>
    %283 = vector.multi_reduction <add>, %282, %cst_89 [1] : vector<8x8xf32> to vector<8xf32>
    %284 = vector.shape_cast %283 : vector<8xf32> to vector<8x1xf32>
    %285 = tpu.reciprocal %284 {approx = true} : vector<8x1xf32> -> vector<8x1xf32>
    %286 = vector.broadcast %285 : vector<8x1xf32> to vector<8x8xf32>
    %287 = arith.mulf %282, %286 : vector<8x8xf32>
    %288 = arith.truncf %287 : vector<8x8xf32> to vector<8x8xbf16>
    %cst_90 = arith.constant dense<0.000000e+00> : vector<8x8xf32>
    %289 = tpu.matmul %288, %275, %cst_90 {dimension_numbers = #tpu.dot_dimension_numbers<[1], [0], [0], [1], [0, 0, 1, 1], [], []>} : vector<8x8xbf16>, vector<8x8xbf16>, vector<8x8xf32> -> vector<8x8xf32>
    %290 = vector.extract_strided_slice %229 {offsets = [0, 24], sizes = [8, 8], strides = [1, 1]} : vector<8x96xf32> to vector<8x8xf32>
    %291 = arith.truncf %290 : vector<8x8xf32> to vector<8x8xbf16>
    %292 = vector.extract_strided_slice %229 {offsets = [0, 56], sizes = [8, 8], strides = [1, 1]} : vector<8x96xf32> to vector<8x8xf32>
    %293 = arith.truncf %292 : vector<8x8xf32> to vector<8x8xbf16>
    %294 = vector.extract_strided_slice %229 {offsets = [0, 88], sizes = [8, 8], strides = [1, 1]} : vector<8x96xf32> to vector<8x8xf32>
    %295 = arith.truncf %294 : vector<8x8xf32> to vector<8x8xbf16>
    %cst_91 = arith.constant dense<0.000000e+00> : vector<8x8xf32>
    %296 = tpu.matmul %291, %293, %cst_91 {dimension_numbers = #tpu.dot_dimension_numbers<[1], [1], [0], [0], [0, 0, 1, 0], [], []>} : vector<8x8xbf16>, vector<8x8xbf16>, vector<8x8xf32> -> vector<8x8xf32>
    %297 = arith.addf %296, %9 : vector<8x8xf32>
    %cst_92 = arith.constant dense<0xFF800000> : vector<8xf32>
    %298 = vector.multi_reduction <maximumf>, %297, %cst_92 [1] : vector<8x8xf32> to vector<8xf32>
    %299 = vector.shape_cast %298 : vector<8xf32> to vector<8x1xf32>
    %300 = vector.broadcast %299 : vector<8x1xf32> to vector<8x8xf32>
    %301 = arith.subf %297, %300 : vector<8x8xf32>
    %302 = math.exp %301 : vector<8x8xf32>
    %cst_93 = arith.constant dense<0.000000e+00> : vector<8xf32>
    %303 = vector.multi_reduction <add>, %302, %cst_93 [1] : vector<8x8xf32> to vector<8xf32>
    %304 = vector.shape_cast %303 : vector<8xf32> to vector<8x1xf32>
    %305 = tpu.reciprocal %304 {approx = true} : vector<8x1xf32> -> vector<8x1xf32>
    %306 = vector.broadcast %305 : vector<8x1xf32> to vector<8x8xf32>
    %307 = arith.mulf %302, %306 : vector<8x8xf32>
    %308 = arith.truncf %307 : vector<8x8xf32> to vector<8x8xbf16>
    %cst_94 = arith.constant dense<0.000000e+00> : vector<8x8xf32>
    %309 = tpu.matmul %308, %295, %cst_94 {dimension_numbers = #tpu.dot_dimension_numbers<[1], [0], [0], [1], [0, 0, 1, 1], [], []>} : vector<8x8xbf16>, vector<8x8xbf16>, vector<8x8xf32> -> vector<8x8xf32>
    %310 = tpu.concatenate %249, %269, %289, %309 in 1 : vector<8x8xf32>, vector<8x8xf32>, vector<8x8xf32>, vector<8x8xf32> -> vector<8x32xf32>
    %311 = arith.truncf %310 : vector<8x32xf32> to vector<8x32xbf16>
    %c1_95 = arith.constant 1 : index
    %c0_96 = arith.constant 0 : index
    %c0_97 = arith.constant 0 : index
    %312 = vector.load %arg8[%c1_95, %c0_96, %c0_97] : memref<2x32x32xbf16, #tpu.memory_space<vmem>>, vector<1x32x32xbf16>
    %313 = vector.shape_cast %312 : vector<1x32x32xbf16> to vector<32x32xbf16>
    %cst_98 = arith.constant dense<0.000000e+00> : vector<8x32xf32>
    %314 = tpu.matmul %311, %313, %cst_98 {dimension_numbers = #tpu.dot_dimension_numbers<[1], [0], [0], [1], [0, 0, 1, 1], [], []>} : vector<8x32xbf16>, vector<32x32xbf16>, vector<8x32xf32> -> vector<8x32xf32>
    %c1_99 = arith.constant 1 : index
    %c0_100 = arith.constant 0 : index
    %315 = vector.load %arg9[%c1_99, %c0_100] : memref<2x32xf32, #tpu.memory_space<vmem>>, vector<1x32xf32>
    %316 = vector.shape_cast %315 : vector<1x32xf32> to vector<32xf32>
    %317 = vector.shape_cast %316 : vector<32xf32> to vector<1x32xf32>
    %318 = vector.broadcast %317 : vector<1x32xf32> to vector<8x32xf32>
    %319 = arith.addf %314, %318 : vector<8x32xf32>
    %320 = arith.addf %192, %319 : vector<8x32xf32>
    %c1_101 = arith.constant 1 : index
    %c0_102 = arith.constant 0 : index
    %321 = vector.load %arg10[%c1_101, %c0_102] : memref<2x32xf32, #tpu.memory_space<vmem>>, vector<1x32xf32>
    %322 = vector.shape_cast %321 : vector<1x32xf32> to vector<32xf32>
    %c1_103 = arith.constant 1 : index
    %c0_104 = arith.constant 0 : index
    %323 = vector.load %arg11[%c1_103, %c0_104] : memref<2x32xf32, #tpu.memory_space<vmem>>, vector<1x32xf32>
    %324 = vector.shape_cast %323 : vector<1x32xf32> to vector<32xf32>
    %cst_105 = arith.constant dense<0.000000e+00> : vector<8xf32>
    %325 = vector.multi_reduction <add>, %320, %cst_105 [1] : vector<8x32xf32> to vector<8xf32>
    %326 = vector.shape_cast %325 : vector<8xf32> to vector<8x1xf32>
    %cst_106 = arith.constant 3.200000e+01 : f32
    %327 = vector.broadcast %cst_106 : f32 to vector<8x1xf32>
    %328 = arith.divf %326, %327 : vector<8x1xf32>
    %329 = vector.broadcast %328 : vector<8x1xf32> to vector<8x32xf32>
    %330 = arith.subf %320, %329 : vector<8x32xf32>
    %331 = arith.mulf %330, %330 : vector<8x32xf32>
    %cst_107 = arith.constant dense<0.000000e+00> : vector<8xf32>
    %332 = vector.multi_reduction <add>, %331, %cst_107 [1] : vector<8x32xf32> to vector<8xf32>
    %333 = vector.shape_cast %332 : vector<8xf32> to vector<8x1xf32>
    %cst_108 = arith.constant 3.200000e+01 : f32
    %334 = vector.broadcast %cst_108 : f32 to vector<8x1xf32>
    %335 = arith.divf %333, %334 : vector<8x1xf32>
    %336 = vector.broadcast %328 : vector<8x1xf32> to vector<8x32xf32>
    %337 = arith.subf %320, %336 : vector<8x32xf32>
    %cst_109 = arith.constant 9.99999974E-6 : f32
    %338 = vector.broadcast %cst_109 : f32 to vector<8x1xf32>
    %339 = arith.addf %335, %338 : vector<8x1xf32>
    %340 = math.rsqrt %339 : vector<8x1xf32>
    %341 = vector.broadcast %340 : vector<8x1xf32> to vector<8x32xf32>
    %342 = arith.mulf %337, %341 : vector<8x32xf32>
    %343 = vector.shape_cast %322 : vector<32xf32> to vector<1x32xf32>
    %344 = vector.broadcast %343 : vector<1x32xf32> to vector<8x32xf32>
    %345 = arith.mulf %342, %344 : vector<8x32xf32>
    %346 = vector.shape_cast %324 : vector<32xf32> to vector<1x32xf32>
    %347 = vector.broadcast %346 : vector<1x32xf32> to vector<8x32xf32>
    %348 = arith.addf %345, %347 : vector<8x32xf32>
    %349 = arith.truncf %348 : vector<8x32xf32> to vector<8x32xbf16>
    %c1_110 = arith.constant 1 : index
    %c0_111 = arith.constant 0 : index
    %c0_112 = arith.constant 0 : index
    %350 = vector.load %arg12[%c1_110, %c0_111, %c0_112] : memref<2x32x128xbf16, #tpu.memory_space<vmem>>, vector<1x32x128xbf16>
    %351 = vector.shape_cast %350 : vector<1x32x128xbf16> to vector<32x128xbf16>
    %cst_113 = arith.constant dense<0.000000e+00> : vector<8x128xf32>
    %352 = tpu.matmul %349, %351, %cst_113 {dimension_numbers = #tpu.dot_dimension_numbers<[1], [0], [0], [1], [0, 0, 1, 1], [], []>} : vector<8x32xbf16>, vector<32x128xbf16>, vector<8x128xf32> -> vector<8x128xf32>
    %c1_114 = arith.constant 1 : index
    %c0_115 = arith.constant 0 : index
    %353 = vector.load %arg13[%c1_114, %c0_115] : memref<2x128xf32, #tpu.memory_space<vmem>>, vector<1x128xf32>
    %354 = vector.shape_cast %353 : vector<1x128xf32> to vector<128xf32>
    %355 = vector.shape_cast %354 : vector<128xf32> to vector<1x128xf32>
    %356 = vector.broadcast %355 : vector<1x128xf32> to vector<8x128xf32>
    %357 = arith.addf %352, %356 : vector<8x128xf32>
    %cst_116 = arith.constant 1.702000e+00 : f32
    %358 = vector.broadcast %cst_116 : f32 to vector<8x128xf32>
    %359 = arith.mulf %358, %357 : vector<8x128xf32>
    %360 = arith.negf %359 : vector<8x128xf32>
    %361 = math.exp %360 : vector<8x128xf32>
    %cst_117 = arith.constant 1.000000e+00 : f32
    %362 = vector.broadcast %cst_117 : f32 to vector<8x128xf32>
    %363 = arith.addf %362, %361 : vector<8x128xf32>
    %364 = arith.divf %362, %363 : vector<8x128xf32>
    %365 = arith.mulf %357, %364 : vector<8x128xf32>
    %366 = arith.truncf %365 : vector<8x128xf32> to vector<8x128xbf16>
    %c1_118 = arith.constant 1 : index
    %c0_119 = arith.constant 0 : index
    %c0_120 = arith.constant 0 : index
    %367 = vector.load %arg14[%c1_118, %c0_119, %c0_120] : memref<2x128x32xbf16, #tpu.memory_space<vmem>>, vector<1x128x32xbf16>
    %368 = vector.shape_cast %367 : vector<1x128x32xbf16> to vector<128x32xbf16>
    %cst_121 = arith.constant dense<0.000000e+00> : vector<8x32xf32>
    %369 = tpu.matmul %366, %368, %cst_121 {dimension_numbers = #tpu.dot_dimension_numbers<[1], [0], [0], [1], [0, 0, 1, 1], [], []>} : vector<8x128xbf16>, vector<128x32xbf16>, vector<8x32xf32> -> vector<8x32xf32>
    %c1_122 = arith.constant 1 : index
    %c0_123 = arith.constant 0 : index
    %370 = vector.load %arg15[%c1_122, %c0_123] : memref<2x32xf32, #tpu.memory_space<vmem>>, vector<1x32xf32>
    %371 = vector.shape_cast %370 : vector<1x32xf32> to vector<32xf32>
    %372 = vector.shape_cast %371 : vector<32xf32> to vector<1x32xf32>
    %373 = vector.broadcast %372 : vector<1x32xf32> to vector<8x32xf32>
    %374 = arith.addf %369, %373 : vector<8x32xf32>
    %375 = arith.addf %320, %374 : vector<8x32xf32>
    %c0_124 = arith.constant 0 : index
    %c0_125 = arith.constant 0 : index
    %376 = vector.load %arg20[%c0_124, %c0_125] : memref<8x32xf32, #tpu.memory_space<vmem>>, vector<8x32xf32>
    tpu.vector_store %arg20[%c0_124, %c0_125], %375 {strides = array<i32>} : memref<8x32xf32, #tpu.memory_space<vmem>>, vector<8x32xf32>,
    %377 = arith.index_cast %arg0 : i32 to index
    %378 = memref.load %arg1[%377] : memref<2xi32, #tpu.memory_space<smem>>
    %379 = arith.index_cast %378 : i32 to index
    %c0_126 = arith.constant 0 : index
    %380 = vector.load %arg20[%379, %c0_126] : memref<8x32xf32, #tpu.memory_space<vmem>>, vector<1x32xf32>
    %c0_127 = arith.constant 0 : index
    %c0_128 = arith.constant 0 : index
    %381 = vector.load %arg16[%c0_127, %c0_128] : memref<1x32xf32, #tpu.memory_space<vmem>>, vector<1x32xf32>
    %382 = vector.shape_cast %381 : vector<1x32xf32> to vector<32xf32>
    %c0_129 = arith.constant 0 : index
    %c0_130 = arith.constant 0 : index
    %383 = vector.load %arg17[%c0_129, %c0_130] : memref<1x32xf32, #tpu.memory_space<vmem>>, vector<1x32xf32>
    %384 = vector.shape_cast %383 : vector<1x32xf32> to vector<32xf32>
    %cst_131 = arith.constant dense<0.000000e+00> : vector<1xf32>
    %385 = vector.multi_reduction <add>, %380, %cst_131 [1] : vector<1x32xf32> to vector<1xf32>
    %386 = vector.shape_cast %385 : vector<1xf32> to vector<1x1xf32>
    %cst_132 = arith.constant 3.200000e+01 : f32
    %387 = vector.broadcast %cst_132 : f32 to vector<1x1xf32>
    %388 = arith.divf %386, %387 : vector<1x1xf32>
    %389 = vector.broadcast %388 : vector<1x1xf32> to vector<1x32xf32>
    %390 = arith.subf %380, %389 : vector<1x32xf32>
    %391 = arith.mulf %390, %390 : vector<1x32xf32>
    %cst_133 = arith.constant dense<0.000000e+00> : vector<1xf32>
    %392 = vector.multi_reduction <add>, %391, %cst_133 [1] : vector<1x32xf32> to vector<1xf32>
    %393 = vector.shape_cast %392 : vector<1xf32> to vector<1x1xf32>
    %cst_134 = arith.constant 3.200000e+01 : f32
    %394 = vector.broadcast %cst_134 : f32 to vector<1x1xf32>
    %395 = arith.divf %393, %394 : vector<1x1xf32>
    %396 = vector.broadcast %388 : vector<1x1xf32> to vector<1x32xf32>
    %397 = arith.subf %380, %396 : vector<1x32xf32>
    %cst_135 = arith.constant 9.99999974E-6 : f32
    %398 = vector.broadcast %cst_135 : f32 to vector<1x1xf32>
    %399 = arith.addf %395, %398 : vector<1x1xf32>
    %400 = math.rsqrt %399 : vector<1x1xf32>
    %401 = vector.broadcast %400 : vector<1x1xf32> to vector<1x32xf32>
    %402 = arith.mulf %397, %401 : vector<1x32xf32>
    %403 = vector.shape_cast %382 : vector<32xf32> to vector<1x32xf32>
    %404 = arith.mulf %402, %403 : vector<1x32xf32>
    %405 = vector.shape_cast %384 : vector<32xf32> to vector<1x32xf32>
    %406 = arith.addf %404, %405 : vector<1x32xf32>
    %407 = arith.truncf %406 : vector<1x32xf32> to vector<1x32xbf16>
    %c0_136 = arith.constant 0 : index
    %c0_137 = arith.constant 0 : index
    %408 = vector.load %arg18[%c0_136, %c0_137] : memref<32x32xbf16, #tpu.memory_space<vmem>>, vector<32x32xbf16>
    %cst_138 = arith.constant dense<0.000000e+00> : vector<1x32xf32>
    %409 = tpu.matmul %407, %408, %cst_138 {dimension_numbers = #tpu.dot_dimension_numbers<[1], [0], [0], [1], [0, 0, 1, 1], [], []>} : vector<1x32xbf16>, vector<32x32xbf16>, vector<1x32xf32> -> vector<1x32xf32>
    %c0_139 = arith.constant 0 : index
    %c0_140 = arith.constant 0 : index
    %c0_141 = arith.constant 0 : index
    %410 = vector.load %arg19[%c0_139, %c0_140, %c0_141] : memref<1x1x32xf32, #tpu.memory_space<vmem>>, vector<1x1x32xf32>
    %411 = vector.shape_cast %410 : vector<1x1x32xf32> to vector<1x32xf32>
    %412 = vector.shape_cast %409 : vector<1x32xf32> to vector<1x1x32xf32>
    tpu.vector_store %arg19[%c0_139, %c0_140, %c0_141], %412 {strides = array<i32>} : memref<1x1x32xf32, #tpu.memory_space<vmem>>, vector<1x1x32xf32>,
    return
  }
  func.func @transform_0(%arg0: i32, %arg1: memref<2xi32, #tpu.memory_space<smem>>) -> (i32, i32, i32) {
    %c0_i32 = arith.constant 0 : i32
    %c0_i32_0 = arith.constant 0 : i32
    %c0_i32_1 = arith.constant 0 : i32
    return %arg0, %c0_i32, %c0_i32_0 : i32, i32, i32
  }
  func.func @transform_1(%arg0: i32, %arg1: memref<2xi32, #tpu.memory_space<smem>>) -> (i32, i32) {
    %c0_i32 = arith.constant 0 : i32
    %c0_i32_0 = arith.constant 0 : i32
    %c0_i32_1 = arith.constant 0 : i32
    return %c0_i32, %c0_i32_0 : i32, i32
  }
  func.func @transform_2(%arg0: i32, %arg1: memref<2xi32, #tpu.memory_space<smem>>) -> (i32, i32) {
    %c0_i32 = arith.constant 0 : i32
    %c0_i32_0 = arith.constant 0 : i32
    %c0_i32_1 = arith.constant 0 : i32
    return %c0_i32, %c0_i32_0 : i32, i32
  }
  func.func @transform_3(%arg0: i32, %arg1: memref<2xi32, #tpu.memory_space<smem>>) -> (i32, i32) {
    %c0_i32 = arith.constant 0 : i32
    %c0_i32_0 = arith.constant 0 : i32
    %c0_i32_1 = arith.constant 0 : i32
    return %c0_i32, %c0_i32_0 : i32, i32
  }
  func.func @transform_4(%arg0: i32, %arg1: memref<2xi32, #tpu.memory_space<smem>>) -> (i32, i32, i32) {
    %c0_i32 = arith.constant 0 : i32
    %c0_i32_0 = arith.constant 0 : i32
    %c0_i32_1 = arith.constant 0 : i32
    %c0_i32_2 = arith.constant 0 : i32
    return %c0_i32, %c0_i32_0, %c0_i32_1 : i32, i32, i32
  }
  func.func @transform_5(%arg0: i32, %arg1: memref<2xi32, #tpu.memory_space<smem>>) -> (i32, i32) {
    %c0_i32 = arith.constant 0 : i32
    %c0_i32_0 = arith.constant 0 : i32
    %c0_i32_1 = arith.constant 0 : i32
    return %c0_i32, %c0_i32_0 : i32, i32
  }
  func.func @transform_6(%arg0: i32, %arg1: memref<2xi32, #tpu.memory_space<smem>>) -> (i32, i32, i32) {
    %c0_i32 = arith.constant 0 : i32
    %c0_i32_0 = arith.constant 0 : i32
    %c0_i32_1 = arith.constant 0 : i32
    %c0_i32_2 = arith.constant 0 : i32
    return %c0_i32, %c0_i32_0, %c0_i32_1 : i32, i32, i32
  }
  func.func @transform_7(%arg0: i32, %arg1: memref<2xi32, #tpu.memory_space<smem>>) -> (i32, i32) {
    %c0_i32 = arith.constant 0 : i32
    %c0_i32_0 = arith.constant 0 : i32
    %c0_i32_1 = arith.constant 0 : i32
    return %c0_i32, %c0_i32_0 : i32, i32
  }
  func.func @transform_8(%arg0: i32, %arg1: memref<2xi32, #tpu.memory_space<smem>>) -> (i32, i32) {
    %c0_i32 = arith.constant 0 : i32
    %c0_i32_0 = arith.constant 0 : i32
    %c0_i32_1 = arith.constant 0 : i32
    return %c0_i32, %c0_i32_0 : i32, i32
  }
  func.func @transform_9(%arg0: i32, %arg1: memref<2xi32, #tpu.memory_space<smem>>) -> (i32, i32) {
    %c0_i32 = arith.constant 0 : i32
    %c0_i32_0 = arith.constant 0 : i32
    %c0_i32_1 = arith.constant 0 : i32
    return %c0_i32, %c0_i32_0 : i32, i32
  }
  func.func @transform_10(%arg0: i32, %arg1: memref<2xi32, #tpu.memory_space<smem>>) -> (i32, i32, i32) {
    %c0_i32 = arith.constant 0 : i32
    %c0_i32_0 = arith.constant 0 : i32
    %c0_i32_1 = arith.constant 0 : i32
    %c0_i32_2 = arith.constant 0 : i32
    return %c0_i32, %c0_i32_0, %c0_i32_1 : i32, i32, i32
  }
  func.func @transform_11(%arg0: i32, %arg1: memref<2xi32, #tpu.memory_space<smem>>) -> (i32, i32) {
    %c0_i32 = arith.constant 0 : i32
    %c0_i32_0 = arith.constant 0 : i32
    %c0_i32_1 = arith.constant 0 : i32
    return %c0_i32, %c0_i32_0 : i32, i32
  }
  func.func @transform_12(%arg0: i32, %arg1: memref<2xi32, #tpu.memory_space<smem>>) -> (i32, i32, i32) {
    %c0_i32 = arith.constant 0 : i32
    %c0_i32_0 = arith.constant 0 : i32
    %c0_i32_1 = arith.constant 0 : i32
    %c0_i32_2 = arith.constant 0 : i32
    return %c0_i32, %c0_i32_0, %c0_i32_1 : i32, i32, i32
  }
  func.func @transform_13(%arg0: i32, %arg1: memref<2xi32, #tpu.memory_space<smem>>) -> (i32, i32) {
    %c0_i32 = arith.constant 0 : i32
    %c0_i32_0 = arith.constant 0 : i32
    %c0_i32_1 = arith.constant 0 : i32
    return %c0_i32, %c0_i32_0 : i32, i32
  }
  func.func @transform_14(%arg0: i32, %arg1: memref<2xi32, #tpu.memory_space<smem>>) -> (i32, i32) {
    %c0_i32 = arith.constant 0 : i32
    %c0_i32_0 = arith.constant 0 : i32
    %c0_i32_1 = arith.constant 0 : i32
    return %c0_i32, %c0_i32_0 : i32, i32
  }
  func.func @transform_15(%arg0: i32, %arg1: memref<2xi32, #tpu.memory_space<smem>>) -> (i32, i32) {
    %c0_i32 = arith.constant 0 : i32
    %c0_i32_0 = arith.constant 0 : i32
    %c0_i32_1 = arith.constant 0 : i32
    return %c0_i32, %c0_i32_0 : i32, i32
  }
  func.func @transform_16(%arg0: i32, %arg1: memref<2xi32, #tpu.memory_space<smem>>) -> (i32, i32) {
    %c0_i32 = arith.constant 0 : i32
    %c0_i32_0 = arith.constant 0 : i32
    %c0_i32_1 = arith.constant 0 : i32
    return %c0_i32, %c0_i32_0 : i32, i32
  }
  func.func @transform_17(%arg0: i32, %arg1: memref<2xi32, #tpu.memory_space<smem>>) -> (i32, i32, i32) {
    %c0_i32 = arith.constant 0 : i32
    %c0_i32_0 = arith.constant 0 : i32
    %c0_i32_1 = arith.constant 0 : i32
    return %arg0, %c0_i32, %c0_i32_0 : i32, i32, i32
  }
}

</mosaic_0001>

<llo_original>
// kernel: tpu_custom_call.1
$region0: #{tpu_custom_call.1}
  #allocation0 [shape = 'u32[]', space=smem, size = 0x4, offset = 0x4, fixed_abs, tag = 'smem constant byte address 0x4 - core index']
  #allocation1 [shape = 'u32[144,128]{1,0:T(1,128)}', space=vmem, size = 0x12000, scoped, tag = 'internal scratch']
  #allocation2 [shape = 'f32[8,32]{1,0:T(8,128)}', space=vmem, size = 0x1000, scoped, tag = 'scratch operand']
  #allocation3 [shape = 's32[1]{0}', space=sflag, size = 0x4, scoped, tag = 'scoped memory for tpu_custom_call.1']
  #allocation4 [shape = 'u8[512]{0}', space=smem, size = 0x200, scoped, tag = 'prefetched SMEM operand 0']
  %s0 = inlined_call_operand.vmem [shape: s32[2], index: 0, kind: input, shape index: {}]
  %s1 = inlined_call_operand.vmem [shape: f32[2,8,32], index: 1, kind: input, shape index: {}]
  %s2 = inlined_call_operand.vmem [shape: f32[8,32], index: 2, kind: input, shape index: {}]
  %s3 = inlined_call_operand.vmem [shape: f32[2,32], index: 3, kind: input, shape index: {}]
  %s4 = inlined_call_operand.vmem [shape: f32[2,32], index: 4, kind: input, shape index: {}]
  %s5 = inlined_call_operand.vmem [shape: bf16[2,32,96], index: 5, kind: input, shape index: {}]
  %s6 = inlined_call_operand.vmem [shape: f32[2,96], index: 6, kind: input, shape index: {}]
  %s7 = inlined_call_operand.vmem [shape: bf16[2,32,32], index: 7, kind: input, shape index: {}]
  %s8 = inlined_call_operand.vmem [shape: f32[2,32], index: 8, kind: input, shape index: {}]
  %s9 = inlined_call_operand.vmem [shape: f32[2,32], index: 9, kind: input, shape index: {}]
  %s10 = inlined_call_operand.vmem [shape: f32[2,32], index: 10, kind: input, shape index: {}]
  %s11 = inlined_call_operand.vmem [shape: bf16[2,32,128], index: 11, kind: input, shape index: {}]
  %s12 = inlined_call_operand.vmem [shape: f32[2,128], index: 12, kind: input, shape index: {}]
  %s13 = inlined_call_operand.vmem [shape: bf16[2,128,32], index: 13, kind: input, shape index: {}]
  %s14 = inlined_call_operand.vmem [shape: f32[2,32], index: 14, kind: input, shape index: {}]
  %s15 = inlined_call_operand.vmem [shape: f32[1,32], index: 15, kind: input, shape index: {}]
  %s16 = inlined_call_operand.vmem [shape: f32[1,32], index: 16, kind: input, shape index: {}]
  %s17 = inlined_call_operand.vmem [shape: bf16[32,32], index: 17, kind: input, shape index: {}]
  %s18 = inlined_call_operand.hbm [shape: f32[2,1,32], index: 18, kind: output, shape index: {}]
  %s19 = sld [smem:[#allocation0]]
  $region101: #{tpu_custom_call.1} parent=0
    _
  %s21 = ssub.s32 1, %s19
  %s22 = scalar_select 0, %s21, %s19
  %s23 = sshll.u32 %s0, 4
  %s24 = int_to_ptr.vmem [resolvable:$true] %s23
  %26 = dma.vmem_to_smem %s24, 16, [#allocation4], [#allocation3]
  %27 = dma.done [#allocation3], 16
  %28 = sfence
  $region1: #{tpu_custom_call.1} parent=0
    #allocation5 [shape = 'u8[1024]{0}', space=vmem, size = 0x400, scoped, tag = 'output window, operand 0']
    #allocation6 [shape = 's32[2]{0}', space=sflag, size = 0x8, scoped, tag = 'scoped memory for tpu_custom_call.1']
    %29 = vsyncpa [#allocation6], 0
    %s30 = scalar_lea.sflag [#allocation6], 1
    %31 = vsyncpa %s30, 0
    loop: start=0, step=1, limit=4
    $region2: #{tpu_custom_call.1} parent=1 // loop_pre_header
      _
    $region3: #{tpu_custom_call.1} parent=1 // loop_header
      %s33 = sphi 0, %s37
      %p34 = scmp.ge.s32.totalorder %s33, 4
      %s43 = sphi 0, %s45
      %s46 = sphi 0, %s43
      %s47 = sphi 0, %s46
      %s63 = sphi 0, %s47
      %s67 = sphi 0, %s67
      %s69 = sphi 0, %s67
      %s70 = sphi 0, %s69
      %s84 = sphi 0, %s70
      %s88 = sphi 0, %s88
      %s90 = sphi 0, %s88
      %s91 = sphi 0, %s90
      %s105 = sphi 0, %s91
      %s109 = sphi 0, %s109
      %s111 = sphi 0, %s109
      %s112 = sphi 0, %s111
      %s126 = sphi 0, %s112
      %s130 = sphi 0, %s130
      %s132 = sphi 0, %s130
      %s133 = sphi 0, %s132
      %s147 = sphi 0, %s133
      %s151 = sphi 0, %s151
      %s153 = sphi 0, %s151
      %s154 = sphi 0, %s153
      %s168 = sphi 0, %s154
      %s172 = sphi 0, %s172
      %s174 = sphi 0, %s172
      %s175 = sphi 0, %s174
      %s189 = sphi 0, %s175
      %s193 = sphi 0, %s193
      %s195 = sphi 0, %s193
      %s196 = sphi 0, %s195
      %s210 = sphi 0, %s196
      %s214 = sphi 0, %s214
      %s216 = sphi 0, %s214
      %s217 = sphi 0, %s216
      %s231 = sphi 0, %s217
      %s235 = sphi 0, %s235
      %s237 = sphi 0, %s235
      %s238 = sphi 0, %s237
      %s252 = sphi 0, %s238
      %s256 = sphi 0, %s256
      %s258 = sphi 0, %s256
      %s259 = sphi 0, %s258
      %s273 = sphi 0, %s259
      %s277 = sphi 0, %s277
      %s279 = sphi 0, %s277
      %s280 = sphi 0, %s279
      %s294 = sphi 0, %s280
      %s298 = sphi 0, %s298
      %s300 = sphi 0, %s298
      %s301 = sphi 0, %s300
      %s315 = sphi 0, %s301
      %s319 = sphi 0, %s319
      %s321 = sphi 0, %s319
      %s322 = sphi 0, %s321
      %s336 = sphi 0, %s322
      %s340 = sphi 0, %s340
      %s342 = sphi 0, %s340
      %s343 = sphi 0, %s342
      %s357 = sphi 0, %s343
      %s361 = sphi 0, %s361
      %s363 = sphi 0, %s361
      %s364 = sphi 0, %s363
      %s378 = sphi 0, %s364
      %s382 = sphi 0, %s382
      %s384 = sphi 0, %s382
      %s385 = sphi 0, %s384
      %s399 = sphi 0, %s385
      %s405 = sphi 0, %s407
      %s408 = sphi 0, %s405
      %s409 = sphi 0, %s408
      %s425 = sphi 0, %s409
    $region4: #{tpu_custom_call.1} parent=1 // loop_header_branch
      %36 = sbr.rel (%p34) target = $region8
    $region5: #{tpu_custom_call.1} parent=1 // loop_body
      %s38 = ssub.s32 %s33, 1
      %s39 = ssub.s32 %s33, 2
      %s40 = sadd.s32 %s33, 1
      %s41 = ssub.s32 %s33, %s40
      %p42 = scmp.eq.s32.totalorder %s41, 0
      %s44 = sadd.s32 %s43, 1
      %s45 = scalar_select %p42, %s43, %s44
      %p48 = pneg %p42
      %p49 = scmp.eq.s32.totalorder %s33, 1
      %p50 = por %p48, %p49
      %p51 = scmp.ne.s32.totalorder %s43, %s46
      %p52 = scmp.eq.s32.totalorder %s33, 0
      %p53 = por %p51, %p52
      %p54 = scmp.ne.s32.totalorder %s43, %s46
      %p55 = scmp.eq.s32.totalorder %s38, 1
      %p56 = por %p54, %p55
      %p57 = scmp.ne.s32.totalorder %s46, %s47
      %p58 = scmp.eq.s32.totalorder %s38, 0
      %p59 = por %p57, %p58
      %p60 = scmp.ne.s32.totalorder %s46, %s47
      %p61 = scmp.eq.s32.totalorder %s39, 1
      %p62 = por %p60, %p61
      %p64 = scmp.ne.s32.totalorder %s47, %s63
      %p65 = scmp.eq.s32.totalorder %s39, 0
      %p66 = por %p64, %p65
      %s68 = sadd.s32 %s67, 1
      %p71 = scmp.eq.s32.totalorder %s33, 1
      %p72 = scmp.ne.s32.totalorder %s67, %s69
      %p73 = scmp.eq.s32.totalorder %s33, 0
      %p74 = por %p72, %p73
      %p75 = scmp.ne.s32.totalorder %s67, %s69
      %p76 = scmp.eq.s32.totalorder %s38, 1
      %p77 = por %p75, %p76
      %p78 = scmp.ne.s32.totalorder %s69, %s70
      %p79 = scmp.eq.s32.totalorder %s38, 0
      %p80 = por %p78, %p79
      %p81 = scmp.ne.s32.totalorder %s69, %s70
      %p82 = scmp.eq.s32.totalorder %s39, 1
      %p83 = por %p81, %p82
      %p85 = scmp.ne.s32.totalorder %s70, %s84
      %p86 = scmp.eq.s32.totalorder %s39, 0
      %p87 = por %p85, %p86
      %s89 = sadd.s32 %s88, 1
      %p92 = scmp.eq.s32.totalorder %s33, 1
      %p93 = scmp.ne.s32.totalorder %s88, %s90
      %p94 = scmp.eq.s32.totalorder %s33, 0
      %p95 = por %p93, %p94
      %p96 = scmp.ne.s32.totalorder %s88, %s90
      %p97 = scmp.eq.s32.totalorder %s38, 1
      %p98 = por %p96, %p97
      %p99 = scmp.ne.s32.totalorder %s90, %s91
      %p100 = scmp.eq.s32.totalorder %s38, 0
      %p101 = por %p99, %p100
      %p102 = scmp.ne.s32.totalorder %s90, %s91
      %p103 = scmp.eq.s32.totalorder %s39, 1
      %p104 = por %p102, %p103
      %p106 = scmp.ne.s32.totalorder %s91, %s105
      %p107 = scmp.eq.s32.totalorder %s39, 0
      %p108 = por %p106, %p107
      %s110 = sadd.s32 %s109, 1
      %p113 = scmp.eq.s32.totalorder %s33, 1
      %p114 = scmp.ne.s32.totalorder %s109, %s111
      %p115 = scmp.eq.s32.totalorder %s33, 0
      %p116 = por %p114, %p115
      %p117 = scmp.ne.s32.totalorder %s109, %s111
      %p118 = scmp.eq.s32.totalorder %s38, 1
      %p119 = por %p117, %p118
      %p120 = scmp.ne.s32.totalorder %s111, %s112
      %p121 = scmp.eq.s32.totalorder %s38, 0
      %p122 = por %p120, %p121
      %p123 = scmp.ne.s32.totalorder %s111, %s112
      %p124 = scmp.eq.s32.totalorder %s39, 1
      %p125 = por %p123, %p124
      %p127 = scmp.ne.s32.totalorder %s112, %s126
      %p128 = scmp.eq.s32.totalorder %s39, 0
      %p129 = por %p127, %p128
      %s131 = sadd.s32 %s130, 1
      %p134 = scmp.eq.s32.totalorder %s33, 1
      %p135 = scmp.ne.s32.totalorder %s130, %s132
      %p136 = scmp.eq.s32.totalorder %s33, 0
      %p137 = por %p135, %p136
      %p138 = scmp.ne.s32.totalorder %s130, %s132
      %p139 = scmp.eq.s32.totalorder %s38, 1
      %p140 = por %p138, %p139
      %p141 = scmp.ne.s32.totalorder %s132, %s133
      %p142 = scmp.eq.s32.totalorder %s38, 0
      %p143 = por %p141, %p142
      %p144 = scmp.ne.s32.totalorder %s132, %s133
      %p145 = scmp.eq.s32.totalorder %s39, 1
      %p146 = por %p144, %p145
      %p148 = scmp.ne.s32.totalorder %s133, %s147
      %p149 = scmp.eq.s32.totalorder %s39, 0
      %p150 = por %p148, %p149
      %s152 = sadd.s32 %s151, 1
      %p155 = scmp.eq.s32.totalorder %s33, 1
      %p156 = scmp.ne.s32.totalorder %s151, %s153
      %p157 = scmp.eq.s32.totalorder %s33, 0
      %p158 = por %p156, %p157
      %p159 = scmp.ne.s32.totalorder %s151, %s153
      %p160 = scmp.eq.s32.totalorder %s38, 1
      %p161 = por %p159, %p160
      %p162 = scmp.ne.s32.totalorder %s153, %s154
      %p163 = scmp.eq.s32.totalorder %s38, 0
      %p164 = por %p162, %p163
      %p165 = scmp.ne.s32.totalorder %s153, %s154
      %p166 = scmp.eq.s32.totalorder %s39, 1
      %p167 = por %p165, %p166
      %p169 = scmp.ne.s32.totalorder %s154, %s168
      %p170 = scmp.eq.s32.totalorder %s39, 0
      %p171 = por %p169, %p170
      %s173 = sadd.s32 %s172, 1
      %p176 = scmp.eq.s32.totalorder %s33, 1
      %p177 = scmp.ne.s32.totalorder %s172, %s174
      %p178 = scmp.eq.s32.totalorder %s33, 0
      %p179 = por %p177, %p178
      %p180 = scmp.ne.s32.totalorder %s172, %s174
      %p181 = scmp.eq.s32.totalorder %s38, 1
      %p182 = por %p180, %p181
      %p183 = scmp.ne.s32.totalorder %s174, %s175
      %p184 = scmp.eq.s32.totalorder %s38, 0
      %p185 = por %p183, %p184
      %p186 = scmp.ne.s32.totalorder %s174, %s175
      %p187 = scmp.eq.s32.totalorder %s39, 1
      %p188 = por %p186, %p187
      %p190 = scmp.ne.s32.totalorder %s175, %s189
      %p191 = scmp.eq.s32.totalorder %s39, 0
      %p192 = por %p190, %p191
      %s194 = sadd.s32 %s193, 1
      %p197 = scmp.eq.s32.totalorder %s33, 1
      %p198 = scmp.ne.s32.totalorder %s193, %s195
      %p199 = scmp.eq.s32.totalorder %s33, 0
      %p200 = por %p198, %p199
      %p201 = scmp.ne.s32.totalorder %s193, %s195
      %p202 = scmp.eq.s32.totalorder %s38, 1
      %p203 = por %p201, %p202
      %p204 = scmp.ne.s32.totalorder %s195, %s196
      %p205 = scmp.eq.s32.totalorder %s38, 0
      %p206 = por %p204, %p205
      %p207 = scmp.ne.s32.totalorder %s195, %s196
      %p208 = scmp.eq.s32.totalorder %s39, 1
      %p209 = por %p207, %p208
      %p211 = scmp.ne.s32.totalorder %s196, %s210
      %p212 = scmp.eq.s32.totalorder %s39, 0
      %p213 = por %p211, %p212
      %s215 = sadd.s32 %s214, 1
      %p218 = scmp.eq.s32.totalorder %s33, 1
      %p219 = scmp.ne.s32.totalorder %s214, %s216
      %p220 = scmp.eq.s32.totalorder %s33, 0
      %p221 = por %p219, %p220
      %p222 = scmp.ne.s32.totalorder %s214, %s216
      %p223 = scmp.eq.s32.totalorder %s38, 1
      %p224 = por %p222, %p223
      %p225 = scmp.ne.s32.totalorder %s216, %s217
      %p226 = scmp.eq.s32.totalorder %s38, 0
      %p227 = por %p225, %p226
      %p228 = scmp.ne.s32.totalorder %s216, %s217
      %p229 = scmp.eq.s32.totalorder %s39, 1
      %p230 = por %p228, %p229
      %p232 = scmp.ne.s32.totalorder %s217, %s231
      %p233 = scmp.eq.s32.totalorder %s39, 0
      %p234 = por %p232, %p233
      %s236 = sadd.s32 %s235, 1
      %p239 = scmp.eq.s32.totalorder %s33, 1
      %p240 = scmp.ne.s32.totalorder %s235, %s237
      %p241 = scmp.eq.s32.totalorder %s33, 0
      %p242 = por %p240, %p241
      %p243 = scmp.ne.s32.totalorder %s235, %s237
      %p244 = scmp.eq.s32.totalorder %s38, 1
      %p245 = por %p243, %p244
      %p246 = scmp.ne.s32.totalorder %s237, %s238
      %p247 = scmp.eq.s32.totalorder %s38, 0
      %p248 = por %p246, %p247
      %p249 = scmp.ne.s32.totalorder %s237, %s238
      %p250 = scmp.eq.s32.totalorder %s39, 1
      %p251 = por %p249, %p250
      %p253 = scmp.ne.s32.totalorder %s238, %s252
      %p254 = scmp.eq.s32.totalorder %s39, 0
      %p255 = por %p253, %p254
      %s257 = sadd.s32 %s256, 1
      %p260 = scmp.eq.s32.totalorder %s33, 1
      %p261 = scmp.ne.s32.totalorder %s256, %s258
      %p262 = scmp.eq.s32.totalorder %s33, 0
      %p263 = por %p261, %p262
      %p264 = scmp.ne.s32.totalorder %s256, %s258
      %p265 = scmp.eq.s32.totalorder %s38, 1
      %p266 = por %p264, %p265
      %p267 = scmp.ne.s32.totalorder %s258, %s259
      %p268 = scmp.eq.s32.totalorder %s38, 0
      %p269 = por %p267, %p268
      %p270 = scmp.ne.s32.totalorder %s258, %s259
      %p271 = scmp.eq.s32.totalorder %s39, 1
      %p272 = por %p270, %p271
      %p274 = scmp.ne.s32.totalorder %s259, %s273
      %p275 = scmp.eq.s32.totalorder %s39, 0
      %p276 = por %p274, %p275
      %s278 = sadd.s32 %s277, 1
      %p281 = scmp.eq.s32.totalorder %s33, 1
      %p282 = scmp.ne.s32.totalorder %s277, %s279
      %p283 = scmp.eq.s32.totalorder %s33, 0
      %p284 = por %p282, %p283
      %p285 = scmp.ne.s32.totalorder %s277, %s279
      %p286 = scmp.eq.s32.totalorder %s38, 1
      %p287 = por %p285, %p286
      %p288 = scmp.ne.s32.totalorder %s279, %s280
      %p289 = scmp.eq.s32.totalorder %s38, 0
      %p290 = por %p288, %p289
      %p291 = scmp.ne.s32.totalorder %s279, %s280
      %p292 = scmp.eq.s32.totalorder %s39, 1
      %p293 = por %p291, %p292
      %p295 = scmp.ne.s32.totalorder %s280, %s294
      %p296 = scmp.eq.s32.totalorder %s39, 0
      %p297 = por %p295, %p296
      %s299 = sadd.s32 %s298, 1
      %p302 = scmp.eq.s32.totalorder %s33, 1
      %p303 = scmp.ne.s32.totalorder %s298, %s300
      %p304 = scmp.eq.s32.totalorder %s33, 0
      %p305 = por %p303, %p304
      %p306 = scmp.ne.s32.totalorder %s298, %s300
      %p307 = scmp.eq.s32.totalorder %s38, 1
      %p308 = por %p306, %p307
      %p309 = scmp.ne.s32.totalorder %s300, %s301
      %p310 = scmp.eq.s32.totalorder %s38, 0
      %p311 = por %p309, %p310
      %p312 = scmp.ne.s32.totalorder %s300, %s301
      %p313 = scmp.eq.s32.totalorder %s39, 1
      %p314 = por %p312, %p313
      %p316 = scmp.ne.s32.totalorder %s301, %s315
      %p317 = scmp.eq.s32.totalorder %s39, 0
      %p318 = por %p316, %p317
      %s320 = sadd.s32 %s319, 1
      %p323 = scmp.eq.s32.totalorder %s33, 1
      %p324 = scmp.ne.s32.totalorder %s319, %s321
      %p325 = scmp.eq.s32.totalorder %s33, 0
      %p326 = por %p324, %p325
      %p327 = scmp.ne.s32.totalorder %s319, %s321
      %p328 = scmp.eq.s32.totalorder %s38, 1
      %p329 = por %p327, %p328
      %p330 = scmp.ne.s32.totalorder %s321, %s322
      %p331 = scmp.eq.s32.totalorder %s38, 0
      %p332 = por %p330, %p331
      %p333 = scmp.ne.s32.totalorder %s321, %s322
      %p334 = scmp.eq.s32.totalorder %s39, 1
      %p335 = por %p333, %p334
      %p337 = scmp.ne.s32.totalorder %s322, %s336
      %p338 = scmp.eq.s32.totalorder %s39, 0
      %p339 = por %p337, %p338
      %s341 = sadd.s32 %s340, 1
      %p344 = scmp.eq.s32.totalorder %s33, 1
      %p345 = scmp.ne.s32.totalorder %s340, %s342
      %p346 = scmp.eq.s32.totalorder %s33, 0
      %p347 = por %p345, %p346
      %p348 = scmp.ne.s32.totalorder %s340, %s342
      %p349 = scmp.eq.s32.totalorder %s38, 1
      %p350 = por %p348, %p349
      %p351 = scmp.ne.s32.totalorder %s342, %s343
      %p352 = scmp.eq.s32.totalorder %s38, 0
      %p353 = por %p351, %p352
      %p354 = scmp.ne.s32.totalorder %s342, %s343
      %p355 = scmp.eq.s32.totalorder %s39, 1
      %p356 = por %p354, %p355
      %p358 = scmp.ne.s32.totalorder %s343, %s357
      %p359 = scmp.eq.s32.totalorder %s39, 0
      %p360 = por %p358, %p359
      %s362 = sadd.s32 %s361, 1
      %p365 = scmp.eq.s32.totalorder %s33, 1
      %p366 = scmp.ne.s32.totalorder %s361, %s363
      %p367 = scmp.eq.s32.totalorder %s33, 0
      %p368 = por %p366, %p367
      %p369 = scmp.ne.s32.totalorder %s361, %s363
      %p370 = scmp.eq.s32.totalorder %s38, 1
      %p371 = por %p369, %p370
      %p372 = scmp.ne.s32.totalorder %s363, %s364
      %p373 = scmp.eq.s32.totalorder %s38, 0
      %p374 = por %p372, %p373
      %p375 = scmp.ne.s32.totalorder %s363, %s364
      %p376 = scmp.eq.s32.totalorder %s39, 1
      %p377 = por %p375, %p376
      %p379 = scmp.ne.s32.totalorder %s364, %s378
      %p380 = scmp.eq.s32.totalorder %s39, 0
      %p381 = por %p379, %p380
      %s383 = sadd.s32 %s382, 1
      %p386 = scmp.eq.s32.totalorder %s33, 1
      %p387 = scmp.ne.s32.totalorder %s382, %s384
      %p388 = scmp.eq.s32.totalorder %s33, 0
      %p389 = por %p387, %p388
      %p390 = scmp.ne.s32.totalorder %s382, %s384
      %p391 = scmp.eq.s32.totalorder %s38, 1
      %p392 = por %p390, %p391
      %p393 = scmp.ne.s32.totalorder %s384, %s385
      %p394 = scmp.eq.s32.totalorder %s38, 0
      %p395 = por %p393, %p394
      %p396 = scmp.ne.s32.totalorder %s384, %s385
      %p397 = scmp.eq.s32.totalorder %s39, 1
      %p398 = por %p396, %p397
      %p400 = scmp.ne.s32.totalorder %s385, %s399
      %p401 = scmp.eq.s32.totalorder %s39, 0
      %p402 = por %p400, %p401
      %s403 = ssub.s32 %s33, %s40
      %p404 = scmp.eq.s32.totalorder %s403, 0
      %s406 = sadd.s32 %s405, 1
      %s407 = scalar_select %p404, %s405, %s406
      %p410 = pneg %p404
      %p411 = scmp.eq.s32.totalorder %s33, 1
      %p412 = por %p410, %p411
      %p413 = scmp.ne.s32.totalorder %s405, %s408
      %p414 = scmp.eq.s32.totalorder %s33, 0
      %p415 = por %p413, %p414
      %p416 = scmp.ne.s32.totalorder %s405, %s408
      %p417 = scmp.eq.s32.totalorder %s38, 1
      %p418 = por %p416, %p417
      %p419 = scmp.ne.s32.totalorder %s408, %s409
      %p420 = scmp.eq.s32.totalorder %s38, 0
      %p421 = por %p419, %p420
      %p422 = scmp.ne.s32.totalorder %s408, %s409
      %p423 = scmp.eq.s32.totalorder %s39, 1
      %p424 = por %p422, %p423
      %p426 = scmp.ne.s32.totalorder %s409, %s425
      %p427 = scmp.eq.s32.totalorder %s39, 0
      %p428 = por %p426, %p427
      %p429 = scmp.le.s32.totalorder 1, %s33
      %p430 = scmp.lt.s32.totalorder %s33, 3
      %p431 = pnand %p429, %p430
      %p432 = pneg %p431
      // Predicated region
      $region9: #{tpu_custom_call.1} parent=5 // pred_check
        _
      $region10: #{tpu_custom_call.1} parent=5 // pred_check_branch
        %434 = sbr.rel (%p431) target = $region12
      $region11: #{tpu_custom_call.1} parent=5 // pred_region
        %s435 = ssub.s32 %s33, 1
        // Predicated region
        $region13: #{tpu_custom_call.1} parent=11 // pred_check
          %p436 = pneg %p80
        $region14: #{tpu_custom_call.1} parent=11 // pred_check_branch
          %438 = sbr.rel (%p436) target = $region16
        $region15: #{tpu_custom_call.1} parent=11 // pred_region
          _
        $region16: #{tpu_custom_call.1} parent=11 // pred_fallthru
          _
        // Predicated region
        $region17: #{tpu_custom_call.1} parent=11 // pred_check
          %p439 = pneg %p101
        $region18: #{tpu_custom_call.1} parent=11 // pred_check_branch
          %441 = sbr.rel (%p439) target = $region20
        $region19: #{tpu_custom_call.1} parent=11 // pred_region
          _
        $region20: #{tpu_custom_call.1} parent=11 // pred_fallthru
          _
        // Predicated region
        $region21: #{tpu_custom_call.1} parent=11 // pred_check
          %p442 = pneg %p122
        $region22: #{tpu_custom_call.1} parent=11 // pred_check_branch
          %444 = sbr.rel (%p442) target = $region24
        $region23: #{tpu_custom_call.1} parent=11 // pred_region
          _
        $region24: #{tpu_custom_call.1} parent=11 // pred_fallthru
          _
        // Predicated region
        $region25: #{tpu_custom_call.1} parent=11 // pred_check
          %p445 = pneg %p143
        $region26: #{tpu_custom_call.1} parent=11 // pred_check_branch
          %447 = sbr.rel (%p445) target = $region28
        $region27: #{tpu_custom_call.1} parent=11 // pred_region
          _
        $region28: #{tpu_custom_call.1} parent=11 // pred_fallthru
          _
        // Predicated region
        $region29: #{tpu_custom_call.1} parent=11 // pred_check
          %p448 = pneg %p164
        $region30: #{tpu_custom_call.1} parent=11 // pred_check_branch
          %450 = sbr.rel (%p448) target = $region32
        $region31: #{tpu_custom_call.1} parent=11 // pred_region
          _
        $region32: #{tpu_custom_call.1} parent=11 // pred_fallthru
          _
        // Predicated region
        $region33: #{tpu_custom_call.1} parent=11 // pred_check
          %p451 = pneg %p185
        $region34: #{tpu_custom_call.1} parent=11 // pred_check_branch
          %453 = sbr.rel (%p451) target = $region36
        $region35: #{tpu_custom_call.1} parent=11 // pred_region
          _
        $region36: #{tpu_custom_call.1} parent=11 // pred_fallthru
          _
        // Predicated region
        $region37: #{tpu_custom_call.1} parent=11 // pred_check
          %p454 = pneg %p206
        $region38: #{tpu_custom_call.1} parent=11 // pred_check_branch
          %456 = sbr.rel (%p454) target = $region40
        $region39: #{tpu_custom_call.1} parent=11 // pred_region
          _
        $region40: #{tpu_custom_call.1} parent=11 // pred_fallthru
          _
        // Predicated region
        $region41: #{tpu_custom_call.1} parent=11 // pred_check
          %p457 = pneg %p227
        $region42: #{tpu_custom_call.1} parent=11 // pred_check_branch
          %459 = sbr.rel (%p457) target = $region44
        $region43: #{tpu_custom_call.1} parent=11 // pred_region
          _
        $region44: #{tpu_custom_call.1} parent=11 // pred_fallthru
          _
        // Predicated region
        $region45: #{tpu_custom_call.1} parent=11 // pred_check
          %p460 = pneg %p248
        $region46: #{tpu_custom_call.1} parent=11 // pred_check_branch
          %462 = sbr.rel (%p460) target = $region48
        $region47: #{tpu_custom_call.1} parent=11 // pred_region
          _
        $region48: #{tpu_custom_call.1} parent=11 // pred_fallthru
          _
        // Predicated region
        $region49: #{tpu_custom_call.1} parent=11 // pred_check
          %p463 = pneg %p269
        $region50: #{tpu_custom_call.1} parent=11 // pred_check_branch
          %465 = sbr.rel (%p463) target = $region52
        $region51: #{tpu_custom_call.1} parent=11 // pred_region
          _
        $region52: #{tpu_custom_call.1} parent=11 // pred_fallthru
          _
        // Predicated region
        $region53: #{tpu_custom_call.1} parent=11 // pred_check
          %p466 = pneg %p290
        $region54: #{tpu_custom_call.1} parent=11 // pred_check_branch
          %468 = sbr.rel (%p466) target = $region56
        $region55: #{tpu_custom_call.1} parent=11 // pred_region
          _
        $region56: #{tpu_custom_call.1} parent=11 // pred_fallthru
          _
        // Predicated region
        $region57: #{tpu_custom_call.1} parent=11 // pred_check
          %p469 = pneg %p311
        $region58: #{tpu_custom_call.1} parent=11 // pred_check_branch
          %471 = sbr.rel (%p469) target = $region60
        $region59: #{tpu_custom_call.1} parent=11 // pred_region
          _
        $region60: #{tpu_custom_call.1} parent=11 // pred_fallthru
          _
        // Predicated region
        $region61: #{tpu_custom_call.1} parent=11 // pred_check
          %p472 = pneg %p332
        $region62: #{tpu_custom_call.1} parent=11 // pred_check_branch
          %474 = sbr.rel (%p472) target = $region64
        $region63: #{tpu_custom_call.1} parent=11 // pred_region
          _
        $region64: #{tpu_custom_call.1} parent=11 // pred_fallthru
          _
        // Predicated region
        $region65: #{tpu_custom_call.1} parent=11 // pred_check
          %p475 = pneg %p353
        $region66: #{tpu_custom_call.1} parent=11 // pred_check_branch
          %477 = sbr.rel (%p475) target = $region68
        $region67: #{tpu_custom_call.1} parent=11 // pred_region
          _
        $region68: #{tpu_custom_call.1} parent=11 // pred_fallthru
          _
        // Predicated region
        $region69: #{tpu_custom_call.1} parent=11 // pred_check
          %p478 = pneg %p374
        $region70: #{tpu_custom_call.1} parent=11 // pred_check_branch
          %480 = sbr.rel (%p478) target = $region72
        $region71: #{tpu_custom_call.1} parent=11 // pred_region
          _
        $region72: #{tpu_custom_call.1} parent=11 // pred_fallthru
          _
        // Predicated region
        $region73: #{tpu_custom_call.1} parent=11 // pred_check
          %p481 = pneg %p395
        $region74: #{tpu_custom_call.1} parent=11 // pred_check_branch
          %483 = sbr.rel (%p481) target = $region76
        $region75: #{tpu_custom_call.1} parent=11 // pred_region
          _
        $region76: #{tpu_custom_call.1} parent=11 // pred_fallthru
          _
      $region12: #{tpu_custom_call.1} parent=5 // pred_fallthru
        _
      %p484 = scmp.lt.s32.totalorder %s33, 2
      // Predicated region
      $region77: #{tpu_custom_call.1} parent=5 // pred_check
        %p485 = pneg %p484
      $region78: #{tpu_custom_call.1} parent=5 // pred_check_branch
        %487 = sbr.rel (%p485) target = $region80
      $region79: #{tpu_custom_call.1} parent=5 // pred_region
        // Predicated region
        $region81: #{tpu_custom_call.1} parent=79 // pred_check
          %p488 = pneg %p53
        $region82: #{tpu_custom_call.1} parent=79 // pred_check_branch
          %490 = sbr.rel (%p488) target = $region84
        $region83: #{tpu_custom_call.1} parent=79 // pred_region
          %p491 = scmp.lt.s32.totalorder %s33, 1
          %s492 = scalar_select %p491, %s33, 1
          %s493 = smul.addr %s492, 8
          %s494 = scalar_lea.vmem %s1, %s493
        $region84: #{tpu_custom_call.1} parent=79 // pred_fallthru
          _
      $region80: #{tpu_custom_call.1} parent=5 // pred_fallthru
        _
      %p495 = scmp.le.s32.totalorder 1, %s33
      %p496 = scmp.lt.s32.totalorder %s33, 3
      %p497 = pnand %p495, %p496
      %p498 = pneg %p497
      // Predicated region
      $region85: #{tpu_custom_call.1} parent=5 // pred_check
        _
      $region86: #{tpu_custom_call.1} parent=5 // pred_check_branch
        %500 = sbr.rel (%p497) target = $region88
      $region87: #{tpu_custom_call.1} parent=5 // pred_region
        %s501 = ssub.s32 %s33, 1
        %p502 = scmp.lt.s32.totalorder %s38, 1
        %s503 = scalar_select %p502, %s38, 1
        %s504 = smul.addr %s503, 8
        %s505 = scalar_lea.vmem %s1, %s504
        %p506 = pneg %p59
        %p507 = pneg %p56
        %p508 = pneg %p80
        %p509 = pneg %p77
        %p510 = pneg %p101
        %p511 = pneg %p98
        %p512 = pneg %p122
        %p513 = pneg %p119
        %p514 = pneg %p143
        %p515 = pneg %p140
        %p516 = pneg %p164
        %p517 = pneg %p161
        %p518 = pneg %p185
        %p519 = pneg %p182
        %p520 = pneg %p206
        %p521 = pneg %p203
        %p522 = pneg %p227
        %p523 = pneg %p224
        %p524 = pneg %p248
        %p525 = pneg %p245
        %p526 = pneg %p269
        %p527 = pneg %p266
        %p528 = pneg %p290
        %p529 = pneg %p287
        %p530 = pneg %p311
        %p531 = pneg %p308
        %p532 = pneg %p332
        %p533 = pneg %p329
        %p534 = pneg %p353
        %p535 = pneg %p350
        %p536 = pneg %p374
        %p537 = pneg %p371
        %p538 = pneg %p395
        %p539 = pneg %p392
        %p540 = pneg %p421
        %p541 = pneg %p418
        %s542 = sand.u32 %s408, 1
        %s543 = scalar_lea.sflag [#allocation6], %s542
        %s544 = sand.u32 %s408, 1
        %s545 = scalar_lea.vmem [#allocation5], %s544
        %p546 = scmp.lt.s32.totalorder %s38, 1
        %s547 = scalar_select %p546, %s38, 1
        %s548 = smul.addr %s547, 8
        %s549 = scalar_lea.vmem %s1, %s548
        %v551 = vld [vmem:[%s549] sm:$0xff]
        %v552 = vld [vmem:[%s2] sm:$0xff]
        %v553 = vadd.f32 %v551, %v552
        %v554 = vlaneseq
        %v555 = vshrl.u32 %v554, 7
        %v556 = vlaneseq
        %v557 = vand.u32 %v556, 127
        %vm558 = vcmp.le.s32.totalorder %v557, %v555
        %v559 = vsel %vm558, 0.0, -1e+30
        %v560 = vld [vmem:[%s3] sm:$0x1]
        %v561 = vld [vmem:[%s4] sm:$0x1]
        %vm562 = vcmask 261120
        %v563 = vsel %vm562, %v553, 0.0
        %564 = vadd.xlane.f32.xlu0 %v563
        %v565 = vpop.xlane.xlu0 %564
        %v566 = vrcp.pop 32.0
        %v567 = vmul.f32 %v565, %v566
        %v568 = vsub.f32 %v553, %v567
        %v569 = vmul.f32 %v568, %v568
        %v570 = vsel %vm562, %v569, 0.0
        %571 = vadd.xlane.f32.xlu0 %v570
        %v572 = vpop.xlane.xlu0 %571
        %v573 = vmul.f32 %v572, %v566
        %v574 = vadd.f32 %v573, 1e-05
        %v575 = vrsqrt.pop %v574
        %v576 = vmul.f32 %v568, %v575
        %v577 = vlaneseq
        %v578 = vshrl.u32 %v577, 7
        %v579 = vsub.s32 0, %v578
        %v580 = vrot.slane %v560, %v579
        %v581 = vmul.f32 %v576, %v580
        %v582 = vlaneseq
        %v583 = vshrl.u32 %v582, 7
        %v584 = vsub.s32 0, %v583
        %v585 = vrot.slane %v561, %v584
        %v586 = vadd.f32 %v581, %v585
        %v587 = vpack.c.bf16 %v586, %v586
        %v588 = vld [vmem:[%s5] sm:$0xf]
        %v589 = vld [vmem:[%s5 + $0x4] sm:$0xf]
        %v590 = vld [vmem:[%s5 + $0x8] sm:$0xf]
        %v591 = vld [vmem:[%s5 + $0xc] sm:$0xf]
        %v592 = vld [vmem:[%s6] sm:$0x1]
        %v593 = vlaneseq
        %v594 = vshrl.u32 %v593, 7
        %v595 = vsub.s32 0, %v594
        %v596 = vrot.slane %v592, %v595
        %v601 = vunpack.c.l.b16 %v588
        %v602 = vunpack.c.l.b16 %v589
        %v603 = vunpack.c.l.b16 %v590
        %v604 = vunpack.c.l.b16 %v591
        %v605 = vpack.c.b16 %v602, %v601
        %v606 = vpack.c.b16 %v604, %v603
        %v610 = vsel %vm562, %v587, 0
        %612 = vmatprep.subr.bf16.mxu0 0
        %613 = vmatpush1.bf16.msra.mxu0 %v605
        %614 = vmatprep.subr.bf16.mxu0 0
        %615 = vmatpush1.bf16.msra.mxu0 %v606
        %616 = vmatprep.subr.bf16.mxu0 0
        %617 = vmatpush1.bf16.msra.mxu0 0
        %618 = vmatprep.subr.bf16.mxu0 0
        %619 = vmatpush1.bf16.msra.mxu0 0
        %620 = vmatprep.subr.bf16.mxu0 0
        %621 = vmatpush1.bf16.msra.mxu0 0
        %622 = vmatprep.subr.bf16.mxu0 0
        %623 = vmatpush1.bf16.msra.mxu0 0
        %624 = vmatprep.subr.bf16.mxu0 0
        %625 = vmatpush1.bf16.msra.mxu0 0
        %626 = vmatprep.subr.bf16.mxu0 0
        %627 = vmatpush1.bf16.msra.mxu0 0
        %628 = vmatprep.subr.bf16.mxu0 0
        %629 = vmatpush1.bf16.msra.mxu0 0
        %630 = vmatprep.subr.bf16.mxu0 0
        %631 = vmatpush1.bf16.msra.mxu0 0
        %632 = vmatprep.subr.bf16.mxu0 0
        %633 = vmatpush1.bf16.msra.mxu0 0
        %634 = vmatprep.subr.bf16.mxu0 0
        %635 = vmatpush1.bf16.msra.mxu0 0
        %636 = vmatprep.subr.bf16.mxu0 0
        %637 = vmatpush1.bf16.msra.mxu0 0
        %638 = vmatprep.subr.bf16.mxu0 0
        %639 = vmatpush1.bf16.msra.mxu0 0
        %640 = vmatprep.subr.bf16.mxu0 0
        %641 = vmatpush1.bf16.msra.mxu0 0
        %642 = vmatprep.subr.bf16.mxu0 0
        %643 = vmatpush1.bf16.msra.mxu0 0
        %644 = vmatprep.mubr.bf16.mxu0 0
        %645 = vmatmul.mubr.bf16.gmra.mrb[0].mxu0 %v610
        %v646 = vpop.f32.mrb[0].mxu0
        %v647 = vadd.f32 %v596, %v646
        %v648 = vpop.f32.mrb[0].mxu0
        %v649 = vpop.f32.mrb[0].mxu0
        %v650 = vpop.f32.mrb[0].mxu0
        %651 = vdwg.mxu0
        %v652 = vpack.c.bf16 %v647, %v647
        %654 = vrot.lane.b32.xlu0 %v652, 96
        %v655 = vpop.permute.xlu0 %654
        %vm656 = vcmask 64512
        %v658 = vsel %vm656, %v652, 0
        %v661 = vsel %vm656, %v655, 0
        %663 = vmatprep.subr.bf16.mxu0 0
        %664 = vmatpush1.bf16.xpose.msra.mxu0 %v661
        %665 = vmatprep.subr.bf16.mxu0 0
        %666 = vmatpush1.bf16.xpose.msra.mxu0 0
        %667 = vmatprep.subr.bf16.mxu0 0
        %668 = vmatpush1.bf16.xpose.msra.mxu0 0
        %669 = vmatprep.subr.bf16.mxu0 0
        %670 = vmatpush1.bf16.xpose.msra.mxu0 0
        %671 = vmatprep.subr.bf16.mxu0 0
        %672 = vmatpush1.bf16.xpose.msra.mxu0 0
        %673 = vmatprep.subr.bf16.mxu0 0
        %674 = vmatpush1.bf16.xpose.msra.mxu0 0
        %675 = vmatprep.subr.bf16.mxu0 0
        %676 = vmatpush1.bf16.xpose.msra.mxu0 0
        %677 = vmatprep.subr.bf16.mxu0 0
        %678 = vmatpush1.bf16.xpose.msra.mxu0 0
        %679 = vmatprep.subr.bf16.mxu0 0
        %680 = vmatpush1.bf16.xpose.msra.mxu0 0
        %681 = vmatprep.subr.bf16.mxu0 0
        %682 = vmatpush1.bf16.xpose.msra.mxu0 0
        %683 = vmatprep.subr.bf16.mxu0 0
        %684 = vmatpush1.bf16.xpose.msra.mxu0 0
        %685 = vmatprep.subr.bf16.mxu0 0
        %686 = vmatpush1.bf16.xpose.msra.mxu0 0
        %687 = vmatprep.subr.bf16.mxu0 0
        %688 = vmatpush1.bf16.xpose.msra.mxu0 0
        %689 = vmatprep.subr.bf16.mxu0 0
        %690 = vmatpush1.bf16.xpose.msra.mxu0 0
        %691 = vmatprep.subr.bf16.mxu0 0
        %692 = vmatpush1.bf16.xpose.msra.mxu0 0
        %693 = vmatprep.subr.bf16.mxu0 0
        %694 = vmatpush1.bf16.xpose.msra.mxu0 0
        %695 = vmatprep.mubr.bf16.mxu0 0
        %696 = vmatmul.mubr.bf16.gmra.mrb[0].mxu0 %v658
        %v697 = vpop.f32.mrb[0].mxu0
        %v698 = vadd.f32 %v559, %v697
        %v699 = vpop.f32.mrb[0].mxu0
        %v700 = vpop.f32.mrb[0].mxu0
        %v701 = vpop.f32.mrb[0].mxu0
        %702 = vdwg.mxu0
        %v703 = vsel %vm656, %v698, -inf
        %704 = vmax.xlane.f32.xlu0 %v703
        %v705 = vpop.xlane.xlu0 %704
        %v706 = vsub.f32 %v698, %v705
        %v707 = vmul.f32 %v706, 1.442695
        %v708 = vpow.pop %v707
        %v709 = vsel %vm656, %v708, 0.0
        %710 = vadd.xlane.f32.xlu0 %v709
        %v711 = vpop.xlane.xlu0 %710
        %v712 = vrcp.pop %v711
        %v713 = vmul.f32 %v708, %v712
        %v714 = vpack.c.bf16 %v713, %v713
        %715 = vrot.lane.b32.xlu0 %v652, 64
        %v716 = vpop.permute.xlu0 %715
        %v718 = vsel %vm656, %v714, 0
        %vm720 = vcmask 1043456
        %v722 = vsel %vm720, %v716, 0
        %724 = vmatprep.subr.bf16.mxu0 0
        %725 = vmatpush1.bf16.msra.mxu0 %v722
        %726 = vmatprep.subr.bf16.mxu0 0
        %727 = vmatpush1.bf16.msra.mxu0 0
        %728 = vmatprep.subr.bf16.mxu0 0
        %729 = vmatpush1.bf16.msra.mxu0 0
        %730 = vmatprep.subr.bf16.mxu0 0
        %731 = vmatpush1.bf16.msra.mxu0 0
        %732 = vmatprep.subr.bf16.mxu0 0
        %733 = vmatpush1.bf16.msra.mxu0 0
        %734 = vmatprep.subr.bf16.mxu0 0
        %735 = vmatpush1.bf16.msra.mxu0 0
        %736 = vmatprep.subr.bf16.mxu0 0
        %737 = vmatpush1.bf16.msra.mxu0 0
        %738 = vmatprep.subr.bf16.mxu0 0
        %739 = vmatpush1.bf16.msra.mxu0 0
        %740 = vmatprep.subr.bf16.mxu0 0
        %741 = vmatpush1.bf16.msra.mxu0 0
        %742 = vmatprep.subr.bf16.mxu0 0
        %743 = vmatpush1.bf16.msra.mxu0 0
        %744 = vmatprep.subr.bf16.mxu0 0
        %745 = vmatpush1.bf16.msra.mxu0 0
        %746 = vmatprep.subr.bf16.mxu0 0
        %747 = vmatpush1.bf16.msra.mxu0 0
        %748 = vmatprep.subr.bf16.mxu0 0
        %749 = vmatpush1.bf16.msra.mxu0 0
        %750 = vmatprep.subr.bf16.mxu0 0
        %751 = vmatpush1.bf16.msra.mxu0 0
        %752 = vmatprep.subr.bf16.mxu0 0
        %753 = vmatpush1.bf16.msra.mxu0 0
        %754 = vmatprep.subr.bf16.mxu0 0
        %755 = vmatpush1.bf16.msra.mxu0 0
        %756 = vmatprep.mubr.bf16.mxu0 0
        %757 = vmatmul.mubr.bf16.gmra.mrb[0].mxu0 %v718
        %v758 = vpop.f32.mrb[0].mxu0
        %v759 = vadd.f32 0.0, %v758
        %v760 = vpop.f32.mrb[0].mxu0
        %v761 = vpop.f32.mrb[0].mxu0
        %v762 = vpop.f32.mrb[0].mxu0
        %763 = vdwg.mxu0
        %764 = vrot.lane.b32.xlu0 %v652, 120
        %v765 = vpop.permute.xlu0 %764
        %766 = vrot.lane.b32.xlu0 %v652, 88
        %v767 = vpop.permute.xlu0 %766
        %v769 = vsel %vm656, %v765, 0
        %v772 = vsel %vm656, %v767, 0
        %774 = vmatprep.subr.bf16.mxu0 0
        %775 = vmatpush1.bf16.xpose.msra.mxu0 %v772
        %776 = vmatprep.subr.bf16.mxu0 0
        %777 = vmatpush1.bf16.xpose.msra.mxu0 0
        %778 = vmatprep.subr.bf16.mxu0 0
        %779 = vmatpush1.bf16.xpose.msra.mxu0 0
        %780 = vmatprep.subr.bf16.mxu0 0
        %781 = vmatpush1.bf16.xpose.msra.mxu0 0
        %782 = vmatprep.subr.bf16.mxu0 0
        %783 = vmatpush1.bf16.xpose.msra.mxu0 0
        %784 = vmatprep.subr.bf16.mxu0 0
        %785 = vmatpush1.bf16.xpose.msra.mxu0 0
        %786 = vmatprep.subr.bf16.mxu0 0
        %787 = vmatpush1.bf16.xpose.msra.mxu0 0
        %788 = vmatprep.subr.bf16.mxu0 0
        %789 = vmatpush1.bf16.xpose.msra.mxu0 0
        %790 = vmatprep.subr.bf16.mxu0 0
        %791 = vmatpush1.bf16.xpose.msra.mxu0 0
        %792 = vmatprep.subr.bf16.mxu0 0
        %793 = vmatpush1.bf16.xpose.msra.mxu0 0
        %794 = vmatprep.subr.bf16.mxu0 0
        %795 = vmatpush1.bf16.xpose.msra.mxu0 0
        %796 = vmatprep.subr.bf16.mxu0 0
        %797 = vmatpush1.bf16.xpose.msra.mxu0 0
        %798 = vmatprep.subr.bf16.mxu0 0
        %799 = vmatpush1.bf16.xpose.msra.mxu0 0
        %800 = vmatprep.subr.bf16.mxu0 0
        %801 = vmatpush1.bf16.xpose.msra.mxu0 0
        %802 = vmatprep.subr.bf16.mxu0 0
        %803 = vmatpush1.bf16.xpose.msra.mxu0 0
        %804 = vmatprep.subr.bf16.mxu0 0
        %805 = vmatpush1.bf16.xpose.msra.mxu0 0
        %806 = vmatprep.mubr.bf16.mxu0 0
        %807 = vmatmul.mubr.bf16.gmra.mrb[0].mxu0 %v769
        %v808 = vpop.f32.mrb[0].mxu0
        %v809 = vadd.f32 %v559, %v808
        %v810 = vpop.f32.mrb[0].mxu0
        %v811 = vpop.f32.mrb[0].mxu0
        %v812 = vpop.f32.mrb[0].mxu0
        %813 = vdwg.mxu0
        %v814 = vsel %vm656, %v809, -inf
        %815 = vmax.xlane.f32.xlu0 %v814
        %v816 = vpop.xlane.xlu0 %815
        %v817 = vsub.f32 %v809, %v816
        %v818 = vmul.f32 %v817, 1.442695
        %v819 = vpow.pop %v818
        %v820 = vsel %vm656, %v819, 0.0
        %821 = vadd.xlane.f32.xlu0 %v820
        %v822 = vpop.xlane.xlu0 %821
        %v823 = vrcp.pop %v822
        %v824 = vmul.f32 %v819, %v823
        %v825 = vpack.c.bf16 %v824, %v824
        %826 = vrot.lane.b32.xlu0 %v652, 56
        %v827 = vpop.permute.xlu0 %826
        %v829 = vsel %vm656, %v825, 0
        %v832 = vsel %vm720, %v827, 0
        %834 = vmatprep.subr.bf16.mxu0 0
        %835 = vmatpush1.bf16.msra.mxu0 %v832
        %836 = vmatprep.subr.bf16.mxu0 0
        %837 = vmatpush1.bf16.msra.mxu0 0
        %838 = vmatprep.subr.bf16.mxu0 0
        %839 = vmatpush1.bf16.msra.mxu0 0
        %840 = vmatprep.subr.bf16.mxu0 0
        %841 = vmatpush1.bf16.msra.mxu0 0
        %842 = vmatprep.subr.bf16.mxu0 0
        %843 = vmatpush1.bf16.msra.mxu0 0
        %844 = vmatprep.subr.bf16.mxu0 0
        %845 = vmatpush1.bf16.msra.mxu0 0
        %846 = vmatprep.subr.bf16.mxu0 0
        %847 = vmatpush1.bf16.msra.mxu0 0
        %848 = vmatprep.subr.bf16.mxu0 0
        %849 = vmatpush1.bf16.msra.mxu0 0
        %850 = vmatprep.subr.bf16.mxu0 0
        %851 = vmatpush1.bf16.msra.mxu0 0
        %852 = vmatprep.subr.bf16.mxu0 0
        %853 = vmatpush1.bf16.msra.mxu0 0
        %854 = vmatprep.subr.bf16.mxu0 0
        %855 = vmatpush1.bf16.msra.mxu0 0
        %856 = vmatprep.subr.bf16.mxu0 0
        %857 = vmatpush1.bf16.msra.mxu0 0
        %858 = vmatprep.subr.bf16.mxu0 0
        %859 = vmatpush1.bf16.msra.mxu0 0
        %860 = vmatprep.subr.bf16.mxu0 0
        %861 = vmatpush1.bf16.msra.mxu0 0
        %862 = vmatprep.subr.bf16.mxu0 0
        %863 = vmatpush1.bf16.msra.mxu0 0
        %864 = vmatprep.subr.bf16.mxu0 0
        %865 = vmatpush1.bf16.msra.mxu0 0
        %866 = vmatprep.mubr.bf16.mxu0 0
        %867 = vmatmul.mubr.bf16.gmra.mrb[0].mxu0 %v829
        %v868 = vpop.f32.mrb[0].mxu0
        %v869 = vadd.f32 0.0, %v868
        %v870 = vpop.f32.mrb[0].mxu0
        %v871 = vpop.f32.mrb[0].mxu0
        %v872 = vpop.f32.mrb[0].mxu0
        %873 = vdwg.mxu0
        %874 = vrot.lane.b32.xlu0 %v652, 112
        %v875 = vpop.permute.xlu0 %874
        %876 = vrot.lane.b32.xlu0 %v652, 80
        %v877 = vpop.permute.xlu0 %876
        %v879 = vsel %vm656, %v875, 0
        %v882 = vsel %vm656, %v877, 0
        %884 = vmatprep.subr.bf16.mxu0 0
        %885 = vmatpush1.bf16.xpose.msra.mxu0 %v882
        %886 = vmatprep.subr.bf16.mxu0 0
        %887 = vmatpush1.bf16.xpose.msra.mxu0 0
        %888 = vmatprep.subr.bf16.mxu0 0
        %889 = vmatpush1.bf16.xpose.msra.mxu0 0
        %890 = vmatprep.subr.bf16.mxu0 0
        %891 = vmatpush1.bf16.xpose.msra.mxu0 0
        %892 = vmatprep.subr.bf16.mxu0 0
        %893 = vmatpush1.bf16.xpose.msra.mxu0 0
        %894 = vmatprep.subr.bf16.mxu0 0
        %895 = vmatpush1.bf16.xpose.msra.mxu0 0
        %896 = vmatprep.subr.bf16.mxu0 0
        %897 = vmatpush1.bf16.xpose.msra.mxu0 0
        %898 = vmatprep.subr.bf16.mxu0 0
        %899 = vmatpush1.bf16.xpose.msra.mxu0 0
        %900 = vmatprep.subr.bf16.mxu0 0
        %901 = vmatpush1.bf16.xpose.msra.mxu0 0
        %902 = vmatprep.subr.bf16.mxu0 0
        %903 = vmatpush1.bf16.xpose.msra.mxu0 0
        %904 = vmatprep.subr.bf16.mxu0 0
        %905 = vmatpush1.bf16.xpose.msra.mxu0 0
        %906 = vmatprep.subr.bf16.mxu0 0
        %907 = vmatpush1.bf16.xpose.msra.mxu0 0
        %908 = vmatprep.subr.bf16.mxu0 0
        %909 = vmatpush1.bf16.xpose.msra.mxu0 0
        %910 = vmatprep.subr.bf16.mxu0 0
        %911 = vmatpush1.bf16.xpose.msra.mxu0 0
        %912 = vmatprep.subr.bf16.mxu0 0
        %913 = vmatpush1.bf16.xpose.msra.mxu0 0
        %914 = vmatprep.subr.bf16.mxu0 0
        %915 = vmatpush1.bf16.xpose.msra.mxu0 0
        %916 = vmatprep.mubr.bf16.mxu0 0
        %917 = vmatmul.mubr.bf16.gmra.mrb[0].mxu0 %v879
        %v918 = vpop.f32.mrb[0].mxu0
        %v919 = vadd.f32 %v559, %v918
        %v920 = vpop.f32.mrb[0].mxu0
        %v921 = vpop.f32.mrb[0].mxu0
        %v922 = vpop.f32.mrb[0].mxu0
        %923 = vdwg.mxu0
        %v924 = vsel %vm656, %v919, -inf
        %925 = vmax.xlane.f32.xlu0 %v924
        %v926 = vpop.xlane.xlu0 %925
        %v927 = vsub.f32 %v919, %v926
        %v928 = vmul.f32 %v927, 1.442695
        %v929 = vpow.pop %v928
        %v930 = vsel %vm656, %v929, 0.0
        %931 = vadd.xlane.f32.xlu0 %v930
        %v932 = vpop.xlane.xlu0 %931
        %v933 = vrcp.pop %v932
        %v934 = vmul.f32 %v929, %v933
        %v935 = vpack.c.bf16 %v934, %v934
        %936 = vrot.lane.b32.xlu0 %v652, 48
        %v937 = vpop.permute.xlu0 %936
        %v939 = vsel %vm656, %v935, 0
        %v942 = vsel %vm720, %v937, 0
        %944 = vmatprep.subr.bf16.mxu0 0
        %945 = vmatpush1.bf16.msra.mxu0 %v942
        %946 = vmatprep.subr.bf16.mxu0 0
        %947 = vmatpush1.bf16.msra.mxu0 0
        %948 = vmatprep.subr.bf16.mxu0 0
        %949 = vmatpush1.bf16.msra.mxu0 0
        %950 = vmatprep.subr.bf16.mxu0 0
        %951 = vmatpush1.bf16.msra.mxu0 0
        %952 = vmatprep.subr.bf16.mxu0 0
        %953 = vmatpush1.bf16.msra.mxu0 0
        %954 = vmatprep.subr.bf16.mxu0 0
        %955 = vmatpush1.bf16.msra.mxu0 0
        %956 = vmatprep.subr.bf16.mxu0 0
        %957 = vmatpush1.bf16.msra.mxu0 0
        %958 = vmatprep.subr.bf16.mxu0 0
        %959 = vmatpush1.bf16.msra.mxu0 0
        %960 = vmatprep.subr.bf16.mxu0 0
        %961 = vmatpush1.bf16.msra.mxu0 0
        %962 = vmatprep.subr.bf16.mxu0 0
        %963 = vmatpush1.bf16.msra.mxu0 0
        %964 = vmatprep.subr.bf16.mxu0 0
        %965 = vmatpush1.bf16.msra.mxu0 0
        %966 = vmatprep.subr.bf16.mxu0 0
        %967 = vmatpush1.bf16.msra.mxu0 0
        %968 = vmatprep.subr.bf16.mxu0 0
        %969 = vmatpush1.bf16.msra.mxu0 0
        %970 = vmatprep.subr.bf16.mxu0 0
        %971 = vmatpush1.bf16.msra.mxu0 0
        %972 = vmatprep.subr.bf16.mxu0 0
        %973 = vmatpush1.bf16.msra.mxu0 0
        %974 = vmatprep.subr.bf16.mxu0 0
        %975 = vmatpush1.bf16.msra.mxu0 0
        %976 = vmatprep.mubr.bf16.mxu0 0
        %977 = vmatmul.mubr.bf16.gmra.mrb[0].mxu0 %v939
        %v978 = vpop.f32.mrb[0].mxu0
        %v979 = vadd.f32 0.0, %v978
        %v980 = vpop.f32.mrb[0].mxu0
        %v981 = vpop.f32.mrb[0].mxu0
        %v982 = vpop.f32.mrb[0].mxu0
        %983 = vdwg.mxu0
        %984 = vrot.lane.b32.xlu0 %v652, 104
        %v985 = vpop.permute.xlu0 %984
        %986 = vrot.lane.b32.xlu0 %v652, 72
        %v987 = vpop.permute.xlu0 %986
        %v989 = vsel %vm656, %v985, 0
        %v992 = vsel %vm656, %v987, 0
        %994 = vmatprep.subr.bf16.mxu0 0
        %995 = vmatpush1.bf16.xpose.msra.mxu0 %v992
        %996 = vmatprep.subr.bf16.mxu0 0
        %997 = vmatpush1.bf16.xpose.msra.mxu0 0
        %998 = vmatprep.subr.bf16.mxu0 0
        %999 = vmatpush1.bf16.xpose.msra.mxu0 0
        %1000 = vmatprep.subr.bf16.mxu0 0
        %1001 = vmatpush1.bf16.xpose.msra.mxu0 0
        %1002 = vmatprep.subr.bf16.mxu0 0
        %1003 = vmatpush1.bf16.xpose.msra.mxu0 0
        %1004 = vmatprep.subr.bf16.mxu0 0
        %1005 = vmatpush1.bf16.xpose.msra.mxu0 0
        %1006 = vmatprep.subr.bf16.mxu0 0
        %1007 = vmatpush1.bf16.xpose.msra.mxu0 0
        %1008 = vmatprep.subr.bf16.mxu0 0
        %1009 = vmatpush1.bf16.xpose.msra.mxu0 0
        %1010 = vmatprep.subr.bf16.mxu0 0
        %1011 = vmatpush1.bf16.xpose.msra.mxu0 0
        %1012 = vmatprep.subr.bf16.mxu0 0
        %1013 = vmatpush1.bf16.xpose.msra.mxu0 0
        %1014 = vmatprep.subr.bf16.mxu0 0
        %1015 = vmatpush1.bf16.xpose.msra.mxu0 0
        %1016 = vmatprep.subr.bf16.mxu0 0
        %1017 = vmatpush1.bf16.xpose.msra.mxu0 0
        %1018 = vmatprep.subr.bf16.mxu0 0
        %1019 = vmatpush1.bf16.xpose.msra.mxu0 0
        %1020 = vmatprep.subr.bf16.mxu0 0
        %1021 = vmatpush1.bf16.xpose.msra.mxu0 0
        %1022 = vmatprep.subr.bf16.mxu0 0
        %1023 = vmatpush1.bf16.xpose.msra.mxu0 0
        %1024 = vmatprep.subr.bf16.mxu0 0
        %1025 = vmatpush1.bf16.xpose.msra.mxu0 0
        %1026 = vmatprep.mubr.bf16.mxu0 0
        %1027 = vmatmul.mubr.bf16.gmra.mrb[0].mxu0 %v989
        %v1028 = vpop.f32.mrb[0].mxu0
        %v1029 = vadd.f32 %v559, %v1028
        %v1030 = vpop.f32.mrb[0].mxu0
        %v1031 = vpop.f32.mrb[0].mxu0
        %v1032 = vpop.f32.mrb[0].mxu0
        %1033 = vdwg.mxu0
        %v1034 = vsel %vm656, %v1029, -inf
        %1035 = vmax.xlane.f32.xlu0 %v1034
        %v1036 = vpop.xlane.xlu0 %1035
        %v1037 = vsub.f32 %v1029, %v1036
        %v1038 = vmul.f32 %v1037, 1.442695
        %v1039 = vpow.pop %v1038
        %v1040 = vsel %vm656, %v1039, 0.0
        %1041 = vadd.xlane.f32.xlu0 %v1040
        %v1042 = vpop.xlane.xlu0 %1041
        %v1043 = vrcp.pop %v1042
        %v1044 = vmul.f32 %v1039, %v1043
        %v1045 = vpack.c.bf16 %v1044, %v1044
        %1046 = vrot.lane.b32.xlu0 %v652, 40
        %v1047 = vpop.permute.xlu0 %1046
        %v1049 = vsel %vm656, %v1045, 0
        %v1052 = vsel %vm720, %v1047, 0
        %1054 = vmatprep.subr.bf16.mxu0 0
        %1055 = vmatpush1.bf16.msra.mxu0 %v1052
        %1056 = vmatprep.subr.bf16.mxu0 0
        %1057 = vmatpush1.bf16.msra.mxu0 0
        %1058 = vmatprep.subr.bf16.mxu0 0
        %1059 = vmatpush1.bf16.msra.mxu0 0
        %1060 = vmatprep.subr.bf16.mxu0 0
        %1061 = vmatpush1.bf16.msra.mxu0 0
        %1062 = vmatprep.subr.bf16.mxu0 0
        %1063 = vmatpush1.bf16.msra.mxu0 0
        %1064 = vmatprep.subr.bf16.mxu0 0
        %1065 = vmatpush1.bf16.msra.mxu0 0
        %1066 = vmatprep.subr.bf16.mxu0 0
        %1067 = vmatpush1.bf16.msra.mxu0 0
        %1068 = vmatprep.subr.bf16.mxu0 0
        %1069 = vmatpush1.bf16.msra.mxu0 0
        %1070 = vmatprep.subr.bf16.mxu0 0
        %1071 = vmatpush1.bf16.msra.mxu0 0
        %1072 = vmatprep.subr.bf16.mxu0 0
        %1073 = vmatpush1.bf16.msra.mxu0 0
        %1074 = vmatprep.subr.bf16.mxu0 0
        %1075 = vmatpush1.bf16.msra.mxu0 0
        %1076 = vmatprep.subr.bf16.mxu0 0
        %1077 = vmatpush1.bf16.msra.mxu0 0
        %1078 = vmatprep.subr.bf16.mxu0 0
        %1079 = vmatpush1.bf16.msra.mxu0 0
        %1080 = vmatprep.subr.bf16.mxu0 0
        %1081 = vmatpush1.bf16.msra.mxu0 0
        %1082 = vmatprep.subr.bf16.mxu0 0
        %1083 = vmatpush1.bf16.msra.mxu0 0
        %1084 = vmatprep.subr.bf16.mxu0 0
        %1085 = vmatpush1.bf16.msra.mxu0 0
        %1086 = vmatprep.mubr.bf16.mxu0 0
        %1087 = vmatmul.mubr.bf16.gmra.mrb[0].mxu0 %v1049
        %v1088 = vpop.f32.mrb[0].mxu0
        %v1089 = vadd.f32 0.0, %v1088
        %v1090 = vpop.f32.mrb[0].mxu0
        %v1091 = vpop.f32.mrb[0].mxu0
        %v1092 = vpop.f32.mrb[0].mxu0
        %1093 = vdwg.mxu0
        %1095 = vrot.lane.b32.xlu0 %v869, 8
        %v1096 = vpop.permute.xlu0 %1095
        %1099 = vrot.lane.b32.xlu0 %v979, 16
        %v1100 = vpop.permute.xlu0 %1099
        %1103 = vrot.lane.b32.xlu0 %v1089, 24
        %v1104 = vpop.permute.xlu0 %1103
        %v1106 = vsel %vm656, %v759, %v1096
        %vm1107 = vcmask 130048
        %v1108 = vsel %vm1107, %v1106, %v1100
        %vm1109 = vcmask 195584
        %v1110 = vsel %vm1109, %v1108, %v1104
        %v1111 = vpack.c.bf16 %v1110, %v1110
        %v1112 = vld [vmem:[%s7] sm:$0xf]
        %v1113 = vld [vmem:[%s7 + $0x4] sm:$0xf]
        %v1114 = vld [vmem:[%s7 + $0x8] sm:$0xf]
        %v1115 = vld [vmem:[%s7 + $0xc] sm:$0xf]
        %v1116 = vld [vmem:[%s8] sm:$0x1]
        %v1117 = vlaneseq
        %v1118 = vshrl.u32 %v1117, 7
        %v1119 = vsub.s32 0, %v1118
        %v1120 = vrot.slane %v1116, %v1119
        %v1125 = vunpack.c.l.b16 %v1112
        %v1126 = vunpack.c.l.b16 %v1113
        %v1127 = vunpack.c.l.b16 %v1114
        %v1128 = vunpack.c.l.b16 %v1115
        %v1129 = vpack.c.b16 %v1126, %v1125
        %v1130 = vpack.c.b16 %v1128, %v1127
        %v1134 = vsel %vm562, %v1111, 0
        %1136 = vmatprep.subr.bf16.mxu0 0
        %1137 = vmatpush1.bf16.msra.mxu0 %v1129
        %1138 = vmatprep.subr.bf16.mxu0 0
        %1139 = vmatpush1.bf16.msra.mxu0 %v1130
        %1140 = vmatprep.subr.bf16.mxu0 0
        %1141 = vmatpush1.bf16.msra.mxu0 0
        %1142 = vmatprep.subr.bf16.mxu0 0
        %1143 = vmatpush1.bf16.msra.mxu0 0
        %1144 = vmatprep.subr.bf16.mxu0 0
        %1145 = vmatpush1.bf16.msra.mxu0 0
        %1146 = vmatprep.subr.bf16.mxu0 0
        %1147 = vmatpush1.bf16.msra.mxu0 0
        %1148 = vmatprep.subr.bf16.mxu0 0
        %1149 = vmatpush1.bf16.msra.mxu0 0
        %1150 = vmatprep.subr.bf16.mxu0 0
        %1151 = vmatpush1.bf16.msra.mxu0 0
        %1152 = vmatprep.subr.bf16.mxu0 0
        %1153 = vmatpush1.bf16.msra.mxu0 0
        %1154 = vmatprep.subr.bf16.mxu0 0
        %1155 = vmatpush1.bf16.msra.mxu0 0
        %1156 = vmatprep.subr.bf16.mxu0 0
        %1157 = vmatpush1.bf16.msra.mxu0 0
        %1158 = vmatprep.subr.bf16.mxu0 0
        %1159 = vmatpush1.bf16.msra.mxu0 0
        %1160 = vmatprep.subr.bf16.mxu0 0
        %1161 = vmatpush1.bf16.msra.mxu0 0
        %1162 = vmatprep.subr.bf16.mxu0 0
        %1163 = vmatpush1.bf16.msra.mxu0 0
        %1164 = vmatprep.subr.bf16.mxu0 0
        %1165 = vmatpush1.bf16.msra.mxu0 0
        %1166 = vmatprep.subr.bf16.mxu0 0
        %1167 = vmatpush1.bf16.msra.mxu0 0
        %1168 = vmatprep.mubr.bf16.mxu0 0
        %1169 = vmatmul.mubr.bf16.gmra.mrb[0].mxu0 %v1134
        %v1170 = vpop.f32.mrb[0].mxu0
        %v1171 = vadd.f32 %v1120, %v1170
        %v1172 = vpop.f32.mrb[0].mxu0
        %v1173 = vpop.f32.mrb[0].mxu0
        %v1174 = vpop.f32.mrb[0].mxu0
        %1175 = vdwg.mxu0
        %v1176 = vadd.f32 %v553, %v1171
        %v1177 = vld [vmem:[%s9] sm:$0x1]
        %v1178 = vld [vmem:[%s10] sm:$0x1]
        %v1179 = vsel %vm562, %v1176, 0.0
        %1180 = vadd.xlane.f32.xlu0 %v1179
        %v1181 = vpop.xlane.xlu0 %1180
        %v1182 = vmul.f32 %v1181, %v566
        %v1183 = vsub.f32 %v1176, %v1182
        %v1184 = vmul.f32 %v1183, %v1183
        %v1185 = vsel %vm562, %v1184, 0.0
        %1186 = vadd.xlane.f32.xlu0 %v1185
        %v1187 = vpop.xlane.xlu0 %1186
        %v1188 = vmul.f32 %v1187, %v566
        %v1189 = vadd.f32 %v1188, 1e-05
        %v1190 = vrsqrt.pop %v1189
        %v1191 = vmul.f32 %v1183, %v1190
        %v1192 = vlaneseq
        %v1193 = vshrl.u32 %v1192, 7
        %v1194 = vsub.s32 0, %v1193
        %v1195 = vrot.slane %v1177, %v1194
        %v1196 = vmul.f32 %v1191, %v1195
        %v1197 = vlaneseq
        %v1198 = vshrl.u32 %v1197, 7
        %v1199 = vsub.s32 0, %v1198
        %v1200 = vrot.slane %v1178, %v1199
        %v1201 = vadd.f32 %v1196, %v1200
        %v1202 = vpack.c.bf16 %v1201, %v1201
        %v1203 = vld [vmem:[%s11] sm:$0xf]
        %v1204 = vld [vmem:[%s11 + $0x4] sm:$0xf]
        %v1205 = vld [vmem:[%s11 + $0x8] sm:$0xf]
        %v1206 = vld [vmem:[%s11 + $0xc] sm:$0xf]
        %v1207 = vld [vmem:[%s12] sm:$0x1]
        %v1208 = vlaneseq
        %v1209 = vshrl.u32 %v1208, 7
        %v1210 = vsub.s32 0, %v1209
        %v1211 = vrot.slane %v1207, %v1210
        %v1216 = vunpack.c.l.b16 %v1203
        %v1217 = vunpack.c.l.b16 %v1204
        %v1218 = vunpack.c.l.b16 %v1205
        %v1219 = vunpack.c.l.b16 %v1206
        %v1220 = vpack.c.b16 %v1217, %v1216
        %v1221 = vpack.c.b16 %v1219, %v1218
        %v1225 = vsel %vm562, %v1202, 0
        %1227 = vmatprep.subr.bf16.mxu0 0
        %1228 = vmatpush1.bf16.msra.mxu0 %v1220
        %1229 = vmatprep.subr.bf16.mxu0 0
        %1230 = vmatpush1.bf16.msra.mxu0 %v1221
        %1231 = vmatprep.subr.bf16.mxu0 0
        %1232 = vmatpush1.bf16.msra.mxu0 0
        %1233 = vmatprep.subr.bf16.mxu0 0
        %1234 = vmatpush1.bf16.msra.mxu0 0
        %1235 = vmatprep.subr.bf16.mxu0 0
        %1236 = vmatpush1.bf16.msra.mxu0 0
        %1237 = vmatprep.subr.bf16.mxu0 0
        %1238 = vmatpush1.bf16.msra.mxu0 0
        %1239 = vmatprep.subr.bf16.mxu0 0
        %1240 = vmatpush1.bf16.msra.mxu0 0
        %1241 = vmatprep.subr.bf16.mxu0 0
        %1242 = vmatpush1.bf16.msra.mxu0 0
        %1243 = vmatprep.subr.bf16.mxu0 0
        %1244 = vmatpush1.bf16.msra.mxu0 0
        %1245 = vmatprep.subr.bf16.mxu0 0
        %1246 = vmatpush1.bf16.msra.mxu0 0
        %1247 = vmatprep.subr.bf16.mxu0 0
        %1248 = vmatpush1.bf16.msra.mxu0 0
        %1249 = vmatprep.subr.bf16.mxu0 0
        %1250 = vmatpush1.bf16.msra.mxu0 0
        %1251 = vmatprep.subr.bf16.mxu0 0
        %1252 = vmatpush1.bf16.msra.mxu0 0
        %1253 = vmatprep.subr.bf16.mxu0 0
        %1254 = vmatpush1.bf16.msra.mxu0 0
        %1255 = vmatprep.subr.bf16.mxu0 0
        %1256 = vmatpush1.bf16.msra.mxu0 0
        %1257 = vmatprep.subr.bf16.mxu0 0
        %1258 = vmatpush1.bf16.msra.mxu0 0
        %1259 = vmatprep.mubr.bf16.mxu0 0
        %1260 = vmatmul.mubr.bf16.gmra.mrb[0].mxu0 %v1225
        %v1261 = vpop.f32.mrb[0].mxu0
        %v1262 = vadd.f32 %v1211, %v1261
        %v1263 = vpop.f32.mrb[0].mxu0
        %v1264 = vpop.f32.mrb[0].mxu0
        %v1265 = vpop.f32.mrb[0].mxu0
        %1266 = vdwg.mxu0
        %v1267 = vmul.f32 %v1262, 1.702
        %v1268 = vxor.u32 %v1267, 2147483648
        %v1269 = vmul.f32 %v1268, 1.442695
        %v1270 = vpow.pop %v1269
        %v1271 = vadd.f32 %v1270, 1.0
        %v1272 = vrcp.pop %v1271
        %v1273 = vmul.f32 1.0, %v1272
        %v1274 = vmul.f32 %v1262, %v1273
        %v1275 = vpack.c.bf16 %v1274, %v1274
        %v1276 = vld [vmem:[%s13] sm:$0xf]
        %v1277 = vld [vmem:[%s13 + $0x4] sm:$0xf]
        %v1278 = vld [vmem:[%s13 + $0x8] sm:$0xf]
        %v1279 = vld [vmem:[%s13 + $0xc] sm:$0xf]
        %v1280 = vld [vmem:[%s13 + $0x10] sm:$0xf]
        %v1281 = vld [vmem:[%s13 + $0x14] sm:$0xf]
        %v1282 = vld [vmem:[%s13 + $0x18] sm:$0xf]
        %v1283 = vld [vmem:[%s13 + $0x1c] sm:$0xf]
        %v1284 = vld [vmem:[%s13 + $0x20] sm:$0xf]
        %v1285 = vld [vmem:[%s13 + $0x24] sm:$0xf]
        %v1286 = vld [vmem:[%s13 + $0x28] sm:$0xf]
        %v1287 = vld [vmem:[%s13 + $0x2c] sm:$0xf]
        %v1288 = vld [vmem:[%s13 + $0x30] sm:$0xf]
        %v1289 = vld [vmem:[%s13 + $0x34] sm:$0xf]
        %v1290 = vld [vmem:[%s13 + $0x38] sm:$0xf]
        %v1291 = vld [vmem:[%s13 + $0x3c] sm:$0xf]
        %v1292 = vld [vmem:[%s14] sm:$0x1]
        %v1293 = vlaneseq
        %v1294 = vshrl.u32 %v1293, 7
        %v1295 = vsub.s32 0, %v1294
        %v1296 = vrot.slane %v1292, %v1295
        %v1313 = vunpack.c.l.b16 %v1276
        %v1314 = vunpack.c.l.b16 %v1277
        %v1315 = vunpack.c.l.b16 %v1278
        %v1316 = vunpack.c.l.b16 %v1279
        %v1317 = vunpack.c.l.b16 %v1280
        %v1318 = vunpack.c.l.b16 %v1281
        %v1319 = vunpack.c.l.b16 %v1282
        %v1320 = vunpack.c.l.b16 %v1283
        %v1321 = vunpack.c.l.b16 %v1284
        %v1322 = vunpack.c.l.b16 %v1285
        %v1323 = vunpack.c.l.b16 %v1286
        %v1324 = vunpack.c.l.b16 %v1287
        %v1325 = vunpack.c.l.b16 %v1288
        %v1326 = vunpack.c.l.b16 %v1289
        %v1327 = vunpack.c.l.b16 %v1290
        %v1328 = vunpack.c.l.b16 %v1291
        %v1329 = vpack.c.b16 %v1314, %v1313
        %v1330 = vpack.c.b16 %v1316, %v1315
        %v1331 = vpack.c.b16 %v1318, %v1317
        %v1332 = vpack.c.b16 %v1320, %v1319
        %v1333 = vpack.c.b16 %v1322, %v1321
        %v1334 = vpack.c.b16 %v1324, %v1323
        %v1335 = vpack.c.b16 %v1326, %v1325
        %v1336 = vpack.c.b16 %v1328, %v1327
        %1345 = vmatprep.subr.bf16.mxu0 0
        %1346 = vmatpush1.bf16.msra.mxu0 %v1329
        %1347 = vmatprep.subr.bf16.mxu0 0
        %1348 = vmatpush1.bf16.msra.mxu0 %v1330
        %1349 = vmatprep.subr.bf16.mxu0 0
        %1350 = vmatpush1.bf16.msra.mxu0 %v1331
        %1351 = vmatprep.subr.bf16.mxu0 0
        %1352 = vmatpush1.bf16.msra.mxu0 %v1332
        %1353 = vmatprep.subr.bf16.mxu0 0
        %1354 = vmatpush1.bf16.msra.mxu0 %v1333
        %1355 = vmatprep.subr.bf16.mxu0 0
        %1356 = vmatpush1.bf16.msra.mxu0 %v1334
        %1357 = vmatprep.subr.bf16.mxu0 0
        %1358 = vmatpush1.bf16.msra.mxu0 %v1335
        %1359 = vmatprep.subr.bf16.mxu0 0
        %1360 = vmatpush1.bf16.msra.mxu0 %v1336
        %1361 = vmatprep.subr.bf16.mxu0 0
        %1362 = vmatpush1.bf16.msra.mxu0 0
        %1363 = vmatprep.subr.bf16.mxu0 0
        %1364 = vmatpush1.bf16.msra.mxu0 0
        %1365 = vmatprep.subr.bf16.mxu0 0
        %1366 = vmatpush1.bf16.msra.mxu0 0
        %1367 = vmatprep.subr.bf16.mxu0 0
        %1368 = vmatpush1.bf16.msra.mxu0 0
        %1369 = vmatprep.subr.bf16.mxu0 0
        %1370 = vmatpush1.bf16.msra.mxu0 0
        %1371 = vmatprep.subr.bf16.mxu0 0
        %1372 = vmatpush1.bf16.msra.mxu0 0
        %1373 = vmatprep.subr.bf16.mxu0 0
        %1374 = vmatpush1.bf16.msra.mxu0 0
        %1375 = vmatprep.subr.bf16.mxu0 0
        %1376 = vmatpush1.bf16.msra.mxu0 0
        %1377 = vmatprep.mubr.bf16.mxu0 0
        %1378 = vmatmul.mubr.bf16.gmra.mrb[0].mxu0 %v1275
        %v1379 = vpop.f32.mrb[0].mxu0
        %v1380 = vadd.f32 %v1296, %v1379
        %v1381 = vpop.f32.mrb[0].mxu0
        %v1382 = vpop.f32.mrb[0].mxu0
        %v1383 = vpop.f32.mrb[0].mxu0
        %1384 = vdwg.mxu0
        %v1385 = vadd.f32 %v1176, %v1380
        %v1386 = vld [vmem:[%s3 + $0x1] sm:$0x1]
        %v1387 = vld [vmem:[%s4 + $0x1] sm:$0x1]
        %v1388 = vsel %vm562, %v1385, 0.0
        %1389 = vadd.xlane.f32.xlu0 %v1388
        %v1390 = vpop.xlane.xlu0 %1389
        %v1391 = vmul.f32 %v1390, %v566
        %v1392 = vsub.f32 %v1385, %v1391
        %v1393 = vmul.f32 %v1392, %v1392
        %v1394 = vsel %vm562, %v1393, 0.0
        %1395 = vadd.xlane.f32.xlu0 %v1394
        %v1396 = vpop.xlane.xlu0 %1395
        %v1397 = vmul.f32 %v1396, %v566
        %v1398 = vadd.f32 %v1397, 1e-05
        %v1399 = vrsqrt.pop %v1398
        %v1400 = vmul.f32 %v1392, %v1399
        %v1401 = vlaneseq
        %v1402 = vshrl.u32 %v1401, 7
        %v1403 = vsub.s32 0, %v1402
        %v1404 = vrot.slane %v1386, %v1403
        %v1405 = vmul.f32 %v1400, %v1404
        %v1406 = vlaneseq
        %v1407 = vshrl.u32 %v1406, 7
        %v1408 = vsub.s32 0, %v1407
        %v1409 = vrot.slane %v1387, %v1408
        %v1410 = vadd.f32 %v1405, %v1409
        %v1411 = vpack.c.bf16 %v1410, %v1410
        %s1412 = scalar_lea.vmem %s5, 16
        %v1413 = vld [vmem:[%s1412] sm:$0xf]
        %v1414 = vld [vmem:[%s1412 + $0x4] sm:$0xf]
        %v1415 = vld [vmem:[%s1412 + $0x8] sm:$0xf]
        %v1416 = vld [vmem:[%s1412 + $0xc] sm:$0xf]
        %v1417 = vld [vmem:[%s6 + $0x1] sm:$0x1]
        %v1418 = vlaneseq
        %v1419 = vshrl.u32 %v1418, 7
        %v1420 = vsub.s32 0, %v1419
        %v1421 = vrot.slane %v1417, %v1420
        %v1426 = vunpack.c.l.b16 %v1413
        %v1427 = vunpack.c.l.b16 %v1414
        %v1428 = vunpack.c.l.b16 %v1415
        %v1429 = vunpack.c.l.b16 %v1416
        %v1430 = vpack.c.b16 %v1427, %v1426
        %v1431 = vpack.c.b16 %v1429, %v1428
        %v1435 = vsel %vm562, %v1411, 0
        %1437 = vmatprep.subr.bf16.mxu0 0
        %1438 = vmatpush1.bf16.msra.mxu0 %v1430
        %1439 = vmatprep.subr.bf16.mxu0 0
        %1440 = vmatpush1.bf16.msra.mxu0 %v1431
        %1441 = vmatprep.subr.bf16.mxu0 0
        %1442 = vmatpush1.bf16.msra.mxu0 0
        %1443 = vmatprep.subr.bf16.mxu0 0
        %1444 = vmatpush1.bf16.msra.mxu0 0
        %1445 = vmatprep.subr.bf16.mxu0 0
        %1446 = vmatpush1.bf16.msra.mxu0 0
        %1447 = vmatprep.subr.bf16.mxu0 0
        %1448 = vmatpush1.bf16.msra.mxu0 0
        %1449 = vmatprep.subr.bf16.mxu0 0
        %1450 = vmatpush1.bf16.msra.mxu0 0
        %1451 = vmatprep.subr.bf16.mxu0 0
        %1452 = vmatpush1.bf16.msra.mxu0 0
        %1453 = vmatprep.subr.bf16.mxu0 0
        %1454 = vmatpush1.bf16.msra.mxu0 0
        %1455 = vmatprep.subr.bf16.mxu0 0
        %1456 = vmatpush1.bf16.msra.mxu0 0
        %1457 = vmatprep.subr.bf16.mxu0 0
        %1458 = vmatpush1.bf16.msra.mxu0 0
        %1459 = vmatprep.subr.bf16.mxu0 0
        %1460 = vmatpush1.bf16.msra.mxu0 0
        %1461 = vmatprep.subr.bf16.mxu0 0
        %1462 = vmatpush1.bf16.msra.mxu0 0
        %1463 = vmatprep.subr.bf16.mxu0 0
        %1464 = vmatpush1.bf16.msra.mxu0 0
        %1465 = vmatprep.subr.bf16.mxu0 0
        %1466 = vmatpush1.bf16.msra.mxu0 0
        %1467 = vmatprep.subr.bf16.mxu0 0
        %1468 = vmatpush1.bf16.msra.mxu0 0
        %1469 = vmatprep.mubr.bf16.mxu0 0
        %1470 = vmatmul.mubr.bf16.gmra.mrb[0].mxu0 %v1435
        %v1471 = vpop.f32.mrb[0].mxu0
        %v1472 = vadd.f32 %v1421, %v1471
        %v1473 = vpop.f32.mrb[0].mxu0
        %v1474 = vpop.f32.mrb[0].mxu0
        %v1475 = vpop.f32.mrb[0].mxu0
        %1476 = vdwg.mxu0
        %v1477 = vpack.c.bf16 %v1472, %v1472
        %1479 = vrot.lane.b32.xlu0 %v1477, 96
        %v1480 = vpop.permute.xlu0 %1479
        %v1482 = vsel %vm656, %v1477, 0
        %v1485 = vsel %vm656, %v1480, 0
        %1487 = vmatprep.subr.bf16.mxu0 0
        %1488 = vmatpush1.bf16.xpose.msra.mxu0 %v1485
        %1489 = vmatprep.subr.bf16.mxu0 0
        %1490 = vmatpush1.bf16.xpose.msra.mxu0 0
        %1491 = vmatprep.subr.bf16.mxu0 0
        %1492 = vmatpush1.bf16.xpose.msra.mxu0 0
        %1493 = vmatprep.subr.bf16.mxu0 0
        %1494 = vmatpush1.bf16.xpose.msra.mxu0 0
        %1495 = vmatprep.subr.bf16.mxu0 0
        %1496 = vmatpush1.bf16.xpose.msra.mxu0 0
        %1497 = vmatprep.subr.bf16.mxu0 0
        %1498 = vmatpush1.bf16.xpose.msra.mxu0 0
        %1499 = vmatprep.subr.bf16.mxu0 0
        %1500 = vmatpush1.bf16.xpose.msra.mxu0 0
        %1501 = vmatprep.subr.bf16.mxu0 0
        %1502 = vmatpush1.bf16.xpose.msra.mxu0 0
        %1503 = vmatprep.subr.bf16.mxu0 0
        %1504 = vmatpush1.bf16.xpose.msra.mxu0 0
        %1505 = vmatprep.subr.bf16.mxu0 0
        %1506 = vmatpush1.bf16.xpose.msra.mxu0 0
        %1507 = vmatprep.subr.bf16.mxu0 0
        %1508 = vmatpush1.bf16.xpose.msra.mxu0 0
        %1509 = vmatprep.subr.bf16.mxu0 0
        %1510 = vmatpush1.bf16.xpose.msra.mxu0 0
        %1511 = vmatprep.subr.bf16.mxu0 0
        %1512 = vmatpush1.bf16.xpose.msra.mxu0 0
        %1513 = vmatprep.subr.bf16.mxu0 0
        %1514 = vmatpush1.bf16.xpose.msra.mxu0 0
        %1515 = vmatprep.subr.bf16.mxu0 0
        %1516 = vmatpush1.bf16.xpose.msra.mxu0 0
        %1517 = vmatprep.subr.bf16.mxu0 0
        %1518 = vmatpush1.bf16.xpose.msra.mxu0 0
        %1519 = vmatprep.mubr.bf16.mxu0 0
        %1520 = vmatmul.mubr.bf16.gmra.mrb[0].mxu0 %v1482
        %v1521 = vpop.f32.mrb[0].mxu0
        %v1522 = vadd.f32 %v559, %v1521
        %v1523 = vpop.f32.mrb[0].mxu0
        %v1524 = vpop.f32.mrb[0].mxu0
        %v1525 = vpop.f32.mrb[0].mxu0
        %1526 = vdwg.mxu0
        %v1527 = vsel %vm656, %v1522, -inf
        %1528 = vmax.xlane.f32.xlu0 %v1527
        %v1529 = vpop.xlane.xlu0 %1528
        %v1530 = vsub.f32 %v1522, %v1529
        %v1531 = vmul.f32 %v1530, 1.442695
        %v1532 = vpow.pop %v1531
        %v1533 = vsel %vm656, %v1532, 0.0
        %1534 = vadd.xlane.f32.xlu0 %v1533
        %v1535 = vpop.xlane.xlu0 %1534
        %v1536 = vrcp.pop %v1535
        %v1537 = vmul.f32 %v1532, %v1536
        %v1538 = vpack.c.bf16 %v1537, %v1537
        %1539 = vrot.lane.b32.xlu0 %v1477, 64
        %v1540 = vpop.permute.xlu0 %1539
        %v1542 = vsel %vm656, %v1538, 0
        %v1545 = vsel %vm720, %v1540, 0
        %1547 = vmatprep.subr.bf16.mxu0 0
        %1548 = vmatpush1.bf16.msra.mxu0 %v1545
        %1549 = vmatprep.subr.bf16.mxu0 0
        %1550 = vmatpush1.bf16.msra.mxu0 0
        %1551 = vmatprep.subr.bf16.mxu0 0
        %1552 = vmatpush1.bf16.msra.mxu0 0
        %1553 = vmatprep.subr.bf16.mxu0 0
        %1554 = vmatpush1.bf16.msra.mxu0 0
        %1555 = vmatprep.subr.bf16.mxu0 0
        %1556 = vmatpush1.bf16.msra.mxu0 0
        %1557 = vmatprep.subr.bf16.mxu0 0
        %1558 = vmatpush1.bf16.msra.mxu0 0
        %1559 = vmatprep.subr.bf16.mxu0 0
        %1560 = vmatpush1.bf16.msra.mxu0 0
        %1561 = vmatprep.subr.bf16.mxu0 0
        %1562 = vmatpush1.bf16.msra.mxu0 0
        %1563 = vmatprep.subr.bf16.mxu0 0
        %1564 = vmatpush1.bf16.msra.mxu0 0
        %1565 = vmatprep.subr.bf16.mxu0 0
        %1566 = vmatpush1.bf16.msra.mxu0 0
        %1567 = vmatprep.subr.bf16.mxu0 0
        %1568 = vmatpush1.bf16.msra.mxu0 0
        %1569 = vmatprep.subr.bf16.mxu0 0
        %1570 = vmatpush1.bf16.msra.mxu0 0
        %1571 = vmatprep.subr.bf16.mxu0 0
        %1572 = vmatpush1.bf16.msra.mxu0 0
        %1573 = vmatprep.subr.bf16.mxu0 0
        %1574 = vmatpush1.bf16.msra.mxu0 0
        %1575 = vmatprep.subr.bf16.mxu0 0
        %1576 = vmatpush1.bf16.msra.mxu0 0
        %1577 = vmatprep.subr.bf16.mxu0 0
        %1578 = vmatpush1.bf16.msra.mxu0 0
        %1579 = vmatprep.mubr.bf16.mxu0 0
        %1580 = vmatmul.mubr.bf16.gmra.mrb[0].mxu0 %v1542
        %v1581 = vpop.f32.mrb[0].mxu0
        %v1582 = vadd.f32 0.0, %v1581
        %v1583 = vpop.f32.mrb[0].mxu0
        %v1584 = vpop.f32.mrb[0].mxu0
        %v1585 = vpop.f32.mrb[0].mxu0
        %1586 = vdwg.mxu0
        %1587 = vrot.lane.b32.xlu0 %v1477, 120
        %v1588 = vpop.permute.xlu0 %1587
        %1589 = vrot.lane.b32.xlu0 %v1477, 88
        %v1590 = vpop.permute.xlu0 %1589
        %v1592 = vsel %vm656, %v1588, 0
        %v1595 = vsel %vm656, %v1590, 0
        %1597 = vmatprep.subr.bf16.mxu0 0
        %1598 = vmatpush1.bf16.xpose.msra.mxu0 %v1595
        %1599 = vmatprep.subr.bf16.mxu0 0
        %1600 = vmatpush1.bf16.xpose.msra.mxu0 0
        %1601 = vmatprep.subr.bf16.mxu0 0
        %1602 = vmatpush1.bf16.xpose.msra.mxu0 0
        %1603 = vmatprep.subr.bf16.mxu0 0
        %1604 = vmatpush1.bf16.xpose.msra.mxu0 0
        %1605 = vmatprep.subr.bf16.mxu0 0
        %1606 = vmatpush1.bf16.xpose.msra.mxu0 0
        %1607 = vmatprep.subr.bf16.mxu0 0
        %1608 = vmatpush1.bf16.xpose.msra.mxu0 0
        %1609 = vmatprep.subr.bf16.mxu0 0
        %1610 = vmatpush1.bf16.xpose.msra.mxu0 0
        %1611 = vmatprep.subr.bf16.mxu0 0
        %1612 = vmatpush1.bf16.xpose.msra.mxu0 0
        %1613 = vmatprep.subr.bf16.mxu0 0
        %1614 = vmatpush1.bf16.xpose.msra.mxu0 0
        %1615 = vmatprep.subr.bf16.mxu0 0
        %1616 = vmatpush1.bf16.xpose.msra.mxu0 0
        %1617 = vmatprep.subr.bf16.mxu0 0
        %1618 = vmatpush1.bf16.xpose.msra.mxu0 0
        %1619 = vmatprep.subr.bf16.mxu0 0
        %1620 = vmatpush1.bf16.xpose.msra.mxu0 0
        %1621 = vmatprep.subr.bf16.mxu0 0
        %1622 = vmatpush1.bf16.xpose.msra.mxu0 0
        %1623 = vmatprep.subr.bf16.mxu0 0
        %1624 = vmatpush1.bf16.xpose.msra.mxu0 0
        %1625 = vmatprep.subr.bf16.mxu0 0
        %1626 = vmatpush1.bf16.xpose.msra.mxu0 0
        %1627 = vmatprep.subr.bf16.mxu0 0
        %1628 = vmatpush1.bf16.xpose.msra.mxu0 0
        %1629 = vmatprep.mubr.bf16.mxu0 0
        %1630 = vmatmul.mubr.bf16.gmra.mrb[0].mxu0 %v1592
        %v1631 = vpop.f32.mrb[0].mxu0
        %v1632 = vadd.f32 %v559, %v1631
        %v1633 = vpop.f32.mrb[0].mxu0
        %v1634 = vpop.f32.mrb[0].mxu0
        %v1635 = vpop.f32.mrb[0].mxu0
        %1636 = vdwg.mxu0
        %v1637 = vsel %vm656, %v1632, -inf
        %1638 = vmax.xlane.f32.xlu0 %v1637
        %v1639 = vpop.xlane.xlu0 %1638
        %v1640 = vsub.f32 %v1632, %v1639
        %v1641 = vmul.f32 %v1640, 1.442695
        %v1642 = vpow.pop %v1641
        %v1643 = vsel %vm656, %v1642, 0.0
        %1644 = vadd.xlane.f32.xlu0 %v1643
        %v1645 = vpop.xlane.xlu0 %1644
        %v1646 = vrcp.pop %v1645
        %v1647 = vmul.f32 %v1642, %v1646
        %v1648 = vpack.c.bf16 %v1647, %v1647
        %1649 = vrot.lane.b32.xlu0 %v1477, 56
        %v1650 = vpop.permute.xlu0 %1649
        %v1652 = vsel %vm656, %v1648, 0
        %v1655 = vsel %vm720, %v1650, 0
        %1657 = vmatprep.subr.bf16.mxu0 0
        %1658 = vmatpush1.bf16.msra.mxu0 %v1655
        %1659 = vmatprep.subr.bf16.mxu0 0
        %1660 = vmatpush1.bf16.msra.mxu0 0
        %1661 = vmatprep.subr.bf16.mxu0 0
        %1662 = vmatpush1.bf16.msra.mxu0 0
        %1663 = vmatprep.subr.bf16.mxu0 0
        %1664 = vmatpush1.bf16.msra.mxu0 0
        %1665 = vmatprep.subr.bf16.mxu0 0
        %1666 = vmatpush1.bf16.msra.mxu0 0
        %1667 = vmatprep.subr.bf16.mxu0 0
        %1668 = vmatpush1.bf16.msra.mxu0 0
        %1669 = vmatprep.subr.bf16.mxu0 0
        %1670 = vmatpush1.bf16.msra.mxu0 0
        %1671 = vmatprep.subr.bf16.mxu0 0
        %1672 = vmatpush1.bf16.msra.mxu0 0
        %1673 = vmatprep.subr.bf16.mxu0 0
        %1674 = vmatpush1.bf16.msra.mxu0 0
        %1675 = vmatprep.subr.bf16.mxu0 0
        %1676 = vmatpush1.bf16.msra.mxu0 0
        %1677 = vmatprep.subr.bf16.mxu0 0
        %1678 = vmatpush1.bf16.msra.mxu0 0
        %1679 = vmatprep.subr.bf16.mxu0 0
        %1680 = vmatpush1.bf16.msra.mxu0 0
        %1681 = vmatprep.subr.bf16.mxu0 0
        %1682 = vmatpush1.bf16.msra.mxu0 0
        %1683 = vmatprep.subr.bf16.mxu0 0
        %1684 = vmatpush1.bf16.msra.mxu0 0
        %1685 = vmatprep.subr.bf16.mxu0 0
        %1686 = vmatpush1.bf16.msra.mxu0 0
        %1687 = vmatprep.subr.bf16.mxu0 0
        %1688 = vmatpush1.bf16.msra.mxu0 0
        %1689 = vmatprep.mubr.bf16.mxu0 0
        %1690 = vmatmul.mubr.bf16.gmra.mrb[0].mxu0 %v1652
        %v1691 = vpop.f32.mrb[0].mxu0
        %v1692 = vadd.f32 0.0, %v1691
        %v1693 = vpop.f32.mrb[0].mxu0
        %v1694 = vpop.f32.mrb[0].mxu0
        %v1695 = vpop.f32.mrb[0].mxu0
        %1696 = vdwg.mxu0
        %1697 = vrot.lane.b32.xlu0 %v1477, 112
        %v1698 = vpop.permute.xlu0 %1697
        %1699 = vrot.lane.b32.xlu0 %v1477, 80
        %v1700 = vpop.permute.xlu0 %1699
        %v1702 = vsel %vm656, %v1698, 0
        %v1705 = vsel %vm656, %v1700, 0
        %1707 = vmatprep.subr.bf16.mxu0 0
        %1708 = vmatpush1.bf16.xpose.msra.mxu0 %v1705
        %1709 = vmatprep.subr.bf16.mxu0 0
        %1710 = vmatpush1.bf16.xpose.msra.mxu0 0
        %1711 = vmatprep.subr.bf16.mxu0 0
        %1712 = vmatpush1.bf16.xpose.msra.mxu0 0
        %1713 = vmatprep.subr.bf16.mxu0 0
        %1714 = vmatpush1.bf16.xpose.msra.mxu0 0
        %1715 = vmatprep.subr.bf16.mxu0 0
        %1716 = vmatpush1.bf16.xpose.msra.mxu0 0
        %1717 = vmatprep.subr.bf16.mxu0 0
        %1718 = vmatpush1.bf16.xpose.msra.mxu0 0
        %1719 = vmatprep.subr.bf16.mxu0 0
        %1720 = vmatpush1.bf16.xpose.msra.mxu0 0
        %1721 = vmatprep.subr.bf16.mxu0 0
        %1722 = vmatpush1.bf16.xpose.msra.mxu0 0
        %1723 = vmatprep.subr.bf16.mxu0 0
        %1724 = vmatpush1.bf16.xpose.msra.mxu0 0
        %1725 = vmatprep.subr.bf16.mxu0 0
        %1726 = vmatpush1.bf16.xpose.msra.mxu0 0
        %1727 = vmatprep.subr.bf16.mxu0 0
        %1728 = vmatpush1.bf16.xpose.msra.mxu0 0
        %1729 = vmatprep.subr.bf16.mxu0 0
        %1730 = vmatpush1.bf16.xpose.msra.mxu0 0
        %1731 = vmatprep.subr.bf16.mxu0 0
        %1732 = vmatpush1.bf16.xpose.msra.mxu0 0
        %1733 = vmatprep.subr.bf16.mxu0 0
        %1734 = vmatpush1.bf16.xpose.msra.mxu0 0
        %1735 = vmatprep.subr.bf16.mxu0 0
        %1736 = vmatpush1.bf16.xpose.msra.mxu0 0
        %1737 = vmatprep.subr.bf16.mxu0 0
        %1738 = vmatpush1.bf16.xpose.msra.mxu0 0
        %1739 = vmatprep.mubr.bf16.mxu0 0
        %1740 = vmatmul.mubr.bf16.gmra.mrb[0].mxu0 %v1702
        %v1741 = vpop.f32.mrb[0].mxu0
        %v1742 = vadd.f32 %v559, %v1741
        %v1743 = vpop.f32.mrb[0].mxu0
        %v1744 = vpop.f32.mrb[0].mxu0
        %v1745 = vpop.f32.mrb[0].mxu0
        %1746 = vdwg.mxu0
        %v1747 = vsel %vm656, %v1742, -inf
        %1748 = vmax.xlane.f32.xlu0 %v1747
        %v1749 = vpop.xlane.xlu0 %1748
        %v1750 = vsub.f32 %v1742, %v1749
        %v1751 = vmul.f32 %v1750, 1.442695
        %v1752 = vpow.pop %v1751
        %v1753 = vsel %vm656, %v1752, 0.0
        %1754 = vadd.xlane.f32.xlu0 %v1753
        %v1755 = vpop.xlane.xlu0 %1754
        %v1756 = vrcp.pop %v1755
        %v1757 = vmul.f32 %v1752, %v1756
        %v1758 = vpack.c.bf16 %v1757, %v1757
        %1759 = vrot.lane.b32.xlu0 %v1477, 48
        %v1760 = vpop.permute.xlu0 %1759
        %v1762 = vsel %vm656, %v1758, 0
        %v1765 = vsel %vm720, %v1760, 0
        %1767 = vmatprep.subr.bf16.mxu0 0
        %1768 = vmatpush1.bf16.msra.mxu0 %v1765
        %1769 = vmatprep.subr.bf16.mxu0 0
        %1770 = vmatpush1.bf16.msra.mxu0 0
        %1771 = vmatprep.subr.bf16.mxu0 0
        %1772 = vmatpush1.bf16.msra.mxu0 0
        %1773 = vmatprep.subr.bf16.mxu0 0
        %1774 = vmatpush1.bf16.msra.mxu0 0
        %1775 = vmatprep.subr.bf16.mxu0 0
        %1776 = vmatpush1.bf16.msra.mxu0 0
        %1777 = vmatprep.subr.bf16.mxu0 0
        %1778 = vmatpush1.bf16.msra.mxu0 0
        %1779 = vmatprep.subr.bf16.mxu0 0
        %1780 = vmatpush1.bf16.msra.mxu0 0
        %1781 = vmatprep.subr.bf16.mxu0 0
        %1782 = vmatpush1.bf16.msra.mxu0 0
        %1783 = vmatprep.subr.bf16.mxu0 0
        %1784 = vmatpush1.bf16.msra.mxu0 0
        %1785 = vmatprep.subr.bf16.mxu0 0
        %1786 = vmatpush1.bf16.msra.mxu0 0
        %1787 = vmatprep.subr.bf16.mxu0 0
        %1788 = vmatpush1.bf16.msra.mxu0 0
        %1789 = vmatprep.subr.bf16.mxu0 0
        %1790 = vmatpush1.bf16.msra.mxu0 0
        %1791 = vmatprep.subr.bf16.mxu0 0
        %1792 = vmatpush1.bf16.msra.mxu0 0
        %1793 = vmatprep.subr.bf16.mxu0 0
        %1794 = vmatpush1.bf16.msra.mxu0 0
        %1795 = vmatprep.subr.bf16.mxu0 0
        %1796 = vmatpush1.bf16.msra.mxu0 0
        %1797 = vmatprep.subr.bf16.mxu0 0
        %1798 = vmatpush1.bf16.msra.mxu0 0
        %1799 = vmatprep.mubr.bf16.mxu0 0
        %1800 = vmatmul.mubr.bf16.gmra.mrb[0].mxu0 %v1762
        %v1801 = vpop.f32.mrb[0].mxu0
        %v1802 = vadd.f32 0.0, %v1801
        %v1803 = vpop.f32.mrb[0].mxu0
        %v1804 = vpop.f32.mrb[0].mxu0
        %v1805 = vpop.f32.mrb[0].mxu0
        %1806 = vdwg.mxu0
        %1807 = vrot.lane.b32.xlu0 %v1477, 104
        %v1808 = vpop.permute.xlu0 %1807
        %1809 = vrot.lane.b32.xlu0 %v1477, 72
        %v1810 = vpop.permute.xlu0 %1809
        %v1812 = vsel %vm656, %v1808, 0
        %v1815 = vsel %vm656, %v1810, 0
        %1817 = vmatprep.subr.bf16.mxu0 0
        %1818 = vmatpush1.bf16.xpose.msra.mxu0 %v1815
        %1819 = vmatprep.subr.bf16.mxu0 0
        %1820 = vmatpush1.bf16.xpose.msra.mxu0 0
        %1821 = vmatprep.subr.bf16.mxu0 0
        %1822 = vmatpush1.bf16.xpose.msra.mxu0 0
        %1823 = vmatprep.subr.bf16.mxu0 0
        %1824 = vmatpush1.bf16.xpose.msra.mxu0 0
        %1825 = vmatprep.subr.bf16.mxu0 0
        %1826 = vmatpush1.bf16.xpose.msra.mxu0 0
        %1827 = vmatprep.subr.bf16.mxu0 0
        %1828 = vmatpush1.bf16.xpose.msra.mxu0 0
        %1829 = vmatprep.subr.bf16.mxu0 0
        %1830 = vmatpush1.bf16.xpose.msra.mxu0 0
        %1831 = vmatprep.subr.bf16.mxu0 0
        %1832 = vmatpush1.bf16.xpose.msra.mxu0 0
        %1833 = vmatprep.subr.bf16.mxu0 0
        %1834 = vmatpush1.bf16.xpose.msra.mxu0 0
        %1835 = vmatprep.subr.bf16.mxu0 0
        %1836 = vmatpush1.bf16.xpose.msra.mxu0 0
        %1837 = vmatprep.subr.bf16.mxu0 0
        %1838 = vmatpush1.bf16.xpose.msra.mxu0 0
        %1839 = vmatprep.subr.bf16.mxu0 0
        %1840 = vmatpush1.bf16.xpose.msra.mxu0 0
        %1841 = vmatprep.subr.bf16.mxu0 0
        %1842 = vmatpush1.bf16.xpose.msra.mxu0 0
        %1843 = vmatprep.subr.bf16.mxu0 0
        %1844 = vmatpush1.bf16.xpose.msra.mxu0 0
        %1845 = vmatprep.subr.bf16.mxu0 0
        %1846 = vmatpush1.bf16.xpose.msra.mxu0 0
        %1847 = vmatprep.subr.bf16.mxu0 0
        %1848 = vmatpush1.bf16.xpose.msra.mxu0 0
        %1849 = vmatprep.mubr.bf16.mxu0 0
        %1850 = vmatmul.mubr.bf16.gmra.mrb[0].mxu0 %v1812
        %v1851 = vpop.f32.mrb[0].mxu0
        %v1852 = vadd.f32 %v559, %v1851
        %v1853 = vpop.f32.mrb[0].mxu0
        %v1854 = vpop.f32.mrb[0].mxu0
        %v1855 = vpop.f32.mrb[0].mxu0
        %1856 = vdwg.mxu0
        %v1857 = vsel %vm656, %v1852, -inf
        %1858 = vmax.xlane.f32.xlu0 %v1857
        %v1859 = vpop.xlane.xlu0 %1858
        %v1860 = vsub.f32 %v1852, %v1859
        %v1861 = vmul.f32 %v1860, 1.442695
        %v1862 = vpow.pop %v1861
        %v1863 = vsel %vm656, %v1862, 0.0
        %1864 = vadd.xlane.f32.xlu0 %v1863
        %v1865 = vpop.xlane.xlu0 %1864
        %v1866 = vrcp.pop %v1865
        %v1867 = vmul.f32 %v1862, %v1866
        %v1868 = vpack.c.bf16 %v1867, %v1867
        %1869 = vrot.lane.b32.xlu0 %v1477, 40
        %v1870 = vpop.permute.xlu0 %1869
        %v1872 = vsel %vm656, %v1868, 0
        %v1875 = vsel %vm720, %v1870, 0
        %1877 = vmatprep.subr.bf16.mxu0 0
        %1878 = vmatpush1.bf16.msra.mxu0 %v1875
        %1879 = vmatprep.subr.bf16.mxu0 0
        %1880 = vmatpush1.bf16.msra.mxu0 0
        %1881 = vmatprep.subr.bf16.mxu0 0
        %1882 = vmatpush1.bf16.msra.mxu0 0
        %1883 = vmatprep.subr.bf16.mxu0 0
        %1884 = vmatpush1.bf16.msra.mxu0 0
        %1885 = vmatprep.subr.bf16.mxu0 0
        %1886 = vmatpush1.bf16.msra.mxu0 0
        %1887 = vmatprep.subr.bf16.mxu0 0
        %1888 = vmatpush1.bf16.msra.mxu0 0
        %1889 = vmatprep.subr.bf16.mxu0 0
        %1890 = vmatpush1.bf16.msra.mxu0 0
        %1891 = vmatprep.subr.bf16.mxu0 0
        %1892 = vmatpush1.bf16.msra.mxu0 0
        %1893 = vmatprep.subr.bf16.mxu0 0
        %1894 = vmatpush1.bf16.msra.mxu0 0
        %1895 = vmatprep.subr.bf16.mxu0 0
        %1896 = vmatpush1.bf16.msra.mxu0 0
        %1897 = vmatprep.subr.bf16.mxu0 0
        %1898 = vmatpush1.bf16.msra.mxu0 0
        %1899 = vmatprep.subr.bf16.mxu0 0
        %1900 = vmatpush1.bf16.msra.mxu0 0
        %1901 = vmatprep.subr.bf16.mxu0 0
        %1902 = vmatpush1.bf16.msra.mxu0 0
        %1903 = vmatprep.subr.bf16.mxu0 0
        %1904 = vmatpush1.bf16.msra.mxu0 0
        %1905 = vmatprep.subr.bf16.mxu0 0
        %1906 = vmatpush1.bf16.msra.mxu0 0
        %1907 = vmatprep.subr.bf16.mxu0 0
        %1908 = vmatpush1.bf16.msra.mxu0 0
        %1909 = vmatprep.mubr.bf16.mxu0 0
        %1910 = vmatmul.mubr.bf16.gmra.mrb[0].mxu0 %v1872
        %v1911 = vpop.f32.mrb[0].mxu0
        %v1912 = vadd.f32 0.0, %v1911
        %v1913 = vpop.f32.mrb[0].mxu0
        %v1914 = vpop.f32.mrb[0].mxu0
        %v1915 = vpop.f32.mrb[0].mxu0
        %1916 = vdwg.mxu0
        %1918 = vrot.lane.b32.xlu0 %v1692, 8
        %v1919 = vpop.permute.xlu0 %1918
        %1922 = vrot.lane.b32.xlu0 %v1802, 16
        %v1923 = vpop.permute.xlu0 %1922
        %1926 = vrot.lane.b32.xlu0 %v1912, 24
        %v1927 = vpop.permute.xlu0 %1926
        %v1929 = vsel %vm656, %v1582, %v1919
        %v1930 = vsel %vm1107, %v1929, %v1923
        %v1931 = vsel %vm1109, %v1930, %v1927
        %v1932 = vpack.c.bf16 %v1931, %v1931
        %s1933 = scalar_lea.vmem %s7, 16
        %v1934 = vld [vmem:[%s1933] sm:$0xf]
        %v1935 = vld [vmem:[%s1933 + $0x4] sm:$0xf]
        %v1936 = vld [vmem:[%s1933 + $0x8] sm:$0xf]
        %v1937 = vld [vmem:[%s1933 + $0xc] sm:$0xf]
        %v1938 = vld [vmem:[%s8 + $0x1] sm:$0x1]
        %v1939 = vlaneseq
        %v1940 = vshrl.u32 %v1939, 7
        %v1941 = vsub.s32 0, %v1940
        %v1942 = vrot.slane %v1938, %v1941
        %v1947 = vunpack.c.l.b16 %v1934
        %v1948 = vunpack.c.l.b16 %v1935
        %v1949 = vunpack.c.l.b16 %v1936
        %v1950 = vunpack.c.l.b16 %v1937
        %v1951 = vpack.c.b16 %v1948, %v1947
        %v1952 = vpack.c.b16 %v1950, %v1949
        %v1956 = vsel %vm562, %v1932, 0
        %1958 = vmatprep.subr.bf16.mxu0 0
        %1959 = vmatpush1.bf16.msra.mxu0 %v1951
        %1960 = vmatprep.subr.bf16.mxu0 0
        %1961 = vmatpush1.bf16.msra.mxu0 %v1952
        %1962 = vmatprep.subr.bf16.mxu0 0
        %1963 = vmatpush1.bf16.msra.mxu0 0
        %1964 = vmatprep.subr.bf16.mxu0 0
        %1965 = vmatpush1.bf16.msra.mxu0 0
        %1966 = vmatprep.subr.bf16.mxu0 0
        %1967 = vmatpush1.bf16.msra.mxu0 0
        %1968 = vmatprep.subr.bf16.mxu0 0
        %1969 = vmatpush1.bf16.msra.mxu0 0
        %1970 = vmatprep.subr.bf16.mxu0 0
        %1971 = vmatpush1.bf16.msra.mxu0 0
        %1972 = vmatprep.subr.bf16.mxu0 0
        %1973 = vmatpush1.bf16.msra.mxu0 0
        %1974 = vmatprep.subr.bf16.mxu0 0
        %1975 = vmatpush1.bf16.msra.mxu0 0
        %1976 = vmatprep.subr.bf16.mxu0 0
        %1977 = vmatpush1.bf16.msra.mxu0 0
        %1978 = vmatprep.subr.bf16.mxu0 0
        %1979 = vmatpush1.bf16.msra.mxu0 0
        %1980 = vmatprep.subr.bf16.mxu0 0
        %1981 = vmatpush1.bf16.msra.mxu0 0
        %1982 = vmatprep.subr.bf16.mxu0 0
        %1983 = vmatpush1.bf16.msra.mxu0 0
        %1984 = vmatprep.subr.bf16.mxu0 0
        %1985 = vmatpush1.bf16.msra.mxu0 0
        %1986 = vmatprep.subr.bf16.mxu0 0
        %1987 = vmatpush1.bf16.msra.mxu0 0
        %1988 = vmatprep.subr.bf16.mxu0 0
        %1989 = vmatpush1.bf16.msra.mxu0 0
        %1990 = vmatprep.mubr.bf16.mxu0 0
        %1991 = vmatmul.mubr.bf16.gmra.mrb[0].mxu0 %v1956
        %v1992 = vpop.f32.mrb[0].mxu0
        %v1993 = vadd.f32 %v1942, %v1992
        %v1994 = vpop.f32.mrb[0].mxu0
        %v1995 = vpop.f32.mrb[0].mxu0
        %v1996 = vpop.f32.mrb[0].mxu0
        %1997 = vdwg.mxu0
        %v1998 = vadd.f32 %v1385, %v1993
        %v1999 = vld [vmem:[%s9 + $0x1] sm:$0x1]
        %v2000 = vld [vmem:[%s10 + $0x1] sm:$0x1]
        %v2001 = vsel %vm562, %v1998, 0.0
        %2002 = vadd.xlane.f32.xlu0 %v2001
        %v2003 = vpop.xlane.xlu0 %2002
        %v2004 = vmul.f32 %v2003, %v566
        %v2005 = vsub.f32 %v1998, %v2004
        %v2006 = vmul.f32 %v2005, %v2005
        %v2007 = vsel %vm562, %v2006, 0.0
        %2008 = vadd.xlane.f32.xlu0 %v2007
        %v2009 = vpop.xlane.xlu0 %2008
        %v2010 = vmul.f32 %v2009, %v566
        %v2011 = vadd.f32 %v2010, 1e-05
        %v2012 = vrsqrt.pop %v2011
        %v2013 = vmul.f32 %v2005, %v2012
        %v2014 = vlaneseq
        %v2015 = vshrl.u32 %v2014, 7
        %v2016 = vsub.s32 0, %v2015
        %v2017 = vrot.slane %v1999, %v2016
        %v2018 = vmul.f32 %v2013, %v2017
        %v2019 = vlaneseq
        %v2020 = vshrl.u32 %v2019, 7
        %v2021 = vsub.s32 0, %v2020
        %v2022 = vrot.slane %v2000, %v2021
        %v2023 = vadd.f32 %v2018, %v2022
        %v2024 = vpack.c.bf16 %v2023, %v2023
        %s2025 = scalar_lea.vmem %s11, 16
        %v2026 = vld [vmem:[%s2025] sm:$0xf]
        %v2027 = vld [vmem:[%s2025 + $0x4] sm:$0xf]
        %v2028 = vld [vmem:[%s2025 + $0x8] sm:$0xf]
        %v2029 = vld [vmem:[%s2025 + $0xc] sm:$0xf]
        %v2030 = vld [vmem:[%s12 + $0x1] sm:$0x1]
        %v2031 = vlaneseq
        %v2032 = vshrl.u32 %v2031, 7
        %v2033 = vsub.s32 0, %v2032
        %v2034 = vrot.slane %v2030, %v2033
        %v2039 = vunpack.c.l.b16 %v2026
        %v2040 = vunpack.c.l.b16 %v2027
        %v2041 = vunpack.c.l.b16 %v2028
        %v2042 = vunpack.c.l.b16 %v2029
        %v2043 = vpack.c.b16 %v2040, %v2039
        %v2044 = vpack.c.b16 %v2042, %v2041
        %v2048 = vsel %vm562, %v2024, 0
        %2050 = vmatprep.subr.bf16.mxu0 0
        %2051 = vmatpush1.bf16.msra.mxu0 %v2043
        %2052 = vmatprep.subr.bf16.mxu0 0
        %2053 = vmatpush1.bf16.msra.mxu0 %v2044
        %2054 = vmatprep.subr.bf16.mxu0 0
        %2055 = vmatpush1.bf16.msra.mxu0 0
        %2056 = vmatprep.subr.bf16.mxu0 0
        %2057 = vmatpush1.bf16.msra.mxu0 0
        %2058 = vmatprep.subr.bf16.mxu0 0
        %2059 = vmatpush1.bf16.msra.mxu0 0
        %2060 = vmatprep.subr.bf16.mxu0 0
        %2061 = vmatpush1.bf16.msra.mxu0 0
        %2062 = vmatprep.subr.bf16.mxu0 0
        %2063 = vmatpush1.bf16.msra.mxu0 0
        %2064 = vmatprep.subr.bf16.mxu0 0
        %2065 = vmatpush1.bf16.msra.mxu0 0
        %2066 = vmatprep.subr.bf16.mxu0 0
        %2067 = vmatpush1.bf16.msra.mxu0 0
        %2068 = vmatprep.subr.bf16.mxu0 0
        %2069 = vmatpush1.bf16.msra.mxu0 0
        %2070 = vmatprep.subr.bf16.mxu0 0
        %2071 = vmatpush1.bf16.msra.mxu0 0
        %2072 = vmatprep.subr.bf16.mxu0 0
        %2073 = vmatpush1.bf16.msra.mxu0 0
        %2074 = vmatprep.subr.bf16.mxu0 0
        %2075 = vmatpush1.bf16.msra.mxu0 0
        %2076 = vmatprep.subr.bf16.mxu0 0
        %2077 = vmatpush1.bf16.msra.mxu0 0
        %2078 = vmatprep.subr.bf16.mxu0 0
        %2079 = vmatpush1.bf16.msra.mxu0 0
        %2080 = vmatprep.subr.bf16.mxu0 0
        %2081 = vmatpush1.bf16.msra.mxu0 0
        %2082 = vmatprep.mubr.bf16.mxu0 0
        %2083 = vmatmul.mubr.bf16.gmra.mrb[0].mxu0 %v2048
        %v2084 = vpop.f32.mrb[0].mxu0
        %v2085 = vadd.f32 %v2034, %v2084
        %v2086 = vpop.f32.mrb[0].mxu0
        %v2087 = vpop.f32.mrb[0].mxu0
        %v2088 = vpop.f32.mrb[0].mxu0
        %2089 = vdwg.mxu0
        %v2090 = vmul.f32 %v2085, 1.702
        %v2091 = vxor.u32 %v2090, 2147483648
        %v2092 = vmul.f32 %v2091, 1.442695
        %v2093 = vpow.pop %v2092
        %v2094 = vadd.f32 %v2093, 1.0
        %v2095 = vrcp.pop %v2094
        %v2096 = vmul.f32 1.0, %v2095
        %v2097 = vmul.f32 %v2085, %v2096
        %v2098 = vpack.c.bf16 %v2097, %v2097
        %s2099 = scalar_lea.vmem %s13, 64
        %v2100 = vld [vmem:[%s2099] sm:$0xf]
        %v2101 = vld [vmem:[%s2099 + $0x4] sm:$0xf]
        %v2102 = vld [vmem:[%s2099 + $0x8] sm:$0xf]
        %v2103 = vld [vmem:[%s2099 + $0xc] sm:$0xf]
        %v2104 = vld [vmem:[%s2099 + $0x10] sm:$0xf]
        %v2105 = vld [vmem:[%s2099 + $0x14] sm:$0xf]
        %v2106 = vld [vmem:[%s2099 + $0x18] sm:$0xf]
        %v2107 = vld [vmem:[%s2099 + $0x1c] sm:$0xf]
        %v2108 = vld [vmem:[%s2099 + $0x20] sm:$0xf]
        %v2109 = vld [vmem:[%s2099 + $0x24] sm:$0xf]
        %v2110 = vld [vmem:[%s2099 + $0x28] sm:$0xf]
        %v2111 = vld [vmem:[%s2099 + $0x2c] sm:$0xf]
        %v2112 = vld [vmem:[%s2099 + $0x30] sm:$0xf]
        %v2113 = vld [vmem:[%s2099 + $0x34] sm:$0xf]
        %v2114 = vld [vmem:[%s2099 + $0x38] sm:$0xf]
        %v2115 = vld [vmem:[%s2099 + $0x3c] sm:$0xf]
        %v2116 = vld [vmem:[%s14 + $0x1] sm:$0x1]
        %v2117 = vlaneseq
        %v2118 = vshrl.u32 %v2117, 7
        %v2119 = vsub.s32 0, %v2118
        %v2120 = vrot.slane %v2116, %v2119
        %v2137 = vunpack.c.l.b16 %v2100
        %v2138 = vunpack.c.l.b16 %v2101
        %v2139 = vunpack.c.l.b16 %v2102
        %v2140 = vunpack.c.l.b16 %v2103
        %v2141 = vunpack.c.l.b16 %v2104
        %v2142 = vunpack.c.l.b16 %v2105
        %v2143 = vunpack.c.l.b16 %v2106
        %v2144 = vunpack.c.l.b16 %v2107
        %v2145 = vunpack.c.l.b16 %v2108
        %v2146 = vunpack.c.l.b16 %v2109
        %v2147 = vunpack.c.l.b16 %v2110
        %v2148 = vunpack.c.l.b16 %v2111
        %v2149 = vunpack.c.l.b16 %v2112
        %v2150 = vunpack.c.l.b16 %v2113
        %v2151 = vunpack.c.l.b16 %v2114
        %v2152 = vunpack.c.l.b16 %v2115
        %v2153 = vpack.c.b16 %v2138, %v2137
        %v2154 = vpack.c.b16 %v2140, %v2139
        %v2155 = vpack.c.b16 %v2142, %v2141
        %v2156 = vpack.c.b16 %v2144, %v2143
        %v2157 = vpack.c.b16 %v2146, %v2145
        %v2158 = vpack.c.b16 %v2148, %v2147
        %v2159 = vpack.c.b16 %v2150, %v2149
        %v2160 = vpack.c.b16 %v2152, %v2151
        %2169 = vmatprep.subr.bf16.mxu0 0
        %2170 = vmatpush1.bf16.msra.mxu0 %v2153
        %2171 = vmatprep.subr.bf16.mxu0 0
        %2172 = vmatpush1.bf16.msra.mxu0 %v2154
        %2173 = vmatprep.subr.bf16.mxu0 0
        %2174 = vmatpush1.bf16.msra.mxu0 %v2155
        %2175 = vmatprep.subr.bf16.mxu0 0
        %2176 = vmatpush1.bf16.msra.mxu0 %v2156
        %2177 = vmatprep.subr.bf16.mxu0 0
        %2178 = vmatpush1.bf16.msra.mxu0 %v2157
        %2179 = vmatprep.subr.bf16.mxu0 0
        %2180 = vmatpush1.bf16.msra.mxu0 %v2158
        %2181 = vmatprep.subr.bf16.mxu0 0
        %2182 = vmatpush1.bf16.msra.mxu0 %v2159
        %2183 = vmatprep.subr.bf16.mxu0 0
        %2184 = vmatpush1.bf16.msra.mxu0 %v2160
        %2185 = vmatprep.subr.bf16.mxu0 0
        %2186 = vmatpush1.bf16.msra.mxu0 0
        %2187 = vmatprep.subr.bf16.mxu0 0
        %2188 = vmatpush1.bf16.msra.mxu0 0
        %2189 = vmatprep.subr.bf16.mxu0 0
        %2190 = vmatpush1.bf16.msra.mxu0 0
        %2191 = vmatprep.subr.bf16.mxu0 0
        %2192 = vmatpush1.bf16.msra.mxu0 0
        %2193 = vmatprep.subr.bf16.mxu0 0
        %2194 = vmatpush1.bf16.msra.mxu0 0
        %2195 = vmatprep.subr.bf16.mxu0 0
        %2196 = vmatpush1.bf16.msra.mxu0 0
        %2197 = vmatprep.subr.bf16.mxu0 0
        %2198 = vmatpush1.bf16.msra.mxu0 0
        %2199 = vmatprep.subr.bf16.mxu0 0
        %2200 = vmatpush1.bf16.msra.mxu0 0
        %2201 = vmatprep.mubr.bf16.mxu0 0
        %2202 = vmatmul.mubr.bf16.gmra.mrb[0].mxu0 %v2098
        %v2203 = vpop.f32.mrb[0].mxu0
        %v2204 = vadd.f32 %v2120, %v2203
        %v2205 = vpop.f32.mrb[0].mxu0
        %v2206 = vpop.f32.mrb[0].mxu0
        %v2207 = vpop.f32.mrb[0].mxu0
        %2208 = vdwg.mxu0
        %v2209 = vadd.f32 %v1998, %v2204
        %2210 = vst.msk [vmem:[#allocation2] sm:$0xff] %vm562, %v2209
        %s2211 = sld [smem:[#allocation4 + %s38]]
        %s2212 = scalar_lea.vmem [#allocation2], %s2211
        %v2213 = vld [vmem:[%s2212] sm:$0x1]
        %v2214 = vld [vmem:[%s15] sm:$0x1]
        %v2215 = vld [vmem:[%s16] sm:$0x1]
        %vm2216 = vcmask 253952
        %v2217 = vsel %vm2216, %v2213, 0.0
        %2218 = vadd.xlane.f32.xlu0 %v2217
        %v2219 = vpop.xlane.xlu0 %2218
        %v2220 = vmul.f32 %v2219, %v566
        %v2221 = vsub.f32 %v2213, %v2220
        %v2222 = vmul.f32 %v2221, %v2221
        %v2223 = vsel %vm2216, %v2222, 0.0
        %2224 = vadd.xlane.f32.xlu0 %v2223
        %v2225 = vpop.xlane.xlu0 %2224
        %v2226 = vmul.f32 %v2225, %v566
        %v2227 = vadd.f32 %v2226, 1e-05
        %v2228 = vrsqrt.pop %v2227
        %v2229 = vmul.f32 %v2221, %v2228
        %v2230 = vmul.f32 %v2229, %v2214
        %v2231 = vadd.f32 %v2230, %v2215
        %v2232 = vpack.c.bf16 %v2231, %v2231
        %v2233 = vld [vmem:[%s17] sm:$0xf]
        %v2234 = vld [vmem:[%s17 + $0x4] sm:$0xf]
        %v2235 = vld [vmem:[%s17 + $0x8] sm:$0xf]
        %v2236 = vld [vmem:[%s17 + $0xc] sm:$0xf]
        %v2241 = vunpack.c.l.b16 %v2233
        %v2242 = vunpack.c.l.b16 %v2234
        %v2243 = vunpack.c.l.b16 %v2235
        %v2244 = vunpack.c.l.b16 %v2236
        %v2245 = vpack.c.b16 %v2242, %v2241
        %v2246 = vpack.c.b16 %v2244, %v2243
        %v2250 = vsel %vm562, %v2232, 0
        %2252 = vmatprep.subr.bf16.mxu0 0
        %2253 = vmatpush1.bf16.msra.mxu0 %v2245
        %2254 = vmatprep.subr.bf16.mxu0 0
        %2255 = vmatpush1.bf16.msra.mxu0 %v2246
        %2256 = vmatprep.subr.bf16.mxu0 0
        %2257 = vmatpush1.bf16.msra.mxu0 0
        %2258 = vmatprep.subr.bf16.mxu0 0
        %2259 = vmatpush1.bf16.msra.mxu0 0
        %2260 = vmatprep.subr.bf16.mxu0 0
        %2261 = vmatpush1.bf16.msra.mxu0 0
        %2262 = vmatprep.subr.bf16.mxu0 0
        %2263 = vmatpush1.bf16.msra.mxu0 0
        %2264 = vmatprep.subr.bf16.mxu0 0
        %2265 = vmatpush1.bf16.msra.mxu0 0
        %2266 = vmatprep.subr.bf16.mxu0 0
        %2267 = vmatpush1.bf16.msra.mxu0 0
        %2268 = vmatprep.subr.bf16.mxu0 0
        %2269 = vmatpush1.bf16.msra.mxu0 0
        %2270 = vmatprep.subr.bf16.mxu0 0
        %2271 = vmatpush1.bf16.msra.mxu0 0
        %2272 = vmatprep.subr.bf16.mxu0 0
        %2273 = vmatpush1.bf16.msra.mxu0 0
        %2274 = vmatprep.subr.bf16.mxu0 0
        %2275 = vmatpush1.bf16.msra.mxu0 0
        %2276 = vmatprep.subr.bf16.mxu0 0
        %2277 = vmatpush1.bf16.msra.mxu0 0
        %2278 = vmatprep.subr.bf16.mxu0 0
        %2279 = vmatpush1.bf16.msra.mxu0 0
        %2280 = vmatprep.subr.bf16.mxu0 0
        %2281 = vmatpush1.bf16.msra.mxu0 0
        %2282 = vmatprep.subr.bf16.mxu0 0
        %2283 = vmatpush1.bf16.msra.mxu0 0
        %2284 = vmatprep.mubr.bf16.mxu0 0
        %2285 = vmatmul.mubr.bf16.gmra.mrb[0].mxu0 %v2250
        %v2286 = vpop.f32.mrb[0].mxu0
        %v2287 = vadd.f32 0.0, %v2286
        %v2288 = vpop.f32.mrb[0].mxu0
        %v2289 = vpop.f32.mrb[0].mxu0
        %v2290 = vpop.f32.mrb[0].mxu0
        %2291 = vdwg.mxu0
        %2292 = vst.msk [vmem:[%s545] sm:$0x1] %vm2216, %v2287
        %s2293 = sand.u32 %s408, 1
        %s2294 = scalar_lea.sflag [#allocation6], %s2293
        %s2295 = sand.u32 %s408, 1
        %s2296 = scalar_lea.vmem [#allocation5], %s2295
        // Predicated region
        $region89: #{tpu_custom_call.1} parent=87 // pred_check
          %p2297 = pneg %p418
        $region90: #{tpu_custom_call.1} parent=87 // pred_check_branch
          %2299 = sbr.rel (%p2297) target = $region92
        $region91: #{tpu_custom_call.1} parent=87 // pred_region
          %s2301 = ssub.s32 16, 16
          %2302 = vsyncadd %s2294, %s2301
          %s2303 = smul.addr %s38, 16
          %s2304 = scalar_lea.hbm %s18, %s2303
          %s2306 = sshll.u32 %s2296, 4
          %s2307 = int_to_ptr.vmem [resolvable:$true] %s2306
          %2309 = dma.vmem_to_hbm [thread:$0]  %s2307, 16, %s2304, %s2294
        $region92: #{tpu_custom_call.1} parent=87 // pred_fallthru
          _
      $region88: #{tpu_custom_call.1} parent=5 // pred_fallthru
        _
      %p2310 = scmp.le.s32.totalorder 2, %s33
      // Predicated region
      $region93: #{tpu_custom_call.1} parent=5 // pred_check
        %p2311 = pneg %p2310
      $region94: #{tpu_custom_call.1} parent=5 // pred_check_branch
        %2313 = sbr.rel (%p2311) target = $region96
      $region95: #{tpu_custom_call.1} parent=5 // pred_region
        %s2314 = ssub.s32 %s33, 2
        // Predicated region
        $region97: #{tpu_custom_call.1} parent=95 // pred_check
          %p2315 = pneg %p424
        $region98: #{tpu_custom_call.1} parent=95 // pred_check_branch
          %2317 = sbr.rel (%p2315) target = $region100
        $region99: #{tpu_custom_call.1} parent=95 // pred_region
          %s2318 = sand.u32 %s409, 1
          %s2319 = scalar_lea.sflag [#allocation6], %s2318
          %s2320 = sand.u32 %s409, 1
          %s2321 = scalar_lea.vmem [#allocation5], %s2320
          %2322 = dma.done %s2319, 16
        $region100: #{tpu_custom_call.1} parent=95 // pred_fallthru
          _
      $region96: #{tpu_custom_call.1} parent=5 // pred_fallthru
        _
    $region6: #{tpu_custom_call.1} parent=1 // loop_footer
      %s37 = sadd.s32 1, %s33
    $region7: #{tpu_custom_call.1} parent=1 // loop_footer_branch
      %32 = sbr.rel target = $region3
    $region8: #{tpu_custom_call.1} parent=1 // loop_exit
      _
    %2323 = vsyncpa [#allocation6], 1
    %s2324 = scalar_lea.sflag [#allocation6], 1
    %2325 = vsyncpa %s2324, 1

</llo_original>
